<compile_context>
chip_gen: v7x
topology: tpu7x:2x2x1
jax: 0.10.0
libtpu: 0.0.40
codegen_flags: <defaults>
</compile_context>

<pallas_src>
import functools
import math

import jax
import jax.numpy as jnp
import numpy as np
from jax.experimental import pallas as pl
from jax.experimental.pallas import tpu as pltpu


# ------------------------------ in-kernel math helpers -------------------------------

def _mat(a, w_bf16):
    """a @ w with bf16 MXU operands and f32 accumulation.  Weights arrive already
    transposed to (in, out), so this is a plain contraction (no trans_b)."""
    return jax.lax.dot_general(
        a.astype(jnp.bfloat16), w_bf16,
        (((1,), (0,)), ((), ())), preferred_element_type=jnp.float32)


def _layernorm(x, w, b, eps=1e-5):
    mu = jnp.mean(x, axis=-1, keepdims=True)
    xc = x - mu
    var = jnp.mean(xc * xc, axis=-1, keepdims=True)
    return xc * jax.lax.rsqrt(var + eps) * w + b


def _attention(q, k, v, wo_bf16, bo, mask, n_heads):
    """Per-batch multi-head attention.

    q: (B, Sq, D) f32 (already scaled, bias included); k, v: (B, Sk, D) f32;
    mask: (Sq, Sk) additive f32 (the small user mask, shared across the batch).
    Per-head outputs are kept in values and concatenated once (no VMEM scratch), then a
    single full-width output projection is applied over all B*Sq rows.
    """
    B, Sq, D = q.shape
    dh = D // n_heads
    qb = q.astype(jnp.bfloat16)
    kb = k.astype(jnp.bfloat16)
    vb = v.astype(jnp.bfloat16)
    m = mask[None]                                          # broadcast over batch
    heads = []
    for h in range(n_heads):                                # static unroll (H small)
        lo = h * dh
        s = jnp.einsum('bqd,bkd->bqk', qb[..., lo:lo + dh], kb[..., lo:lo + dh],
                       preferred_element_type=jnp.float32) + m
        s = s - jnp.max(s, axis=-1, keepdims=True)
        p = jnp.exp(s)                                      # f32 (EUP)
        p = p * pl.reciprocal(jnp.sum(p, axis=-1, keepdims=True), approx=True)
        heads.append(jnp.einsum('bqk,bkd->bqd', p.astype(jnp.bfloat16),
                                vb[..., lo:lo + dh],
                                preferred_element_type=jnp.float32))
    o = jnp.concatenate(heads, axis=-1).reshape(B * Sq, D)  # merge non-lane dims: free
    return _mat(o, wo_bf16) + bo                            # single output projection


# ------------------------------------ Pallas kernel ----------------------------------

def _decoder_kernel(x_ref, mem_ref, tmask_ref, mmask_ref,
                    sa_w_ref, ca_w_ref, w1_ref, w2_ref, vec_ref,
                    out_ref, *, n_heads, batch):
    Rt, D = x_ref.shape
    Rm = mem_ref.shape[0]
    St, Sm = Rt // batch, Rm // batch
    dff = w1_ref.shape[1]
    scale = 1.0 / math.sqrt(D // n_heads)

    x = x_ref[...]                     # (Rt, D) f32, rows (batch, seq)-ordered
    mem = mem_ref[...]                 # (Rm, D) f32
    vec = vec_ref[...]                 # (12, 128) f32 packed biases / LayerNorm params
    sa_w = sa_w_ref[...]               # (D, 4D) bf16: [Wq | Wk | Wv | Wo]
    ca_w = ca_w_ref[...]               # (D, 4D) bf16

    # -------- self-attention + residual + LayerNorm (dropout = identity in eval) -----
    qkv = _mat(x, sa_w[:, :3 * D]) + vec[0:1, :3 * D]              # fused QKV (Rt, 3D)
    sa = _attention((qkv[:, :D] * scale).reshape(batch, St, D),
                    qkv[:, D:2 * D].reshape(batch, St, D),
                    qkv[:, 2 * D:].reshape(batch, St, D),
                    sa_w[:, 3 * D:], vec[3:4, :D], tmask_ref[...], n_heads)
    x = _layernorm(x + sa, vec[6:7, :D], vec[7:8, :D])

    # -------- cross-attention + residual + LayerNorm ----------------------------------
    q = ((_mat(x, ca_w[:, :D]) + vec[1:2, :D]) * scale).reshape(batch, St, D)
    kv = _mat(mem, ca_w[:, D:3 * D]) + vec[1:2, D:3 * D]           # fused K|V (Rm, 2D)
    ca = _attention(q,
                    kv[:, :D].reshape(batch, Sm, D),
                    kv[:, D:].reshape(batch, Sm, D),
                    ca_w[:, 3 * D:], vec[4:5, :D], mmask_ref[...], n_heads)
    x = _layernorm(x + ca, vec[8:9, :D], vec[9:10, :D])

    # -------- feed-forward (Linear -> ReLU -> Linear) + residual + LayerNorm ----------
    h = jnp.maximum(_mat(x, w1_ref[...]) + vec[2:3, :dff], 0.0)
    ff = _mat(h, w2_ref[...]) + vec[5:6, :D]
    out_ref[...] = _layernorm(x + ff, vec[10:11, :D], vec[11:12, :D])


# --------------------------------------- wrapper -------------------------------------

def _prepare_params(p):
    """Pack the 18 PyTorch-style parameter arrays into 5 kernel inputs.
    Weight matrices are transposed to (in, out) and cast to bf16 (MXU operands);
    biases / LayerNorm params stay f32, packed one-per-row into a (12, W) array."""
    bf = lambda a: a.astype(jnp.bfloat16)
    d_model = p["sa_wo"].shape[0]
    d_ff = p["ff_w1"].shape[0]
    W = max(128, 3 * d_model, d_ff)

    sa_w = bf(jnp.concatenate([p["sa_wqkv"].T, p["sa_wo"].T], axis=1))   # (D, 4D)
    ca_w = bf(jnp.concatenate([p["ca_wqkv"].T, p["ca_wo"].T], axis=1))   # (D, 4D)
    w1 = bf(p["ff_w1"].T)                                                # (D, dff)
    w2 = bf(p["ff_w2"].T)                                                # (dff, D)

    def row(a):
        a = a.reshape(1, -1).astype(jnp.float32)
        return jnp.pad(a, ((0, 0), (0, W - a.shape[1])))

    vec = jnp.concatenate(
        [row(p["sa_bqkv"]), row(p["ca_bqkv"]), row(p["ff_b1"]),
         row(p["sa_bo"]), row(p["ca_bo"]), row(p["ff_b2"]),
         row(p["n1w"]), row(p["n1b"]), row(p["n2w"]), row(p["n2b"]),
         row(p["n3w"]), row(p["n3b"])], axis=0)                          # (12, W)
    return sa_w, ca_w, w1, w2, vec


def transformer_decoder_layer(x_sbd, memory_sbd, params, tgt_mask, memory_mask, n_heads):
    """x_sbd: (S_t, B, D), memory_sbd: (S_m, B, D) -- PyTorch (seq, batch, embed) layout.
    tgt_mask: additive float (S_t, S_t) or None; memory_mask: (S_t, S_m) or None.
    Returns (S_t, B, D) float32."""
    S_t, B, D = x_sbd.shape
    S_m = memory_sbd.shape[0]
    R_t, R_m = S_t * B, S_m * B
    d_ff = params["ff_w1"].shape[0]

    if tgt_mask is None:
        tgt_mask = jnp.zeros((S_t, S_t), jnp.float32)
    if memory_mask is None:
        memory_mask = jnp.zeros((S_t, S_m), jnp.float32)

    # (seq, batch, D) -> (batch*seq, D): contiguous per-batch rows, so attention inside
    # the kernel is per batch (no B^2 folded scores, no O((S*B)^2) masks).  The
    # transposes are O(S*B*D) XLA ops outside the kernel.
    x2 = jnp.transpose(x_sbd, (1, 0, 2)).reshape(R_t, D).astype(jnp.float32)
    m2 = jnp.transpose(memory_sbd, (1, 0, 2)).reshape(R_m, D).astype(jnp.float32)

    sa_w, ca_w, w1, w2, vec = _prepare_params(params)
    ins = (x2, m2, tgt_mask.astype(jnp.float32), memory_mask.astype(jnp.float32),
           sa_w, ca_w, w1, w2, vec)

    flops = 2 * (R_t * 3 * D * D          # self QKV projection
                 + 2 * R_t * S_t * D      # self QK^T + PV (summed over heads/batch)
                 + R_t * D * D            # self output projection
                 + R_t * D * D            # cross Q projection
                 + R_m * 2 * D * D        # cross KV projection
                 + 2 * R_t * S_m * D      # cross QK^T + PV
                 + R_t * D * D            # cross output projection
                 + 2 * R_t * D * d_ff)    # feed-forward (two matmuls)
    transcendentals = n_heads * B * (S_t * S_t + S_t * S_m) + 3 * R_t
    bytes_accessed = int(sum(int(np.prod(a.shape)) * a.dtype.itemsize for a in ins)
                         + R_t * D * 4)

    # TODO(synk): for large S*B add a leading "parallel" grid axis over query-row blocks
    # (weights/memory index_maps invariant in it) so v7x's 2 TensorCores are both used,
    # and set vmem_limit_bytes per generation (v7x has 64 MiB VMEM vs 128 MiB v5e/v6e).
    out2 = pl.pallas_call(
        functools.partial(_decoder_kernel, n_heads=n_heads, batch=B),
        out_shape=jax.ShapeDtypeStruct((R_t, D), jnp.float32),
        grid_spec=pltpu.PrefetchScalarGridSpec(
            num_scalar_prefetch=0,
            grid=(1,),                                     # whole layer in one grid step
            in_specs=[pl.BlockSpec(a.shape, lambda i: (0, 0)) for a in ins],
            out_specs=pl.BlockSpec((R_t, D), lambda i: (0, 0)),
        ),
        compiler_params=pltpu.CompilerParams(dimension_semantics=("arbitrary",)),
        cost_estimate=pl.CostEstimate(flops=int(flops),
                                      transcendentals=int(transcendentals),
                                      bytes_accessed=bytes_accessed),
    )(*ins)

    return jnp.transpose(out2.reshape(B, S_t, D), (1, 0, 2))


# ---------------------------------- param construction --------------------------------

def init_params(key, d_model, n_heads, d_ff):
    ks = jax.random.split(key, 12)

    def w(k, shape, scale=0.05):
        return (scale * jax.random.normal(k, shape)).astype(jnp.float32)

    return {
        # self-attention (PyTorch in_proj layout: rows [Q; K; V])
        "sa_wqkv": w(ks[0], (3 * d_model, d_model)),
        "sa_bqkv": w(ks[1], (1, 3 * d_model)),
        "sa_wo": w(ks[2], (d_model, d_model)),
        "sa_bo": w(ks[3], (1, d_model)),
        # cross-attention
        "ca_wqkv": w(ks[4], (3 * d_model, d_model)),
        "ca_bqkv": w(ks[5], (1, 3 * d_model)),
        "ca_wo": w(ks[6], (d_model, d_model)),
        "ca_bo": w(ks[7], (1, d_model)),
        # layer norms (PyTorch init: weight=1, bias=0)
        "n1w": jnp.ones((1, d_model), jnp.float32), "n1b": jnp.zeros((1, d_model), jnp.float32),
        "n2w": jnp.ones((1, d_model), jnp.float32), "n2b": jnp.zeros((1, d_model), jnp.float32),
        "n3w": jnp.ones((1, d_model), jnp.float32), "n3b": jnp.zeros((1, d_model), jnp.float32),
        # feed-forward
        "ff_w1": w(ks[8], (d_ff, d_model)), "ff_b1": w(ks[9], (1, d_ff)),
        "ff_w2": w(ks[10], (d_model, d_ff)), "ff_b2": w(ks[11], (1, d_model)),
    }


# -------------------------- pure-JAX reference (textbook math) ------------------------

def _ref_forward(x_sbd, mem_sbd, params, tgt_mask, memory_mask, n_heads):
    """Per-batch / per-head PyTorch-style decoder-layer math (same bf16-matmul /
    f32-accumulation policy as the kernel).  Structurally different from the kernel
    (vmap over batch, head reshapes, PyTorch (out, in) weights) so it cross-checks the
    weight packing/transposition and the per-batch attention."""
    D = x_sbd.shape[-1]
    dh = D // n_heads
    scale = 1.0 / math.sqrt(dh)

    def matT(a, w):
        return jax.lax.dot_general(a.astype(jnp.bfloat16), w.astype(jnp.bfloat16),
                                   (((1,), (1,)), ((), ())),
                                   preferred_element_type=jnp.float32)

    def ln(x, w, b, eps=1e-5):
        mu = jnp.mean(x, -1, keepdims=True)
        var = jnp.mean((x - mu) ** 2, -1, keepdims=True)
        return (x - mu) * jax.lax.rsqrt(var + eps) * w + b

    def mha(xq, xkv, wqkv, bqkv, wo, bo, mask):
        Sq, Skv = xq.shape[0], xkv.shape[0]
        q = (matT(xq, wqkv[:D]) + bqkv[:, :D]) * scale
        k = matT(xkv, wqkv[D:2 * D]) + bqkv[:, D:2 * D]
        v = matT(xkv, wqkv[2 * D:]) + bqkv[:, 2 * D:]
        qh = q.reshape(Sq, n_heads, dh).transpose(1, 0, 2)
        kh = k.reshape(Skv, n_heads, dh).transpose(1, 0, 2)
        vh = v.reshape(Skv, n_heads, dh).transpose(1, 0, 2)
        s = jnp.einsum("hqd,hkd->hqk", qh.astype(jnp.bfloat16), kh.astype(jnp.bfloat16),
                       preferred_element_type=jnp.float32) + mask[None]
        p = jax.nn.softmax(s, axis=-1)
        o = jnp.einsum("hqk,hkd->hqd", p.astype(jnp.bfloat16), vh.astype(jnp.bfloat16),
                       preferred_element_type=jnp.float32)
        o = o.transpose(1, 0, 2).reshape(Sq, D)
        return matT(o, wo) + bo

    def one(xb, mb):
        x = xb
        sa = mha(x, x, params["sa_wqkv"], params["sa_bqkv"],
                 params["sa_wo"], params["sa_bo"], tgt_mask)
        x = ln(x + sa, params["n1w"], params["n1b"])
        ca = mha(x, mb, params["ca_wqkv"], params["ca_bqkv"],
                 params["ca_wo"], params["ca_bo"], memory_mask)
        x = ln(x + ca, params["n2w"], params["n2b"])
        h = jnp.maximum(matT(x, params["ff_w1"]) + params["ff_b1"], 0.0)
        ff = matT(h, params["ff_w2"]) + params["ff_b2"]
        return ln(x + ff, params["n3w"], params["n3b"])

    xb = jnp.transpose(x_sbd, (1, 0, 2))
    mb = jnp.transpose(mem_sbd, (1, 0, 2))
    out = jax.vmap(one)(xb, mb)
    return jnp.transpose(out, (1, 0, 2))


if __name__ == "__main__":
    # config: d_model=32, n_heads=4, d_ff=64, dropout=0.1 (identity at eval time)
    d_model, n_heads, d_ff = 32, 4, 64
    S_t, S_m, B = 8, 16, 2

    key = jax.random.PRNGKey(0)
    kx, kmem, kp = jax.random.split(key, 3)

    x = jax.random.normal(kx, (S_t, B, d_model), jnp.float32)        # (seq_tgt, batch, d_model)
    memory = jax.random.normal(kmem, (S_m, B, d_model), jnp.float32)  # (seq_mem, batch, d_model)
    params = init_params(kp, d_model, n_heads, d_ff)

    # causal additive float mask for self-attention (PyTorch float attn_mask semantics);
    # no memory mask -> zeros (same as passing None).
    tgt_mask = jnp.where(jnp.arange(S_t)[:, None] >= jnp.arange(S_t)[None, :],
                         0.0, -1e9).astype(jnp.float32)
    memory_mask = jnp.zeros((S_t, S_m), jnp.float32)

    fwd = jax.jit(transformer_decoder_layer, static_argnames=("n_heads",))
    out = fwd(x, memory, params, tgt_mask, memory_mask, n_heads=n_heads)
    out = jax.block_until_ready(out)

    # sanity check vs pure-JAX reference (tolerance covers the approx reciprocal and
    # f32 accumulation-order differences; both paths use bf16 MXU operands).
    ref = _ref_forward(x, memory, params, tgt_mask, memory_mask, n_heads)
    np.testing.assert_allclose(np.asarray(out), np.asarray(ref), atol=5e-3, rtol=5e-3)

    print("KERNEL_OK")
</pallas_src>

<mosaic_0001>
module attributes {stable_mosaic.version = 11 : i64} {
  func.func @_decoder_kernel(%arg0: i32, %arg1: memref<16x32xf32, #tpu.memory_space<vmem>>, %arg2: memref<32x32xf32, #tpu.memory_space<vmem>>, %arg3: memref<8x8xf32, #tpu.memory_space<vmem>>, %arg4: memref<8x16xf32, #tpu.memory_space<vmem>>, %arg5: memref<32x128xbf16, #tpu.memory_space<vmem>>, %arg6: memref<32x128xbf16, #tpu.memory_space<vmem>>, %arg7: memref<32x64xbf16, #tpu.memory_space<vmem>>, %arg8: memref<64x32xbf16, #tpu.memory_space<vmem>>, %arg9: memref<12x128xf32, #tpu.memory_space<vmem>>, %arg10: memref<16x32xf32, #tpu.memory_space<vmem>>) attributes {dimension_semantics = [#tpu.dimension_semantics<arbitrary>], iteration_bounds = array<i64: 1>, scalar_prefetch = 0 : i64, scratch_operands = 0 : i64, tpu.core_type = #tpu.core_type<tc>, window_params = [{pipeline_mode = #tpu.pipeline_mode<synchronous>, transform_indices = @transform_0, window_bounds = array<i64: 16, 32>}, {pipeline_mode = #tpu.pipeline_mode<synchronous>, transform_indices = @transform_1, window_bounds = array<i64: 32, 32>}, {pipeline_mode = #tpu.pipeline_mode<synchronous>, transform_indices = @transform_2, window_bounds = array<i64: 8, 8>}, {pipeline_mode = #tpu.pipeline_mode<synchronous>, transform_indices = @transform_3, window_bounds = array<i64: 8, 16>}, {pipeline_mode = #tpu.pipeline_mode<synchronous>, transform_indices = @transform_4, window_bounds = array<i64: 32, 128>}, {pipeline_mode = #tpu.pipeline_mode<synchronous>, transform_indices = @transform_5, window_bounds = array<i64: 32, 128>}, {pipeline_mode = #tpu.pipeline_mode<synchronous>, transform_indices = @transform_6, window_bounds = array<i64: 32, 64>}, {pipeline_mode = #tpu.pipeline_mode<synchronous>, transform_indices = @transform_7, window_bounds = array<i64: 64, 32>}, {pipeline_mode = #tpu.pipeline_mode<synchronous>, transform_indices = @transform_8, window_bounds = array<i64: 12, 128>}, {pipeline_mode = #tpu.pipeline_mode<synchronous>, transform_indices = @transform_9, window_bounds = array<i64: 16, 32>}]} {
    %c0 = arith.constant 0 : index
    %c0_0 = arith.constant 0 : index
    %0 = vector.load %arg1[%c0, %c0_0] : memref<16x32xf32, #tpu.memory_space<vmem>>, vector<16x32xf32>
    %c0_1 = arith.constant 0 : index
    %c0_2 = arith.constant 0 : index
    %1 = vector.load %arg2[%c0_1, %c0_2] : memref<32x32xf32, #tpu.memory_space<vmem>>, vector<32x32xf32>
    %c0_3 = arith.constant 0 : index
    %c0_4 = arith.constant 0 : index
    %2 = vector.load %arg9[%c0_3, %c0_4] : memref<12x128xf32, #tpu.memory_space<vmem>>, vector<12x128xf32>
    %c0_5 = arith.constant 0 : index
    %c0_6 = arith.constant 0 : index
    %3 = vector.load %arg5[%c0_5, %c0_6] : memref<32x128xbf16, #tpu.memory_space<vmem>>, vector<32x128xbf16>
    %c0_7 = arith.constant 0 : index
    %c0_8 = arith.constant 0 : index
    %4 = vector.load %arg6[%c0_7, %c0_8] : memref<32x128xbf16, #tpu.memory_space<vmem>>, vector<32x128xbf16>
    %5 = vector.extract_strided_slice %3 {offsets = [0, 0], sizes = [32, 96], strides = [1, 1]} : vector<32x128xbf16> to vector<32x96xbf16>
    %6 = arith.truncf %0 : vector<16x32xf32> to vector<16x32xbf16>
    %cst = arith.constant dense<0.000000e+00> : vector<16x96xf32>
    %7 = tpu.matmul %6, %5, %cst {dimension_numbers = #tpu.dot_dimension_numbers<[1], [0], [0], [1], [0, 0, 1, 1], [], []>} : vector<16x32xbf16>, vector<32x96xbf16>, vector<16x96xf32> -> vector<16x96xf32>
    %8 = vector.extract_strided_slice %2 {offsets = [0, 0], sizes = [1, 96], strides = [1, 1]} : vector<12x128xf32> to vector<1x96xf32>
    %9 = vector.broadcast %8 : vector<1x96xf32> to vector<16x96xf32>
    %10 = arith.addf %7, %9 : vector<16x96xf32>
    %11 = vector.extract_strided_slice %10 {offsets = [0, 0], sizes = [16, 32], strides = [1, 1]} : vector<16x96xf32> to vector<16x32xf32>
    %cst_9 = arith.constant 0.353553385 : f32
    %12 = vector.broadcast %cst_9 : f32 to vector<16x32xf32>
    %13 = arith.mulf %11, %12 : vector<16x32xf32>
    %14 = vector.shape_cast %13 : vector<16x32xf32> to vector<2x8x32xf32>
    %15 = vector.extract_strided_slice %10 {offsets = [0, 32], sizes = [16, 32], strides = [1, 1]} : vector<16x96xf32> to vector<16x32xf32>
    %16 = vector.shape_cast %15 : vector<16x32xf32> to vector<2x8x32xf32>
    %17 = vector.extract_strided_slice %10 {offsets = [0, 64], sizes = [16, 32], strides = [1, 1]} : vector<16x96xf32> to vector<16x32xf32>
    %18 = vector.shape_cast %17 : vector<16x32xf32> to vector<2x8x32xf32>
    %19 = vector.extract_strided_slice %3 {offsets = [0, 96], sizes = [32, 32], strides = [1, 1]} : vector<32x128xbf16> to vector<32x32xbf16>
    %20 = vector.extract_strided_slice %2 {offsets = [3, 0], sizes = [1, 32], strides = [1, 1]} : vector<12x128xf32> to vector<1x32xf32>
    %c0_10 = arith.constant 0 : index
    %c0_11 = arith.constant 0 : index
    %21 = vector.load %arg3[%c0_10, %c0_11] : memref<8x8xf32, #tpu.memory_space<vmem>>, vector<8x8xf32>
    %22 = arith.truncf %14 : vector<2x8x32xf32> to vector<2x8x32xbf16>
    %23 = arith.truncf %16 : vector<2x8x32xf32> to vector<2x8x32xbf16>
    %24 = arith.truncf %18 : vector<2x8x32xf32> to vector<2x8x32xbf16>
    %25 = vector.shape_cast %21 : vector<8x8xf32> to vector<1x8x8xf32>
    %26 = vector.extract_strided_slice %22 {offsets = [0, 0, 0], sizes = [2, 8, 8], strides = [1, 1, 1]} : vector<2x8x32xbf16> to vector<2x8x8xbf16>
    %27 = vector.extract_strided_slice %23 {offsets = [0, 0, 0], sizes = [2, 8, 8], strides = [1, 1, 1]} : vector<2x8x32xbf16> to vector<2x8x8xbf16>
    "tpu.trace_start"() <{level = 10 : i32, message = "bqd,bkd->bqk"}> : () -> ()
    %cst_12 = arith.constant dense<0.000000e+00> : vector<2x8x8xf32>
    %28 = tpu.matmul %26, %27, %cst_12 {dimension_numbers = #tpu.dot_dimension_numbers<[2], [2], [1], [1], [0, 0, 0, 1, 1, 1], [0], [0]>} : vector<2x8x8xbf16>, vector<2x8x8xbf16>, vector<2x8x8xf32> -> vector<2x8x8xf32>
    "tpu.trace_stop"() : () -> ()
    %29 = vector.broadcast %25 : vector<1x8x8xf32> to vector<2x8x8xf32>
    %30 = arith.addf %28, %29 : vector<2x8x8xf32>
    %cst_13 = arith.constant dense<0xFF800000> : vector<2x8xf32>
    %31 = vector.multi_reduction <maximumf>, %30, %cst_13 [2] : vector<2x8x8xf32> to vector<2x8xf32>
    %32 = vector.shape_cast %31 : vector<2x8xf32> to vector<2x8x1xf32>
    %33 = vector.broadcast %32 : vector<2x8x1xf32> to vector<2x8x8xf32>
    %34 = arith.subf %30, %33 : vector<2x8x8xf32>
    %35 = math.exp %34 : vector<2x8x8xf32>
    %cst_14 = arith.constant dense<0.000000e+00> : vector<2x8xf32>
    %36 = vector.multi_reduction <add>, %35, %cst_14 [2] : vector<2x8x8xf32> to vector<2x8xf32>
    %37 = vector.shape_cast %36 : vector<2x8xf32> to vector<2x8x1xf32>
    %38 = tpu.reciprocal %37 {approx = true} : vector<2x8x1xf32> -> vector<2x8x1xf32>
    %39 = vector.broadcast %38 : vector<2x8x1xf32> to vector<2x8x8xf32>
    %40 = arith.mulf %35, %39 : vector<2x8x8xf32>
    %41 = arith.truncf %40 : vector<2x8x8xf32> to vector<2x8x8xbf16>
    %42 = vector.extract_strided_slice %24 {offsets = [0, 0, 0], sizes = [2, 8, 8], strides = [1, 1, 1]} : vector<2x8x32xbf16> to vector<2x8x8xbf16>
    "tpu.trace_start"() <{level = 10 : i32, message = "bqk,bkd->bqd"}> : () -> ()
    %cst_15 = arith.constant dense<0.000000e+00> : vector<2x8x8xf32>
    %43 = tpu.matmul %41, %42, %cst_15 {dimension_numbers = #tpu.dot_dimension_numbers<[2], [1], [1], [2], [0, 0, 0, 1, 1, 2], [0], [0]>} : vector<2x8x8xbf16>, vector<2x8x8xbf16>, vector<2x8x8xf32> -> vector<2x8x8xf32>
    "tpu.trace_stop"() : () -> ()
    %44 = vector.extract_strided_slice %22 {offsets = [0, 0, 8], sizes = [2, 8, 8], strides = [1, 1, 1]} : vector<2x8x32xbf16> to vector<2x8x8xbf16>
    %45 = vector.extract_strided_slice %23 {offsets = [0, 0, 8], sizes = [2, 8, 8], strides = [1, 1, 1]} : vector<2x8x32xbf16> to vector<2x8x8xbf16>
    "tpu.trace_start"() <{level = 10 : i32, message = "bqd,bkd->bqk"}> : () -> ()
    %cst_16 = arith.constant dense<0.000000e+00> : vector<2x8x8xf32>
    %46 = tpu.matmul %44, %45, %cst_16 {dimension_numbers = #tpu.dot_dimension_numbers<[2], [2], [1], [1], [0, 0, 0, 1, 1, 1], [0], [0]>} : vector<2x8x8xbf16>, vector<2x8x8xbf16>, vector<2x8x8xf32> -> vector<2x8x8xf32>
    "tpu.trace_stop"() : () -> ()
    %47 = vector.broadcast %25 : vector<1x8x8xf32> to vector<2x8x8xf32>
    %48 = arith.addf %46, %47 : vector<2x8x8xf32>
    %cst_17 = arith.constant dense<0xFF800000> : vector<2x8xf32>
    %49 = vector.multi_reduction <maximumf>, %48, %cst_17 [2] : vector<2x8x8xf32> to vector<2x8xf32>
    %50 = vector.shape_cast %49 : vector<2x8xf32> to vector<2x8x1xf32>
    %51 = vector.broadcast %50 : vector<2x8x1xf32> to vector<2x8x8xf32>
    %52 = arith.subf %48, %51 : vector<2x8x8xf32>
    %53 = math.exp %52 : vector<2x8x8xf32>
    %cst_18 = arith.constant dense<0.000000e+00> : vector<2x8xf32>
    %54 = vector.multi_reduction <add>, %53, %cst_18 [2] : vector<2x8x8xf32> to vector<2x8xf32>
    %55 = vector.shape_cast %54 : vector<2x8xf32> to vector<2x8x1xf32>
    %56 = tpu.reciprocal %55 {approx = true} : vector<2x8x1xf32> -> vector<2x8x1xf32>
    %57 = vector.broadcast %56 : vector<2x8x1xf32> to vector<2x8x8xf32>
    %58 = arith.mulf %53, %57 : vector<2x8x8xf32>
    %59 = arith.truncf %58 : vector<2x8x8xf32> to vector<2x8x8xbf16>
    %60 = vector.extract_strided_slice %24 {offsets = [0, 0, 8], sizes = [2, 8, 8], strides = [1, 1, 1]} : vector<2x8x32xbf16> to vector<2x8x8xbf16>
    "tpu.trace_start"() <{level = 10 : i32, message = "bqk,bkd->bqd"}> : () -> ()
    %cst_19 = arith.constant dense<0.000000e+00> : vector<2x8x8xf32>
    %61 = tpu.matmul %59, %60, %cst_19 {dimension_numbers = #tpu.dot_dimension_numbers<[2], [1], [1], [2], [0, 0, 0, 1, 1, 2], [0], [0]>} : vector<2x8x8xbf16>, vector<2x8x8xbf16>, vector<2x8x8xf32> -> vector<2x8x8xf32>
    "tpu.trace_stop"() : () -> ()
    %62 = vector.extract_strided_slice %22 {offsets = [0, 0, 16], sizes = [2, 8, 8], strides = [1, 1, 1]} : vector<2x8x32xbf16> to vector<2x8x8xbf16>
    %63 = vector.extract_strided_slice %23 {offsets = [0, 0, 16], sizes = [2, 8, 8], strides = [1, 1, 1]} : vector<2x8x32xbf16> to vector<2x8x8xbf16>
    "tpu.trace_start"() <{level = 10 : i32, message = "bqd,bkd->bqk"}> : () -> ()
    %cst_20 = arith.constant dense<0.000000e+00> : vector<2x8x8xf32>
    %64 = tpu.matmul %62, %63, %cst_20 {dimension_numbers = #tpu.dot_dimension_numbers<[2], [2], [1], [1], [0, 0, 0, 1, 1, 1], [0], [0]>} : vector<2x8x8xbf16>, vector<2x8x8xbf16>, vector<2x8x8xf32> -> vector<2x8x8xf32>
    "tpu.trace_stop"() : () -> ()
    %65 = vector.broadcast %25 : vector<1x8x8xf32> to vector<2x8x8xf32>
    %66 = arith.addf %64, %65 : vector<2x8x8xf32>
    %cst_21 = arith.constant dense<0xFF800000> : vector<2x8xf32>
    %67 = vector.multi_reduction <maximumf>, %66, %cst_21 [2] : vector<2x8x8xf32> to vector<2x8xf32>
    %68 = vector.shape_cast %67 : vector<2x8xf32> to vector<2x8x1xf32>
    %69 = vector.broadcast %68 : vector<2x8x1xf32> to vector<2x8x8xf32>
    %70 = arith.subf %66, %69 : vector<2x8x8xf32>
    %71 = math.exp %70 : vector<2x8x8xf32>
    %cst_22 = arith.constant dense<0.000000e+00> : vector<2x8xf32>
    %72 = vector.multi_reduction <add>, %71, %cst_22 [2] : vector<2x8x8xf32> to vector<2x8xf32>
    %73 = vector.shape_cast %72 : vector<2x8xf32> to vector<2x8x1xf32>
    %74 = tpu.reciprocal %73 {approx = true} : vector<2x8x1xf32> -> vector<2x8x1xf32>
    %75 = vector.broadcast %74 : vector<2x8x1xf32> to vector<2x8x8xf32>
    %76 = arith.mulf %71, %75 : vector<2x8x8xf32>
    %77 = arith.truncf %76 : vector<2x8x8xf32> to vector<2x8x8xbf16>
    %78 = vector.extract_strided_slice %24 {offsets = [0, 0, 16], sizes = [2, 8, 8], strides = [1, 1, 1]} : vector<2x8x32xbf16> to vector<2x8x8xbf16>
    "tpu.trace_start"() <{level = 10 : i32, message = "bqk,bkd->bqd"}> : () -> ()
    %cst_23 = arith.constant dense<0.000000e+00> : vector<2x8x8xf32>
    %79 = tpu.matmul %77, %78, %cst_23 {dimension_numbers = #tpu.dot_dimension_numbers<[2], [1], [1], [2], [0, 0, 0, 1, 1, 2], [0], [0]>} : vector<2x8x8xbf16>, vector<2x8x8xbf16>, vector<2x8x8xf32> -> vector<2x8x8xf32>
    "tpu.trace_stop"() : () -> ()
    %80 = vector.extract_strided_slice %22 {offsets = [0, 0, 24], sizes = [2, 8, 8], strides = [1, 1, 1]} : vector<2x8x32xbf16> to vector<2x8x8xbf16>
    %81 = vector.extract_strided_slice %23 {offsets = [0, 0, 24], sizes = [2, 8, 8], strides = [1, 1, 1]} : vector<2x8x32xbf16> to vector<2x8x8xbf16>
    "tpu.trace_start"() <{level = 10 : i32, message = "bqd,bkd->bqk"}> : () -> ()
    %cst_24 = arith.constant dense<0.000000e+00> : vector<2x8x8xf32>
    %82 = tpu.matmul %80, %81, %cst_24 {dimension_numbers = #tpu.dot_dimension_numbers<[2], [2], [1], [1], [0, 0, 0, 1, 1, 1], [0], [0]>} : vector<2x8x8xbf16>, vector<2x8x8xbf16>, vector<2x8x8xf32> -> vector<2x8x8xf32>
    "tpu.trace_stop"() : () -> ()
    %83 = vector.broadcast %25 : vector<1x8x8xf32> to vector<2x8x8xf32>
    %84 = arith.addf %82, %83 : vector<2x8x8xf32>
    %cst_25 = arith.constant dense<0xFF800000> : vector<2x8xf32>
    %85 = vector.multi_reduction <maximumf>, %84, %cst_25 [2] : vector<2x8x8xf32> to vector<2x8xf32>
    %86 = vector.shape_cast %85 : vector<2x8xf32> to vector<2x8x1xf32>
    %87 = vector.broadcast %86 : vector<2x8x1xf32> to vector<2x8x8xf32>
    %88 = arith.subf %84, %87 : vector<2x8x8xf32>
    %89 = math.exp %88 : vector<2x8x8xf32>
    %cst_26 = arith.constant dense<0.000000e+00> : vector<2x8xf32>
    %90 = vector.multi_reduction <add>, %89, %cst_26 [2] : vector<2x8x8xf32> to vector<2x8xf32>
    %91 = vector.shape_cast %90 : vector<2x8xf32> to vector<2x8x1xf32>
    %92 = tpu.reciprocal %91 {approx = true} : vector<2x8x1xf32> -> vector<2x8x1xf32>
    %93 = vector.broadcast %92 : vector<2x8x1xf32> to vector<2x8x8xf32>
    %94 = arith.mulf %89, %93 : vector<2x8x8xf32>
    %95 = arith.truncf %94 : vector<2x8x8xf32> to vector<2x8x8xbf16>
    %96 = vector.extract_strided_slice %24 {offsets = [0, 0, 24], sizes = [2, 8, 8], strides = [1, 1, 1]} : vector<2x8x32xbf16> to vector<2x8x8xbf16>
    "tpu.trace_start"() <{level = 10 : i32, message = "bqk,bkd->bqd"}> : () -> ()
    %cst_27 = arith.constant dense<0.000000e+00> : vector<2x8x8xf32>
    %97 = tpu.matmul %95, %96, %cst_27 {dimension_numbers = #tpu.dot_dimension_numbers<[2], [1], [1], [2], [0, 0, 0, 1, 1, 2], [0], [0]>} : vector<2x8x8xbf16>, vector<2x8x8xbf16>, vector<2x8x8xf32> -> vector<2x8x8xf32>
    "tpu.trace_stop"() : () -> ()
    %98 = tpu.concatenate %43, %61, %79, %97 in 2 : vector<2x8x8xf32>, vector<2x8x8xf32>, vector<2x8x8xf32>, vector<2x8x8xf32> -> vector<2x8x32xf32>
    %99 = vector.shape_cast %98 : vector<2x8x32xf32> to vector<16x32xf32>
    %100 = arith.truncf %99 : vector<16x32xf32> to vector<16x32xbf16>
    %cst_28 = arith.constant dense<0.000000e+00> : vector<16x32xf32>
    %101 = tpu.matmul %100, %19, %cst_28 {dimension_numbers = #tpu.dot_dimension_numbers<[1], [0], [0], [1], [0, 0, 1, 1], [], []>} : vector<16x32xbf16>, vector<32x32xbf16>, vector<16x32xf32> -> vector<16x32xf32>
    %102 = vector.broadcast %20 : vector<1x32xf32> to vector<16x32xf32>
    %103 = arith.addf %101, %102 : vector<16x32xf32>
    %104 = arith.addf %0, %103 : vector<16x32xf32>
    %105 = vector.extract_strided_slice %2 {offsets = [6, 0], sizes = [1, 32], strides = [1, 1]} : vector<12x128xf32> to vector<1x32xf32>
    %106 = vector.extract_strided_slice %2 {offsets = [7, 0], sizes = [1, 32], strides = [1, 1]} : vector<12x128xf32> to vector<1x32xf32>
    %cst_29 = arith.constant dense<0.000000e+00> : vector<16xf32>
    %107 = vector.multi_reduction <add>, %104, %cst_29 [1] : vector<16x32xf32> to vector<16xf32>
    %108 = vector.shape_cast %107 : vector<16xf32> to vector<16x1xf32>
    %cst_30 = arith.constant 3.200000e+01 : f32
    %109 = vector.broadcast %cst_30 : f32 to vector<16x1xf32>
    %110 = arith.divf %108, %109 : vector<16x1xf32>
    %111 = vector.broadcast %110 : vector<16x1xf32> to vector<16x32xf32>
    %112 = arith.subf %104, %111 : vector<16x32xf32>
    %113 = arith.mulf %112, %112 : vector<16x32xf32>
    %cst_31 = arith.constant dense<0.000000e+00> : vector<16xf32>
    %114 = vector.multi_reduction <add>, %113, %cst_31 [1] : vector<16x32xf32> to vector<16xf32>
    %115 = vector.shape_cast %114 : vector<16xf32> to vector<16x1xf32>
    %cst_32 = arith.constant 3.200000e+01 : f32
    %116 = vector.broadcast %cst_32 : f32 to vector<16x1xf32>
    %117 = arith.divf %115, %116 : vector<16x1xf32>
    %cst_33 = arith.constant 9.99999974E-6 : f32
    %118 = vector.broadcast %cst_33 : f32 to vector<16x1xf32>
    %119 = arith.addf %117, %118 : vector<16x1xf32>
    %120 = math.rsqrt %119 : vector<16x1xf32>
    %121 = vector.broadcast %120 : vector<16x1xf32> to vector<16x32xf32>
    %122 = arith.mulf %112, %121 : vector<16x32xf32>
    %123 = vector.broadcast %105 : vector<1x32xf32> to vector<16x32xf32>
    %124 = arith.mulf %122, %123 : vector<16x32xf32>
    %125 = vector.broadcast %106 : vector<1x32xf32> to vector<16x32xf32>
    %126 = arith.addf %124, %125 : vector<16x32xf32>
    %127 = vector.extract_strided_slice %4 {offsets = [0, 0], sizes = [32, 32], strides = [1, 1]} : vector<32x128xbf16> to vector<32x32xbf16>
    %128 = arith.truncf %126 : vector<16x32xf32> to vector<16x32xbf16>
    %cst_34 = arith.constant dense<0.000000e+00> : vector<16x32xf32>
    %129 = tpu.matmul %128, %127, %cst_34 {dimension_numbers = #tpu.dot_dimension_numbers<[1], [0], [0], [1], [0, 0, 1, 1], [], []>} : vector<16x32xbf16>, vector<32x32xbf16>, vector<16x32xf32> -> vector<16x32xf32>
    %130 = vector.extract_strided_slice %2 {offsets = [1, 0], sizes = [1, 32], strides = [1, 1]} : vector<12x128xf32> to vector<1x32xf32>
    %131 = vector.broadcast %130 : vector<1x32xf32> to vector<16x32xf32>
    %132 = arith.addf %129, %131 : vector<16x32xf32>
    %cst_35 = arith.constant 0.353553385 : f32
    %133 = vector.broadcast %cst_35 : f32 to vector<16x32xf32>
    %134 = arith.mulf %132, %133 : vector<16x32xf32>
    %135 = vector.shape_cast %134 : vector<16x32xf32> to vector<2x8x32xf32>
    %136 = vector.extract_strided_slice %4 {offsets = [0, 32], sizes = [32, 64], strides = [1, 1]} : vector<32x128xbf16> to vector<32x64xbf16>
    %137 = arith.truncf %1 : vector<32x32xf32> to vector<32x32xbf16>
    %cst_36 = arith.constant dense<0.000000e+00> : vector<32x64xf32>
    %138 = tpu.matmul %137, %136, %cst_36 {dimension_numbers = #tpu.dot_dimension_numbers<[1], [0], [0], [1], [0, 0, 1, 1], [], []>} : vector<32x32xbf16>, vector<32x64xbf16>, vector<32x64xf32> -> vector<32x64xf32>
    %139 = vector.extract_strided_slice %2 {offsets = [1, 32], sizes = [1, 64], strides = [1, 1]} : vector<12x128xf32> to vector<1x64xf32>
    %140 = vector.broadcast %139 : vector<1x64xf32> to vector<32x64xf32>
    %141 = arith.addf %138, %140 : vector<32x64xf32>
    %142 = vector.extract_strided_slice %141 {offsets = [0, 0], sizes = [32, 32], strides = [1, 1]} : vector<32x64xf32> to vector<32x32xf32>
    %143 = vector.shape_cast %142 : vector<32x32xf32> to vector<2x16x32xf32>
    %144 = vector.extract_strided_slice %141 {offsets = [0, 32], sizes = [32, 32], strides = [1, 1]} : vector<32x64xf32> to vector<32x32xf32>
    %145 = vector.shape_cast %144 : vector<32x32xf32> to vector<2x16x32xf32>
    %146 = vector.extract_strided_slice %4 {offsets = [0, 96], sizes = [32, 32], strides = [1, 1]} : vector<32x128xbf16> to vector<32x32xbf16>
    %147 = vector.extract_strided_slice %2 {offsets = [4, 0], sizes = [1, 32], strides = [1, 1]} : vector<12x128xf32> to vector<1x32xf32>
    %c0_37 = arith.constant 0 : index
    %c0_38 = arith.constant 0 : index
    %148 = vector.load %arg4[%c0_37, %c0_38] : memref<8x16xf32, #tpu.memory_space<vmem>>, vector<8x16xf32>
    %149 = arith.truncf %135 : vector<2x8x32xf32> to vector<2x8x32xbf16>
    %150 = arith.truncf %143 : vector<2x16x32xf32> to vector<2x16x32xbf16>
    %151 = arith.truncf %145 : vector<2x16x32xf32> to vector<2x16x32xbf16>
    %152 = vector.shape_cast %148 : vector<8x16xf32> to vector<1x8x16xf32>
    %153 = vector.extract_strided_slice %149 {offsets = [0, 0, 0], sizes = [2, 8, 8], strides = [1, 1, 1]} : vector<2x8x32xbf16> to vector<2x8x8xbf16>
    %154 = vector.extract_strided_slice %150 {offsets = [0, 0, 0], sizes = [2, 16, 8], strides = [1, 1, 1]} : vector<2x16x32xbf16> to vector<2x16x8xbf16>
    "tpu.trace_start"() <{level = 10 : i32, message = "bqd,bkd->bqk"}> : () -> ()
    %cst_39 = arith.constant dense<0.000000e+00> : vector<2x8x16xf32>
    %155 = tpu.matmul %153, %154, %cst_39 {dimension_numbers = #tpu.dot_dimension_numbers<[2], [2], [1], [1], [0, 0, 0, 1, 1, 1], [0], [0]>} : vector<2x8x8xbf16>, vector<2x16x8xbf16>, vector<2x8x16xf32> -> vector<2x8x16xf32>
    "tpu.trace_stop"() : () -> ()
    %156 = vector.broadcast %152 : vector<1x8x16xf32> to vector<2x8x16xf32>
    %157 = arith.addf %155, %156 : vector<2x8x16xf32>
    %cst_40 = arith.constant dense<0xFF800000> : vector<2x8xf32>
    %158 = vector.multi_reduction <maximumf>, %157, %cst_40 [2] : vector<2x8x16xf32> to vector<2x8xf32>
    %159 = vector.shape_cast %158 : vector<2x8xf32> to vector<2x8x1xf32>
    %160 = vector.broadcast %159 : vector<2x8x1xf32> to vector<2x8x16xf32>
    %161 = arith.subf %157, %160 : vector<2x8x16xf32>
    %162 = math.exp %161 : vector<2x8x16xf32>
    %cst_41 = arith.constant dense<0.000000e+00> : vector<2x8xf32>
    %163 = vector.multi_reduction <add>, %162, %cst_41 [2] : vector<2x8x16xf32> to vector<2x8xf32>
    %164 = vector.shape_cast %163 : vector<2x8xf32> to vector<2x8x1xf32>
    %165 = tpu.reciprocal %164 {approx = true} : vector<2x8x1xf32> -> vector<2x8x1xf32>
    %166 = vector.broadcast %165 : vector<2x8x1xf32> to vector<2x8x16xf32>
    %167 = arith.mulf %162, %166 : vector<2x8x16xf32>
    %168 = arith.truncf %167 : vector<2x8x16xf32> to vector<2x8x16xbf16>
    %169 = vector.extract_strided_slice %151 {offsets = [0, 0, 0], sizes = [2, 16, 8], strides = [1, 1, 1]} : vector<2x16x32xbf16> to vector<2x16x8xbf16>
    "tpu.trace_start"() <{level = 10 : i32, message = "bqk,bkd->bqd"}> : () -> ()
    %cst_42 = arith.constant dense<0.000000e+00> : vector<2x8x8xf32>
    %170 = tpu.matmul %168, %169, %cst_42 {dimension_numbers = #tpu.dot_dimension_numbers<[2], [1], [1], [2], [0, 0, 0, 1, 1, 2], [0], [0]>} : vector<2x8x16xbf16>, vector<2x16x8xbf16>, vector<2x8x8xf32> -> vector<2x8x8xf32>
    "tpu.trace_stop"() : () -> ()
    %171 = vector.extract_strided_slice %149 {offsets = [0, 0, 8], sizes = [2, 8, 8], strides = [1, 1, 1]} : vector<2x8x32xbf16> to vector<2x8x8xbf16>
    %172 = vector.extract_strided_slice %150 {offsets = [0, 0, 8], sizes = [2, 16, 8], strides = [1, 1, 1]} : vector<2x16x32xbf16> to vector<2x16x8xbf16>
    "tpu.trace_start"() <{level = 10 : i32, message = "bqd,bkd->bqk"}> : () -> ()
    %cst_43 = arith.constant dense<0.000000e+00> : vector<2x8x16xf32>
    %173 = tpu.matmul %171, %172, %cst_43 {dimension_numbers = #tpu.dot_dimension_numbers<[2], [2], [1], [1], [0, 0, 0, 1, 1, 1], [0], [0]>} : vector<2x8x8xbf16>, vector<2x16x8xbf16>, vector<2x8x16xf32> -> vector<2x8x16xf32>
    "tpu.trace_stop"() : () -> ()
    %174 = vector.broadcast %152 : vector<1x8x16xf32> to vector<2x8x16xf32>
    %175 = arith.addf %173, %174 : vector<2x8x16xf32>
    %cst_44 = arith.constant dense<0xFF800000> : vector<2x8xf32>
    %176 = vector.multi_reduction <maximumf>, %175, %cst_44 [2] : vector<2x8x16xf32> to vector<2x8xf32>
    %177 = vector.shape_cast %176 : vector<2x8xf32> to vector<2x8x1xf32>
    %178 = vector.broadcast %177 : vector<2x8x1xf32> to vector<2x8x16xf32>
    %179 = arith.subf %175, %178 : vector<2x8x16xf32>
    %180 = math.exp %179 : vector<2x8x16xf32>
    %cst_45 = arith.constant dense<0.000000e+00> : vector<2x8xf32>
    %181 = vector.multi_reduction <add>, %180, %cst_45 [2] : vector<2x8x16xf32> to vector<2x8xf32>
    %182 = vector.shape_cast %181 : vector<2x8xf32> to vector<2x8x1xf32>
    %183 = tpu.reciprocal %182 {approx = true} : vector<2x8x1xf32> -> vector<2x8x1xf32>
    %184 = vector.broadcast %183 : vector<2x8x1xf32> to vector<2x8x16xf32>
    %185 = arith.mulf %180, %184 : vector<2x8x16xf32>
    %186 = arith.truncf %185 : vector<2x8x16xf32> to vector<2x8x16xbf16>
    %187 = vector.extract_strided_slice %151 {offsets = [0, 0, 8], sizes = [2, 16, 8], strides = [1, 1, 1]} : vector<2x16x32xbf16> to vector<2x16x8xbf16>
    "tpu.trace_start"() <{level = 10 : i32, message = "bqk,bkd->bqd"}> : () -> ()
    %cst_46 = arith.constant dense<0.000000e+00> : vector<2x8x8xf32>
    %188 = tpu.matmul %186, %187, %cst_46 {dimension_numbers = #tpu.dot_dimension_numbers<[2], [1], [1], [2], [0, 0, 0, 1, 1, 2], [0], [0]>} : vector<2x8x16xbf16>, vector<2x16x8xbf16>, vector<2x8x8xf32> -> vector<2x8x8xf32>
    "tpu.trace_stop"() : () -> ()
    %189 = vector.extract_strided_slice %149 {offsets = [0, 0, 16], sizes = [2, 8, 8], strides = [1, 1, 1]} : vector<2x8x32xbf16> to vector<2x8x8xbf16>
    %190 = vector.extract_strided_slice %150 {offsets = [0, 0, 16], sizes = [2, 16, 8], strides = [1, 1, 1]} : vector<2x16x32xbf16> to vector<2x16x8xbf16>
    "tpu.trace_start"() <{level = 10 : i32, message = "bqd,bkd->bqk"}> : () -> ()
    %cst_47 = arith.constant dense<0.000000e+00> : vector<2x8x16xf32>
    %191 = tpu.matmul %189, %190, %cst_47 {dimension_numbers = #tpu.dot_dimension_numbers<[2], [2], [1], [1], [0, 0, 0, 1, 1, 1], [0], [0]>} : vector<2x8x8xbf16>, vector<2x16x8xbf16>, vector<2x8x16xf32> -> vector<2x8x16xf32>
    "tpu.trace_stop"() : () -> ()
    %192 = vector.broadcast %152 : vector<1x8x16xf32> to vector<2x8x16xf32>
    %193 = arith.addf %191, %192 : vector<2x8x16xf32>
    %cst_48 = arith.constant dense<0xFF800000> : vector<2x8xf32>
    %194 = vector.multi_reduction <maximumf>, %193, %cst_48 [2] : vector<2x8x16xf32> to vector<2x8xf32>
    %195 = vector.shape_cast %194 : vector<2x8xf32> to vector<2x8x1xf32>
    %196 = vector.broadcast %195 : vector<2x8x1xf32> to vector<2x8x16xf32>
    %197 = arith.subf %193, %196 : vector<2x8x16xf32>
    %198 = math.exp %197 : vector<2x8x16xf32>
    %cst_49 = arith.constant dense<0.000000e+00> : vector<2x8xf32>
    %199 = vector.multi_reduction <add>, %198, %cst_49 [2] : vector<2x8x16xf32> to vector<2x8xf32>
    %200 = vector.shape_cast %199 : vector<2x8xf32> to vector<2x8x1xf32>
    %201 = tpu.reciprocal %200 {approx = true} : vector<2x8x1xf32> -> vector<2x8x1xf32>
    %202 = vector.broadcast %201 : vector<2x8x1xf32> to vector<2x8x16xf32>
    %203 = arith.mulf %198, %202 : vector<2x8x16xf32>
    %204 = arith.truncf %203 : vector<2x8x16xf32> to vector<2x8x16xbf16>
    %205 = vector.extract_strided_slice %151 {offsets = [0, 0, 16], sizes = [2, 16, 8], strides = [1, 1, 1]} : vector<2x16x32xbf16> to vector<2x16x8xbf16>
    "tpu.trace_start"() <{level = 10 : i32, message = "bqk,bkd->bqd"}> : () -> ()
    %cst_50 = arith.constant dense<0.000000e+00> : vector<2x8x8xf32>
    %206 = tpu.matmul %204, %205, %cst_50 {dimension_numbers = #tpu.dot_dimension_numbers<[2], [1], [1], [2], [0, 0, 0, 1, 1, 2], [0], [0]>} : vector<2x8x16xbf16>, vector<2x16x8xbf16>, vector<2x8x8xf32> -> vector<2x8x8xf32>
    "tpu.trace_stop"() : () -> ()
    %207 = vector.extract_strided_slice %149 {offsets = [0, 0, 24], sizes = [2, 8, 8], strides = [1, 1, 1]} : vector<2x8x32xbf16> to vector<2x8x8xbf16>
    %208 = vector.extract_strided_slice %150 {offsets = [0, 0, 24], sizes = [2, 16, 8], strides = [1, 1, 1]} : vector<2x16x32xbf16> to vector<2x16x8xbf16>
    "tpu.trace_start"() <{level = 10 : i32, message = "bqd,bkd->bqk"}> : () -> ()
    %cst_51 = arith.constant dense<0.000000e+00> : vector<2x8x16xf32>
    %209 = tpu.matmul %207, %208, %cst_51 {dimension_numbers = #tpu.dot_dimension_numbers<[2], [2], [1], [1], [0, 0, 0, 1, 1, 1], [0], [0]>} : vector<2x8x8xbf16>, vector<2x16x8xbf16>, vector<2x8x16xf32> -> vector<2x8x16xf32>
    "tpu.trace_stop"() : () -> ()
    %210 = vector.broadcast %152 : vector<1x8x16xf32> to vector<2x8x16xf32>
    %211 = arith.addf %209, %210 : vector<2x8x16xf32>
    %cst_52 = arith.constant dense<0xFF800000> : vector<2x8xf32>
    %212 = vector.multi_reduction <maximumf>, %211, %cst_52 [2] : vector<2x8x16xf32> to vector<2x8xf32>
    %213 = vector.shape_cast %212 : vector<2x8xf32> to vector<2x8x1xf32>
    %214 = vector.broadcast %213 : vector<2x8x1xf32> to vector<2x8x16xf32>
    %215 = arith.subf %211, %214 : vector<2x8x16xf32>
    %216 = math.exp %215 : vector<2x8x16xf32>
    %cst_53 = arith.constant dense<0.000000e+00> : vector<2x8xf32>
    %217 = vector.multi_reduction <add>, %216, %cst_53 [2] : vector<2x8x16xf32> to vector<2x8xf32>
    %218 = vector.shape_cast %217 : vector<2x8xf32> to vector<2x8x1xf32>
    %219 = tpu.reciprocal %218 {approx = true} : vector<2x8x1xf32> -> vector<2x8x1xf32>
    %220 = vector.broadcast %219 : vector<2x8x1xf32> to vector<2x8x16xf32>
    %221 = arith.mulf %216, %220 : vector<2x8x16xf32>
    %222 = arith.truncf %221 : vector<2x8x16xf32> to vector<2x8x16xbf16>
    %223 = vector.extract_strided_slice %151 {offsets = [0, 0, 24], sizes = [2, 16, 8], strides = [1, 1, 1]} : vector<2x16x32xbf16> to vector<2x16x8xbf16>
    "tpu.trace_start"() <{level = 10 : i32, message = "bqk,bkd->bqd"}> : () -> ()
    %cst_54 = arith.constant dense<0.000000e+00> : vector<2x8x8xf32>
    %224 = tpu.matmul %222, %223, %cst_54 {dimension_numbers = #tpu.dot_dimension_numbers<[2], [1], [1], [2], [0, 0, 0, 1, 1, 2], [0], [0]>} : vector<2x8x16xbf16>, vector<2x16x8xbf16>, vector<2x8x8xf32> -> vector<2x8x8xf32>
    "tpu.trace_stop"() : () -> ()
    %225 = tpu.concatenate %170, %188, %206, %224 in 2 : vector<2x8x8xf32>, vector<2x8x8xf32>, vector<2x8x8xf32>, vector<2x8x8xf32> -> vector<2x8x32xf32>
    %226 = vector.shape_cast %225 : vector<2x8x32xf32> to vector<16x32xf32>
    %227 = arith.truncf %226 : vector<16x32xf32> to vector<16x32xbf16>
    %cst_55 = arith.constant dense<0.000000e+00> : vector<16x32xf32>
    %228 = tpu.matmul %227, %146, %cst_55 {dimension_numbers = #tpu.dot_dimension_numbers<[1], [0], [0], [1], [0, 0, 1, 1], [], []>} : vector<16x32xbf16>, vector<32x32xbf16>, vector<16x32xf32> -> vector<16x32xf32>
    %229 = vector.broadcast %147 : vector<1x32xf32> to vector<16x32xf32>
    %230 = arith.addf %228, %229 : vector<16x32xf32>
    %231 = arith.addf %126, %230 : vector<16x32xf32>
    %232 = vector.extract_strided_slice %2 {offsets = [8, 0], sizes = [1, 32], strides = [1, 1]} : vector<12x128xf32> to vector<1x32xf32>
    %233 = vector.extract_strided_slice %2 {offsets = [9, 0], sizes = [1, 32], strides = [1, 1]} : vector<12x128xf32> to vector<1x32xf32>
    %cst_56 = arith.constant dense<0.000000e+00> : vector<16xf32>
    %234 = vector.multi_reduction <add>, %231, %cst_56 [1] : vector<16x32xf32> to vector<16xf32>
    %235 = vector.shape_cast %234 : vector<16xf32> to vector<16x1xf32>
    %cst_57 = arith.constant 3.200000e+01 : f32
    %236 = vector.broadcast %cst_57 : f32 to vector<16x1xf32>
    %237 = arith.divf %235, %236 : vector<16x1xf32>
    %238 = vector.broadcast %237 : vector<16x1xf32> to vector<16x32xf32>
    %239 = arith.subf %231, %238 : vector<16x32xf32>
    %240 = arith.mulf %239, %239 : vector<16x32xf32>
    %cst_58 = arith.constant dense<0.000000e+00> : vector<16xf32>
    %241 = vector.multi_reduction <add>, %240, %cst_58 [1] : vector<16x32xf32> to vector<16xf32>
    %242 = vector.shape_cast %241 : vector<16xf32> to vector<16x1xf32>
    %cst_59 = arith.constant 3.200000e+01 : f32
    %243 = vector.broadcast %cst_59 : f32 to vector<16x1xf32>
    %244 = arith.divf %242, %243 : vector<16x1xf32>
    %cst_60 = arith.constant 9.99999974E-6 : f32
    %245 = vector.broadcast %cst_60 : f32 to vector<16x1xf32>
    %246 = arith.addf %244, %245 : vector<16x1xf32>
    %247 = math.rsqrt %246 : vector<16x1xf32>
    %248 = vector.broadcast %247 : vector<16x1xf32> to vector<16x32xf32>
    %249 = arith.mulf %239, %248 : vector<16x32xf32>
    %250 = vector.broadcast %232 : vector<1x32xf32> to vector<16x32xf32>
    %251 = arith.mulf %249, %250 : vector<16x32xf32>
    %252 = vector.broadcast %233 : vector<1x32xf32> to vector<16x32xf32>
    %253 = arith.addf %251, %252 : vector<16x32xf32>
    %c0_61 = arith.constant 0 : index
    %c0_62 = arith.constant 0 : index
    %254 = vector.load %arg7[%c0_61, %c0_62] : memref<32x64xbf16, #tpu.memory_space<vmem>>, vector<32x64xbf16>
    %255 = arith.truncf %253 : vector<16x32xf32> to vector<16x32xbf16>
    %cst_63 = arith.constant dense<0.000000e+00> : vector<16x64xf32>
    %256 = tpu.matmul %255, %254, %cst_63 {dimension_numbers = #tpu.dot_dimension_numbers<[1], [0], [0], [1], [0, 0, 1, 1], [], []>} : vector<16x32xbf16>, vector<32x64xbf16>, vector<16x64xf32> -> vector<16x64xf32>
    %257 = vector.extract_strided_slice %2 {offsets = [2, 0], sizes = [1, 64], strides = [1, 1]} : vector<12x128xf32> to vector<1x64xf32>
    %258 = vector.broadcast %257 : vector<1x64xf32> to vector<16x64xf32>
    %259 = arith.addf %256, %258 : vector<16x64xf32>
    %cst_64 = arith.constant 0.000000e+00 : f32
    %260 = vector.broadcast %cst_64 : f32 to vector<16x64xf32>
    %261 = arith.maximumf %259, %260 : vector<16x64xf32>
    %c0_65 = arith.constant 0 : index
    %c0_66 = arith.constant 0 : index
    %262 = vector.load %arg8[%c0_65, %c0_66] : memref<64x32xbf16, #tpu.memory_space<vmem>>, vector<64x32xbf16>
    %263 = arith.truncf %261 : vector<16x64xf32> to vector<16x64xbf16>
    %cst_67 = arith.constant dense<0.000000e+00> : vector<16x32xf32>
    %264 = tpu.matmul %263, %262, %cst_67 {dimension_numbers = #tpu.dot_dimension_numbers<[1], [0], [0], [1], [0, 0, 1, 1], [], []>} : vector<16x64xbf16>, vector<64x32xbf16>, vector<16x32xf32> -> vector<16x32xf32>
    %265 = vector.extract_strided_slice %2 {offsets = [5, 0], sizes = [1, 32], strides = [1, 1]} : vector<12x128xf32> to vector<1x32xf32>
    %266 = vector.broadcast %265 : vector<1x32xf32> to vector<16x32xf32>
    %267 = arith.addf %264, %266 : vector<16x32xf32>
    %268 = arith.addf %253, %267 : vector<16x32xf32>
    %269 = vector.extract_strided_slice %2 {offsets = [10, 0], sizes = [1, 32], strides = [1, 1]} : vector<12x128xf32> to vector<1x32xf32>
    %270 = vector.extract_strided_slice %2 {offsets = [11, 0], sizes = [1, 32], strides = [1, 1]} : vector<12x128xf32> to vector<1x32xf32>
    %cst_68 = arith.constant dense<0.000000e+00> : vector<16xf32>
    %271 = vector.multi_reduction <add>, %268, %cst_68 [1] : vector<16x32xf32> to vector<16xf32>
    %272 = vector.shape_cast %271 : vector<16xf32> to vector<16x1xf32>
    %cst_69 = arith.constant 3.200000e+01 : f32
    %273 = vector.broadcast %cst_69 : f32 to vector<16x1xf32>
    %274 = arith.divf %272, %273 : vector<16x1xf32>
    %275 = vector.broadcast %274 : vector<16x1xf32> to vector<16x32xf32>
    %276 = arith.subf %268, %275 : vector<16x32xf32>
    %277 = arith.mulf %276, %276 : vector<16x32xf32>
    %cst_70 = arith.constant dense<0.000000e+00> : vector<16xf32>
    %278 = vector.multi_reduction <add>, %277, %cst_70 [1] : vector<16x32xf32> to vector<16xf32>
    %279 = vector.shape_cast %278 : vector<16xf32> to vector<16x1xf32>
    %cst_71 = arith.constant 3.200000e+01 : f32
    %280 = vector.broadcast %cst_71 : f32 to vector<16x1xf32>
    %281 = arith.divf %279, %280 : vector<16x1xf32>
    %cst_72 = arith.constant 9.99999974E-6 : f32
    %282 = vector.broadcast %cst_72 : f32 to vector<16x1xf32>
    %283 = arith.addf %281, %282 : vector<16x1xf32>
    %284 = math.rsqrt %283 : vector<16x1xf32>
    %285 = vector.broadcast %284 : vector<16x1xf32> to vector<16x32xf32>
    %286 = arith.mulf %276, %285 : vector<16x32xf32>
    %287 = vector.broadcast %269 : vector<1x32xf32> to vector<16x32xf32>
    %288 = arith.mulf %286, %287 : vector<16x32xf32>
    %289 = vector.broadcast %270 : vector<1x32xf32> to vector<16x32xf32>
    %290 = arith.addf %288, %289 : vector<16x32xf32>
    %c0_73 = arith.constant 0 : index
    %c0_74 = arith.constant 0 : index
    %291 = vector.load %arg10[%c0_73, %c0_74] : memref<16x32xf32, #tpu.memory_space<vmem>>, vector<16x32xf32>
    tpu.vector_store %arg10[%c0_73, %c0_74], %290 {strides = array<i32>} : memref<16x32xf32, #tpu.memory_space<vmem>>, vector<16x32xf32>,
    return
  }
  func.func @transform_0(%arg0: i32) -> (i32, i32) {
    %c0_i32 = arith.constant 0 : i32
    %c0_i32_0 = arith.constant 0 : i32
    %c0_i32_1 = arith.constant 0 : i32
    return %c0_i32, %c0_i32_0 : i32, i32
  }
  func.func @transform_1(%arg0: i32) -> (i32, i32) {
    %c0_i32 = arith.constant 0 : i32
    %c0_i32_0 = arith.constant 0 : i32
    %c0_i32_1 = arith.constant 0 : i32
    return %c0_i32, %c0_i32_0 : i32, i32
  }
  func.func @transform_2(%arg0: i32) -> (i32, i32) {
    %c0_i32 = arith.constant 0 : i32
    %c0_i32_0 = arith.constant 0 : i32
    %c0_i32_1 = arith.constant 0 : i32
    return %c0_i32, %c0_i32_0 : i32, i32
  }
  func.func @transform_3(%arg0: i32) -> (i32, i32) {
    %c0_i32 = arith.constant 0 : i32
    %c0_i32_0 = arith.constant 0 : i32
    %c0_i32_1 = arith.constant 0 : i32
    return %c0_i32, %c0_i32_0 : i32, i32
  }
  func.func @transform_4(%arg0: i32) -> (i32, i32) {
    %c0_i32 = arith.constant 0 : i32
    %c0_i32_0 = arith.constant 0 : i32
    %c0_i32_1 = arith.constant 0 : i32
    return %c0_i32, %c0_i32_0 : i32, i32
  }
  func.func @transform_5(%arg0: i32) -> (i32, i32) {
    %c0_i32 = arith.constant 0 : i32
    %c0_i32_0 = arith.constant 0 : i32
    %c0_i32_1 = arith.constant 0 : i32
    return %c0_i32, %c0_i32_0 : i32, i32
  }
  func.func @transform_6(%arg0: i32) -> (i32, i32) {
    %c0_i32 = arith.constant 0 : i32
    %c0_i32_0 = arith.constant 0 : i32
    %c0_i32_1 = arith.constant 0 : i32
    return %c0_i32, %c0_i32_0 : i32, i32
  }
  func.func @transform_7(%arg0: i32) -> (i32, i32) {
    %c0_i32 = arith.constant 0 : i32
    %c0_i32_0 = arith.constant 0 : i32
    %c0_i32_1 = arith.constant 0 : i32
    return %c0_i32, %c0_i32_0 : i32, i32
  }
  func.func @transform_8(%arg0: i32) -> (i32, i32) {
    %c0_i32 = arith.constant 0 : i32
    %c0_i32_0 = arith.constant 0 : i32
    %c0_i32_1 = arith.constant 0 : i32
    return %c0_i32, %c0_i32_0 : i32, i32
  }
  func.func @transform_9(%arg0: i32) -> (i32, i32) {
    %c0_i32 = arith.constant 0 : i32
    %c0_i32_0 = arith.constant 0 : i32
    %c0_i32_1 = arith.constant 0 : i32
    return %c0_i32, %c0_i32_0 : i32, i32
  }
}

</mosaic_0001>

<llo_original>
// kernel: transformer_decoder_layer.1
$region0: #{transformer_decoder_layer.1}
  #allocation0 [shape = 'u32[]', space=smem, size = 0x4, offset = 0x4, fixed_abs, tag = 'smem constant byte address 0x4 - core index']
  #allocation1 [shape = 'u32[144,128]{1,0:T(1,128)}', space=vmem, size = 0x12000, scoped, tag = 'internal scratch']
  %s0 = inlined_call_operand.vmem [shape: f32[16,32], index: 0, kind: input, shape index: {}]
  %s1 = inlined_call_operand.vmem [shape: f32[32,32], index: 1, kind: input, shape index: {}]
  %s2 = inlined_call_operand.vmem [shape: f32[8,8], index: 2, kind: input, shape index: {}]
  %s3 = inlined_call_operand.vmem [shape: f32[8,16], index: 3, kind: input, shape index: {}]
  %s4 = inlined_call_operand.vmem [shape: bf16[32,128], index: 4, kind: input, shape index: {}]
  %s5 = inlined_call_operand.vmem [shape: bf16[32,128], index: 5, kind: input, shape index: {}]
  %s6 = inlined_call_operand.vmem [shape: bf16[32,64], index: 6, kind: input, shape index: {}]
  %s7 = inlined_call_operand.vmem [shape: bf16[64,32], index: 7, kind: input, shape index: {}]
  %s8 = inlined_call_operand.vmem [shape: f32[12,128], index: 8, kind: input, shape index: {}]
  %s9 = inlined_call_operand.vmem [shape: f32[16,32], index: 9, kind: output, shape index: {}]
  %s10 = sld [smem:[#allocation0]]
  $region46: #{transformer_decoder_layer.1} parent=0
    _
  %s12 = ssub.s32 1, %s10
  %s13 = scalar_select 0, %s12, %s10
  // Predicated region
  $region2: #{transformer_decoder_layer.1} parent=0 // pred_check
    _
  $region3: #{transformer_decoder_layer.1} parent=0 // pred_check_branch
    %15 = sbr.rel (0) target = $region5
  $region4: #{transformer_decoder_layer.1} parent=0 // pred_region
    _
  $region5: #{transformer_decoder_layer.1} parent=0 // pred_fallthru
    _
  // Predicated region
  $region6: #{transformer_decoder_layer.1} parent=0 // pred_check
    _
  $region7: #{transformer_decoder_layer.1} parent=0 // pred_check_branch
    %17 = sbr.rel (0) target = $region9
  $region8: #{transformer_decoder_layer.1} parent=0 // pred_region
    _
  $region9: #{transformer_decoder_layer.1} parent=0 // pred_fallthru
    _
  // Predicated region
  $region10: #{transformer_decoder_layer.1} parent=0 // pred_check
    _
  $region11: #{transformer_decoder_layer.1} parent=0 // pred_check_branch
    %19 = sbr.rel (0) target = $region13
  $region12: #{transformer_decoder_layer.1} parent=0 // pred_region
    _
  $region13: #{transformer_decoder_layer.1} parent=0 // pred_fallthru
    _
  // Predicated region
  $region14: #{transformer_decoder_layer.1} parent=0 // pred_check
    _
  $region15: #{transformer_decoder_layer.1} parent=0 // pred_check_branch
    %21 = sbr.rel (0) target = $region17
  $region16: #{transformer_decoder_layer.1} parent=0 // pred_region
    _
  $region17: #{transformer_decoder_layer.1} parent=0 // pred_fallthru
    _
  // Predicated region
  $region18: #{transformer_decoder_layer.1} parent=0 // pred_check
    _
  $region19: #{transformer_decoder_layer.1} parent=0 // pred_check_branch
    %23 = sbr.rel (0) target = $region21
  $region20: #{transformer_decoder_layer.1} parent=0 // pred_region
    _
  $region21: #{transformer_decoder_layer.1} parent=0 // pred_fallthru
    _
  // Predicated region
  $region22: #{transformer_decoder_layer.1} parent=0 // pred_check
    _
  $region23: #{transformer_decoder_layer.1} parent=0 // pred_check_branch
    %25 = sbr.rel (0) target = $region25
  $region24: #{transformer_decoder_layer.1} parent=0 // pred_region
    _
  $region25: #{transformer_decoder_layer.1} parent=0 // pred_fallthru
    _
  // Predicated region
  $region26: #{transformer_decoder_layer.1} parent=0 // pred_check
    _
  $region27: #{transformer_decoder_layer.1} parent=0 // pred_check_branch
    %27 = sbr.rel (0) target = $region29
  $region28: #{transformer_decoder_layer.1} parent=0 // pred_region
    _
  $region29: #{transformer_decoder_layer.1} parent=0 // pred_fallthru
    _
  // Predicated region
  $region30: #{transformer_decoder_layer.1} parent=0 // pred_check
    _
  $region31: #{transformer_decoder_layer.1} parent=0 // pred_check_branch
    %29 = sbr.rel (0) target = $region33
  $region32: #{transformer_decoder_layer.1} parent=0 // pred_region
    _
  $region33: #{transformer_decoder_layer.1} parent=0 // pred_fallthru
    _
  // Predicated region
  $region34: #{transformer_decoder_layer.1} parent=0 // pred_check
    _
  $region35: #{transformer_decoder_layer.1} parent=0 // pred_check_branch
    %31 = sbr.rel (0) target = $region37
  $region36: #{transformer_decoder_layer.1} parent=0 // pred_region
    _
  $region37: #{transformer_decoder_layer.1} parent=0 // pred_fallthru
    _
  %v33 = vld [vmem:[%s0] sm:$0xff]
  %v34 = vld [vmem:[%s0 + $0x8] sm:$0xff]
  %v35 = vld [vmem:[%s1] sm:$0xff]
  %v36 = vld [vmem:[%s1 + $0x8] sm:$0xff]
  %v37 = vld [vmem:[%s1 + $0x10] sm:$0xff]
  %v38 = vld [vmem:[%s1 + $0x18] sm:$0xff]
  %v39 = vld [vmem:[%s8] sm:$0xff]
  %v40 = vld [vmem:[%s8 + $0x8] sm:$0xf]
  %v41 = vld [vmem:[%s4] sm:$0xf]
  %v42 = vld [vmem:[%s4 + $0x4] sm:$0xf]
  %v43 = vld [vmem:[%s4 + $0x8] sm:$0xf]
  %v44 = vld [vmem:[%s4 + $0xc] sm:$0xf]
  %v45 = vld [vmem:[%s5] sm:$0xf]
  %v46 = vld [vmem:[%s5 + $0x4] sm:$0xf]
  %v47 = vld [vmem:[%s5 + $0x8] sm:$0xf]
  %v48 = vld [vmem:[%s5 + $0xc] sm:$0xf]
  %v49 = vpack.c.bf16 %v34, %v33
  %v50 = vlaneseq
  %v51 = vshrl.u32 %v50, 7
  %v52 = vsub.s32 0, %v51
  %v53 = vrot.slane %v39, %v52
  %v58 = vunpack.c.l.b16 %v41
  %v59 = vunpack.c.l.b16 %v42
  %v60 = vunpack.c.l.b16 %v43
  %v61 = vunpack.c.l.b16 %v44
  %v62 = vpack.c.b16 %v59, %v58
  %v63 = vpack.c.b16 %v61, %v60
  %vm66 = vcmask 261120
  %v68 = vsel %vm66, %v49, 0
  %70 = vmatprep.subr.bf16.mxu0 0
  %71 = vmatpush1.bf16.msra.mxu0 %v62
  %72 = vmatprep.subr.bf16.mxu0 0
  %73 = vmatpush1.bf16.msra.mxu0 %v63
  %74 = vmatprep.subr.bf16.mxu0 0
  %75 = vmatpush1.bf16.msra.mxu0 0
  %76 = vmatprep.subr.bf16.mxu0 0
  %77 = vmatpush1.bf16.msra.mxu0 0
  %78 = vmatprep.subr.bf16.mxu0 0
  %79 = vmatpush1.bf16.msra.mxu0 0
  %80 = vmatprep.subr.bf16.mxu0 0
  %81 = vmatpush1.bf16.msra.mxu0 0
  %82 = vmatprep.subr.bf16.mxu0 0
  %83 = vmatpush1.bf16.msra.mxu0 0
  %84 = vmatprep.subr.bf16.mxu0 0
  %85 = vmatpush1.bf16.msra.mxu0 0
  %86 = vmatprep.subr.bf16.mxu0 0
  %87 = vmatpush1.bf16.msra.mxu0 0
  %88 = vmatprep.subr.bf16.mxu0 0
  %89 = vmatpush1.bf16.msra.mxu0 0
  %90 = vmatprep.subr.bf16.mxu0 0
  %91 = vmatpush1.bf16.msra.mxu0 0
  %92 = vmatprep.subr.bf16.mxu0 0
  %93 = vmatpush1.bf16.msra.mxu0 0
  %94 = vmatprep.subr.bf16.mxu0 0
  %95 = vmatpush1.bf16.msra.mxu0 0
  %96 = vmatprep.subr.bf16.mxu0 0
  %97 = vmatpush1.bf16.msra.mxu0 0
  %98 = vmatprep.subr.bf16.mxu0 0
  %99 = vmatpush1.bf16.msra.mxu0 0
  %100 = vmatprep.subr.bf16.mxu0 0
  %101 = vmatpush1.bf16.msra.mxu0 0
  %102 = vmatprep.mubr.bf16.mxu0 0
  %103 = vmatmul.mubr.bf16.gmra.mrb[0].mxu0 %v68
  %v104 = vpop.f32.mrb[0].mxu0
  %v105 = vadd.f32 %v53, %v104
  %v106 = vpop.f32.mrb[0].mxu0
  %v107 = vpop.f32.mrb[0].mxu0
  %v108 = vadd.f32 %v53, %v107
  %v109 = vpop.f32.mrb[0].mxu0
  %110 = vdwg.mxu0
  %v111 = vmul.f32 %v105, 0.35355338
  %v112 = vmul.f32 %v108, 0.35355338
  %v113 = vld [vmem:[%s2] sm:$0xff]
  %v114 = vpack.c.bf16 %v111, %v111
  %v115 = vpack.c.bf16 %v112, %v112
  %v116 = vpack.c.bf16 %v105, %v105
  %v117 = vpack.c.bf16 %v108, %v108
  %119 = vrot.lane.b32.xlu0 %v116, 96
  %v120 = vpop.permute.xlu0 %119
  %vm121 = vcmask 64512
  %v123 = vsel %vm121, %v114, 0
  %v126 = vsel %vm121, %v120, 0
  %128 = vmatprep.subr.bf16.mxu0 0
  %129 = vmatpush1.bf16.xpose.msra.mxu0 %v126
  %130 = vmatprep.subr.bf16.mxu0 0
  %131 = vmatpush1.bf16.xpose.msra.mxu0 0
  %132 = vmatprep.subr.bf16.mxu0 0
  %133 = vmatpush1.bf16.xpose.msra.mxu0 0
  %134 = vmatprep.subr.bf16.mxu0 0
  %135 = vmatpush1.bf16.xpose.msra.mxu0 0
  %136 = vmatprep.subr.bf16.mxu0 0
  %137 = vmatpush1.bf16.xpose.msra.mxu0 0
  %138 = vmatprep.subr.bf16.mxu0 0
  %139 = vmatpush1.bf16.xpose.msra.mxu0 0
  %140 = vmatprep.subr.bf16.mxu0 0
  %141 = vmatpush1.bf16.xpose.msra.mxu0 0
  %142 = vmatprep.subr.bf16.mxu0 0
  %143 = vmatpush1.bf16.xpose.msra.mxu0 0
  %144 = vmatprep.subr.bf16.mxu0 0
  %145 = vmatpush1.bf16.xpose.msra.mxu0 0
  %146 = vmatprep.subr.bf16.mxu0 0
  %147 = vmatpush1.bf16.xpose.msra.mxu0 0
  %148 = vmatprep.subr.bf16.mxu0 0
  %149 = vmatpush1.bf16.xpose.msra.mxu0 0
  %150 = vmatprep.subr.bf16.mxu0 0
  %151 = vmatpush1.bf16.xpose.msra.mxu0 0
  %152 = vmatprep.subr.bf16.mxu0 0
  %153 = vmatpush1.bf16.xpose.msra.mxu0 0
  %154 = vmatprep.subr.bf16.mxu0 0
  %155 = vmatpush1.bf16.xpose.msra.mxu0 0
  %156 = vmatprep.subr.bf16.mxu0 0
  %157 = vmatpush1.bf16.xpose.msra.mxu0 0
  %158 = vmatprep.subr.bf16.mxu0 0
  %159 = vmatpush1.bf16.xpose.msra.mxu0 0
  %160 = vmatprep.mubr.bf16.mxu0 0
  %161 = vmatmul.mubr.bf16.gmra.mrb[0].mxu0 %v123
  %v162 = vpop.f32.mrb[0].mxu0
  %v163 = vadd.f32 %v113, %v162
  %v164 = vpop.f32.mrb[0].mxu0
  %v165 = vpop.f32.mrb[0].mxu0
  %v166 = vpop.f32.mrb[0].mxu0
  %167 = vdwg.mxu0
  %169 = vrot.lane.b32.xlu0 %v117, 96
  %v170 = vpop.permute.xlu0 %169
  %v172 = vsel %vm121, %v115, 0
  %v175 = vsel %vm121, %v170, 0
  %177 = vmatprep.subr.bf16.mxu0 0
  %178 = vmatpush1.bf16.xpose.msra.mxu0 %v175
  %179 = vmatprep.subr.bf16.mxu0 0
  %180 = vmatpush1.bf16.xpose.msra.mxu0 0
  %181 = vmatprep.subr.bf16.mxu0 0
  %182 = vmatpush1.bf16.xpose.msra.mxu0 0
  %183 = vmatprep.subr.bf16.mxu0 0
  %184 = vmatpush1.bf16.xpose.msra.mxu0 0
  %185 = vmatprep.subr.bf16.mxu0 0
  %186 = vmatpush1.bf16.xpose.msra.mxu0 0
  %187 = vmatprep.subr.bf16.mxu0 0
  %188 = vmatpush1.bf16.xpose.msra.mxu0 0
  %189 = vmatprep.subr.bf16.mxu0 0
  %190 = vmatpush1.bf16.xpose.msra.mxu0 0
  %191 = vmatprep.subr.bf16.mxu0 0
  %192 = vmatpush1.bf16.xpose.msra.mxu0 0
  %193 = vmatprep.subr.bf16.mxu0 0
  %194 = vmatpush1.bf16.xpose.msra.mxu0 0
  %195 = vmatprep.subr.bf16.mxu0 0
  %196 = vmatpush1.bf16.xpose.msra.mxu0 0
  %197 = vmatprep.subr.bf16.mxu0 0
  %198 = vmatpush1.bf16.xpose.msra.mxu0 0
  %199 = vmatprep.subr.bf16.mxu0 0
  %200 = vmatpush1.bf16.xpose.msra.mxu0 0
  %201 = vmatprep.subr.bf16.mxu0 0
  %202 = vmatpush1.bf16.xpose.msra.mxu0 0
  %203 = vmatprep.subr.bf16.mxu0 0
  %204 = vmatpush1.bf16.xpose.msra.mxu0 0
  %205 = vmatprep.subr.bf16.mxu0 0
  %206 = vmatpush1.bf16.xpose.msra.mxu0 0
  %207 = vmatprep.subr.bf16.mxu0 0
  %208 = vmatpush1.bf16.xpose.msra.mxu0 0
  %209 = vmatprep.mubr.bf16.mxu0 0
  %210 = vmatmul.mubr.bf16.gmra.mrb[0].mxu0 %v172
  %v211 = vpop.f32.mrb[0].mxu0
  %v212 = vadd.f32 %v113, %v211
  %v213 = vpop.f32.mrb[0].mxu0
  %v214 = vpop.f32.mrb[0].mxu0
  %v215 = vpop.f32.mrb[0].mxu0
  %216 = vdwg.mxu0
  %v217 = vsel %vm121, %v163, -inf
  %218 = vmax.xlane.f32.xlu0 %v217
  %v219 = vpop.xlane.xlu0 %218
  %v220 = vsel %vm121, %v212, -inf
  %221 = vmax.xlane.f32.xlu0 %v220
  %v222 = vpop.xlane.xlu0 %221
  %v223 = vsub.f32 %v163, %v219
  %v224 = vsub.f32 %v212, %v222
  %v225 = vmul.f32 %v223, 1.442695
  %v226 = vpow.pop %v225
  %v227 = vmul.f32 %v224, 1.442695
  %v228 = vpow.pop %v227
  %v229 = vsel %vm121, %v226, 0.0
  %230 = vadd.xlane.f32.xlu0 %v229
  %v231 = vpop.xlane.xlu0 %230
  %v232 = vsel %vm121, %v228, 0.0
  %233 = vadd.xlane.f32.xlu0 %v232
  %v234 = vpop.xlane.xlu0 %233
  %v235 = vrcp.pop %v231
  %v236 = vrcp.pop %v234
  %v237 = vmul.f32 %v226, %v235
  %v238 = vmul.f32 %v228, %v236
  %v239 = vpack.c.bf16 %v237, %v237
  %v240 = vpack.c.bf16 %v238, %v238
  %241 = vrot.lane.b32.xlu0 %v116, 64
  %v242 = vpop.permute.xlu0 %241
  %v244 = vsel %vm121, %v239, 0
  %vm246 = vcmask 1043456
  %v248 = vsel %vm246, %v242, 0
  %250 = vmatprep.subr.bf16.mxu0 0
  %251 = vmatpush1.bf16.msra.mxu0 %v248
  %252 = vmatprep.subr.bf16.mxu0 0
  %253 = vmatpush1.bf16.msra.mxu0 0
  %254 = vmatprep.subr.bf16.mxu0 0
  %255 = vmatpush1.bf16.msra.mxu0 0
  %256 = vmatprep.subr.bf16.mxu0 0
  %257 = vmatpush1.bf16.msra.mxu0 0
  %258 = vmatprep.subr.bf16.mxu0 0
  %259 = vmatpush1.bf16.msra.mxu0 0
  %260 = vmatprep.subr.bf16.mxu0 0
  %261 = vmatpush1.bf16.msra.mxu0 0
  %262 = vmatprep.subr.bf16.mxu0 0
  %263 = vmatpush1.bf16.msra.mxu0 0
  %264 = vmatprep.subr.bf16.mxu0 0
  %265 = vmatpush1.bf16.msra.mxu0 0
  %266 = vmatprep.subr.bf16.mxu0 0
  %267 = vmatpush1.bf16.msra.mxu0 0
  %268 = vmatprep.subr.bf16.mxu0 0
  %269 = vmatpush1.bf16.msra.mxu0 0
  %270 = vmatprep.subr.bf16.mxu0 0
  %271 = vmatpush1.bf16.msra.mxu0 0
  %272 = vmatprep.subr.bf16.mxu0 0
  %273 = vmatpush1.bf16.msra.mxu0 0
  %274 = vmatprep.subr.bf16.mxu0 0
  %275 = vmatpush1.bf16.msra.mxu0 0
  %276 = vmatprep.subr.bf16.mxu0 0
  %277 = vmatpush1.bf16.msra.mxu0 0
  %278 = vmatprep.subr.bf16.mxu0 0
  %279 = vmatpush1.bf16.msra.mxu0 0
  %280 = vmatprep.subr.bf16.mxu0 0
  %281 = vmatpush1.bf16.msra.mxu0 0
  %282 = vmatprep.mubr.bf16.mxu0 0
  %283 = vmatmul.mubr.bf16.gmra.mrb[0].mxu0 %v244
  %v284 = vpop.f32.mrb[0].mxu0
  %v285 = vadd.f32 0.0, %v284
  %v286 = vpop.f32.mrb[0].mxu0
  %v287 = vpop.f32.mrb[0].mxu0
  %v288 = vpop.f32.mrb[0].mxu0
  %289 = vdwg.mxu0
  %290 = vrot.lane.b32.xlu0 %v117, 64
  %v291 = vpop.permute.xlu0 %290
  %v293 = vsel %vm121, %v240, 0
  %v296 = vsel %vm246, %v291, 0
  %298 = vmatprep.subr.bf16.mxu0 0
  %299 = vmatpush1.bf16.msra.mxu0 %v296
  %300 = vmatprep.subr.bf16.mxu0 0
  %301 = vmatpush1.bf16.msra.mxu0 0
  %302 = vmatprep.subr.bf16.mxu0 0
  %303 = vmatpush1.bf16.msra.mxu0 0
  %304 = vmatprep.subr.bf16.mxu0 0
  %305 = vmatpush1.bf16.msra.mxu0 0
  %306 = vmatprep.subr.bf16.mxu0 0
  %307 = vmatpush1.bf16.msra.mxu0 0
  %308 = vmatprep.subr.bf16.mxu0 0
  %309 = vmatpush1.bf16.msra.mxu0 0
  %310 = vmatprep.subr.bf16.mxu0 0
  %311 = vmatpush1.bf16.msra.mxu0 0
  %312 = vmatprep.subr.bf16.mxu0 0
  %313 = vmatpush1.bf16.msra.mxu0 0
  %314 = vmatprep.subr.bf16.mxu0 0
  %315 = vmatpush1.bf16.msra.mxu0 0
  %316 = vmatprep.subr.bf16.mxu0 0
  %317 = vmatpush1.bf16.msra.mxu0 0
  %318 = vmatprep.subr.bf16.mxu0 0
  %319 = vmatpush1.bf16.msra.mxu0 0
  %320 = vmatprep.subr.bf16.mxu0 0
  %321 = vmatpush1.bf16.msra.mxu0 0
  %322 = vmatprep.subr.bf16.mxu0 0
  %323 = vmatpush1.bf16.msra.mxu0 0
  %324 = vmatprep.subr.bf16.mxu0 0
  %325 = vmatpush1.bf16.msra.mxu0 0
  %326 = vmatprep.subr.bf16.mxu0 0
  %327 = vmatpush1.bf16.msra.mxu0 0
  %328 = vmatprep.subr.bf16.mxu0 0
  %329 = vmatpush1.bf16.msra.mxu0 0
  %330 = vmatprep.mubr.bf16.mxu0 0
  %331 = vmatmul.mubr.bf16.gmra.mrb[0].mxu0 %v293
  %v332 = vpop.f32.mrb[0].mxu0
  %v333 = vadd.f32 0.0, %v332
  %v334 = vpop.f32.mrb[0].mxu0
  %v335 = vpop.f32.mrb[0].mxu0
  %v336 = vpop.f32.mrb[0].mxu0
  %337 = vdwg.mxu0
  %339 = vrot.lane.b32.xlu0 %v114, 120
  %v340 = vpop.permute.xlu0 %339
  %341 = vrot.lane.b32.xlu0 %v116, 88
  %v342 = vpop.permute.xlu0 %341
  %v344 = vsel %vm121, %v340, 0
  %v347 = vsel %vm121, %v342, 0
  %349 = vmatprep.subr.bf16.mxu0 0
  %350 = vmatpush1.bf16.xpose.msra.mxu0 %v347
  %351 = vmatprep.subr.bf16.mxu0 0
  %352 = vmatpush1.bf16.xpose.msra.mxu0 0
  %353 = vmatprep.subr.bf16.mxu0 0
  %354 = vmatpush1.bf16.xpose.msra.mxu0 0
  %355 = vmatprep.subr.bf16.mxu0 0
  %356 = vmatpush1.bf16.xpose.msra.mxu0 0
  %357 = vmatprep.subr.bf16.mxu0 0
  %358 = vmatpush1.bf16.xpose.msra.mxu0 0
  %359 = vmatprep.subr.bf16.mxu0 0
  %360 = vmatpush1.bf16.xpose.msra.mxu0 0
  %361 = vmatprep.subr.bf16.mxu0 0
  %362 = vmatpush1.bf16.xpose.msra.mxu0 0
  %363 = vmatprep.subr.bf16.mxu0 0
  %364 = vmatpush1.bf16.xpose.msra.mxu0 0
  %365 = vmatprep.subr.bf16.mxu0 0
  %366 = vmatpush1.bf16.xpose.msra.mxu0 0
  %367 = vmatprep.subr.bf16.mxu0 0
  %368 = vmatpush1.bf16.xpose.msra.mxu0 0
  %369 = vmatprep.subr.bf16.mxu0 0
  %370 = vmatpush1.bf16.xpose.msra.mxu0 0
  %371 = vmatprep.subr.bf16.mxu0 0
  %372 = vmatpush1.bf16.xpose.msra.mxu0 0
  %373 = vmatprep.subr.bf16.mxu0 0
  %374 = vmatpush1.bf16.xpose.msra.mxu0 0
  %375 = vmatprep.subr.bf16.mxu0 0
  %376 = vmatpush1.bf16.xpose.msra.mxu0 0
  %377 = vmatprep.subr.bf16.mxu0 0
  %378 = vmatpush1.bf16.xpose.msra.mxu0 0
  %379 = vmatprep.subr.bf16.mxu0 0
  %380 = vmatpush1.bf16.xpose.msra.mxu0 0
  %381 = vmatprep.mubr.bf16.mxu0 0
  %382 = vmatmul.mubr.bf16.gmra.mrb[0].mxu0 %v344
  %v383 = vpop.f32.mrb[0].mxu0
  %v384 = vadd.f32 %v113, %v383
  %v385 = vpop.f32.mrb[0].mxu0
  %v386 = vpop.f32.mrb[0].mxu0
  %v387 = vpop.f32.mrb[0].mxu0
  %388 = vdwg.mxu0
  %390 = vrot.lane.b32.xlu0 %v115, 120
  %v391 = vpop.permute.xlu0 %390
  %392 = vrot.lane.b32.xlu0 %v117, 88
  %v393 = vpop.permute.xlu0 %392
  %v395 = vsel %vm121, %v391, 0
  %v398 = vsel %vm121, %v393, 0
  %400 = vmatprep.subr.bf16.mxu0 0
  %401 = vmatpush1.bf16.xpose.msra.mxu0 %v398
  %402 = vmatprep.subr.bf16.mxu0 0
  %403 = vmatpush1.bf16.xpose.msra.mxu0 0
  %404 = vmatprep.subr.bf16.mxu0 0
  %405 = vmatpush1.bf16.xpose.msra.mxu0 0
  %406 = vmatprep.subr.bf16.mxu0 0
  %407 = vmatpush1.bf16.xpose.msra.mxu0 0
  %408 = vmatprep.subr.bf16.mxu0 0
  %409 = vmatpush1.bf16.xpose.msra.mxu0 0
  %410 = vmatprep.subr.bf16.mxu0 0
  %411 = vmatpush1.bf16.xpose.msra.mxu0 0
  %412 = vmatprep.subr.bf16.mxu0 0
  %413 = vmatpush1.bf16.xpose.msra.mxu0 0
  %414 = vmatprep.subr.bf16.mxu0 0
  %415 = vmatpush1.bf16.xpose.msra.mxu0 0
  %416 = vmatprep.subr.bf16.mxu0 0
  %417 = vmatpush1.bf16.xpose.msra.mxu0 0
  %418 = vmatprep.subr.bf16.mxu0 0
  %419 = vmatpush1.bf16.xpose.msra.mxu0 0
  %420 = vmatprep.subr.bf16.mxu0 0
  %421 = vmatpush1.bf16.xpose.msra.mxu0 0
  %422 = vmatprep.subr.bf16.mxu0 0
  %423 = vmatpush1.bf16.xpose.msra.mxu0 0
  %424 = vmatprep.subr.bf16.mxu0 0
  %425 = vmatpush1.bf16.xpose.msra.mxu0 0
  %426 = vmatprep.subr.bf16.mxu0 0
  %427 = vmatpush1.bf16.xpose.msra.mxu0 0
  %428 = vmatprep.subr.bf16.mxu0 0
  %429 = vmatpush1.bf16.xpose.msra.mxu0 0
  %430 = vmatprep.subr.bf16.mxu0 0
  %431 = vmatpush1.bf16.xpose.msra.mxu0 0
  %432 = vmatprep.mubr.bf16.mxu0 0
  %433 = vmatmul.mubr.bf16.gmra.mrb[0].mxu0 %v395
  %v434 = vpop.f32.mrb[0].mxu0
  %v435 = vadd.f32 %v113, %v434
  %v436 = vpop.f32.mrb[0].mxu0
  %v437 = vpop.f32.mrb[0].mxu0
  %v438 = vpop.f32.mrb[0].mxu0
  %439 = vdwg.mxu0
  %v440 = vsel %vm121, %v384, -inf
  %441 = vmax.xlane.f32.xlu0 %v440
  %v442 = vpop.xlane.xlu0 %441
  %v443 = vsel %vm121, %v435, -inf
  %444 = vmax.xlane.f32.xlu0 %v443
  %v445 = vpop.xlane.xlu0 %444
  %v446 = vsub.f32 %v384, %v442
  %v447 = vsub.f32 %v435, %v445
  %v448 = vmul.f32 %v446, 1.442695
  %v449 = vpow.pop %v448
  %v450 = vmul.f32 %v447, 1.442695
  %v451 = vpow.pop %v450
  %v452 = vsel %vm121, %v449, 0.0
  %453 = vadd.xlane.f32.xlu0 %v452
  %v454 = vpop.xlane.xlu0 %453
  %v455 = vsel %vm121, %v451, 0.0
  %456 = vadd.xlane.f32.xlu0 %v455
  %v457 = vpop.xlane.xlu0 %456
  %v458 = vrcp.pop %v454
  %v459 = vrcp.pop %v457
  %v460 = vmul.f32 %v449, %v458
  %v461 = vmul.f32 %v451, %v459
  %v462 = vpack.c.bf16 %v460, %v460
  %v463 = vpack.c.bf16 %v461, %v461
  %464 = vrot.lane.b32.xlu0 %v116, 56
  %v465 = vpop.permute.xlu0 %464
  %v467 = vsel %vm121, %v462, 0
  %v470 = vsel %vm246, %v465, 0
  %472 = vmatprep.subr.bf16.mxu0 0
  %473 = vmatpush1.bf16.msra.mxu0 %v470
  %474 = vmatprep.subr.bf16.mxu0 0
  %475 = vmatpush1.bf16.msra.mxu0 0
  %476 = vmatprep.subr.bf16.mxu0 0
  %477 = vmatpush1.bf16.msra.mxu0 0
  %478 = vmatprep.subr.bf16.mxu0 0
  %479 = vmatpush1.bf16.msra.mxu0 0
  %480 = vmatprep.subr.bf16.mxu0 0
  %481 = vmatpush1.bf16.msra.mxu0 0
  %482 = vmatprep.subr.bf16.mxu0 0
  %483 = vmatpush1.bf16.msra.mxu0 0
  %484 = vmatprep.subr.bf16.mxu0 0
  %485 = vmatpush1.bf16.msra.mxu0 0
  %486 = vmatprep.subr.bf16.mxu0 0
  %487 = vmatpush1.bf16.msra.mxu0 0
  %488 = vmatprep.subr.bf16.mxu0 0
  %489 = vmatpush1.bf16.msra.mxu0 0
  %490 = vmatprep.subr.bf16.mxu0 0
  %491 = vmatpush1.bf16.msra.mxu0 0
  %492 = vmatprep.subr.bf16.mxu0 0
  %493 = vmatpush1.bf16.msra.mxu0 0
  %494 = vmatprep.subr.bf16.mxu0 0
  %495 = vmatpush1.bf16.msra.mxu0 0
  %496 = vmatprep.subr.bf16.mxu0 0
  %497 = vmatpush1.bf16.msra.mxu0 0
  %498 = vmatprep.subr.bf16.mxu0 0
  %499 = vmatpush1.bf16.msra.mxu0 0
  %500 = vmatprep.subr.bf16.mxu0 0
  %501 = vmatpush1.bf16.msra.mxu0 0
  %502 = vmatprep.subr.bf16.mxu0 0
  %503 = vmatpush1.bf16.msra.mxu0 0
  %504 = vmatprep.mubr.bf16.mxu0 0
  %505 = vmatmul.mubr.bf16.gmra.mrb[0].mxu0 %v467
  %v506 = vpop.f32.mrb[0].mxu0
  %v507 = vadd.f32 0.0, %v506
  %v508 = vpop.f32.mrb[0].mxu0
  %v509 = vpop.f32.mrb[0].mxu0
  %v510 = vpop.f32.mrb[0].mxu0
  %511 = vdwg.mxu0
  %512 = vrot.lane.b32.xlu0 %v117, 56
  %v513 = vpop.permute.xlu0 %512
  %v515 = vsel %vm121, %v463, 0
  %v518 = vsel %vm246, %v513, 0
  %520 = vmatprep.subr.bf16.mxu0 0
  %521 = vmatpush1.bf16.msra.mxu0 %v518
  %522 = vmatprep.subr.bf16.mxu0 0
  %523 = vmatpush1.bf16.msra.mxu0 0
  %524 = vmatprep.subr.bf16.mxu0 0
  %525 = vmatpush1.bf16.msra.mxu0 0
  %526 = vmatprep.subr.bf16.mxu0 0
  %527 = vmatpush1.bf16.msra.mxu0 0
  %528 = vmatprep.subr.bf16.mxu0 0
  %529 = vmatpush1.bf16.msra.mxu0 0
  %530 = vmatprep.subr.bf16.mxu0 0
  %531 = vmatpush1.bf16.msra.mxu0 0
  %532 = vmatprep.subr.bf16.mxu0 0
  %533 = vmatpush1.bf16.msra.mxu0 0
  %534 = vmatprep.subr.bf16.mxu0 0
  %535 = vmatpush1.bf16.msra.mxu0 0
  %536 = vmatprep.subr.bf16.mxu0 0
  %537 = vmatpush1.bf16.msra.mxu0 0
  %538 = vmatprep.subr.bf16.mxu0 0
  %539 = vmatpush1.bf16.msra.mxu0 0
  %540 = vmatprep.subr.bf16.mxu0 0
  %541 = vmatpush1.bf16.msra.mxu0 0
  %542 = vmatprep.subr.bf16.mxu0 0
  %543 = vmatpush1.bf16.msra.mxu0 0
  %544 = vmatprep.subr.bf16.mxu0 0
  %545 = vmatpush1.bf16.msra.mxu0 0
  %546 = vmatprep.subr.bf16.mxu0 0
  %547 = vmatpush1.bf16.msra.mxu0 0
  %548 = vmatprep.subr.bf16.mxu0 0
  %549 = vmatpush1.bf16.msra.mxu0 0
  %550 = vmatprep.subr.bf16.mxu0 0
  %551 = vmatpush1.bf16.msra.mxu0 0
  %552 = vmatprep.mubr.bf16.mxu0 0
  %553 = vmatmul.mubr.bf16.gmra.mrb[0].mxu0 %v515
  %v554 = vpop.f32.mrb[0].mxu0
  %v555 = vadd.f32 0.0, %v554
  %v556 = vpop.f32.mrb[0].mxu0
  %v557 = vpop.f32.mrb[0].mxu0
  %v558 = vpop.f32.mrb[0].mxu0
  %559 = vdwg.mxu0
  %560 = vrot.lane.b32.xlu0 %v114, 112
  %v561 = vpop.permute.xlu0 %560
  %562 = vrot.lane.b32.xlu0 %v116, 80
  %v563 = vpop.permute.xlu0 %562
  %v565 = vsel %vm121, %v561, 0
  %v568 = vsel %vm121, %v563, 0
  %570 = vmatprep.subr.bf16.mxu0 0
  %571 = vmatpush1.bf16.xpose.msra.mxu0 %v568
  %572 = vmatprep.subr.bf16.mxu0 0
  %573 = vmatpush1.bf16.xpose.msra.mxu0 0
  %574 = vmatprep.subr.bf16.mxu0 0
  %575 = vmatpush1.bf16.xpose.msra.mxu0 0
  %576 = vmatprep.subr.bf16.mxu0 0
  %577 = vmatpush1.bf16.xpose.msra.mxu0 0
  %578 = vmatprep.subr.bf16.mxu0 0
  %579 = vmatpush1.bf16.xpose.msra.mxu0 0
  %580 = vmatprep.subr.bf16.mxu0 0
  %581 = vmatpush1.bf16.xpose.msra.mxu0 0
  %582 = vmatprep.subr.bf16.mxu0 0
  %583 = vmatpush1.bf16.xpose.msra.mxu0 0
  %584 = vmatprep.subr.bf16.mxu0 0
  %585 = vmatpush1.bf16.xpose.msra.mxu0 0
  %586 = vmatprep.subr.bf16.mxu0 0
  %587 = vmatpush1.bf16.xpose.msra.mxu0 0
  %588 = vmatprep.subr.bf16.mxu0 0
  %589 = vmatpush1.bf16.xpose.msra.mxu0 0
  %590 = vmatprep.subr.bf16.mxu0 0
  %591 = vmatpush1.bf16.xpose.msra.mxu0 0
  %592 = vmatprep.subr.bf16.mxu0 0
  %593 = vmatpush1.bf16.xpose.msra.mxu0 0
  %594 = vmatprep.subr.bf16.mxu0 0
  %595 = vmatpush1.bf16.xpose.msra.mxu0 0
  %596 = vmatprep.subr.bf16.mxu0 0
  %597 = vmatpush1.bf16.xpose.msra.mxu0 0
  %598 = vmatprep.subr.bf16.mxu0 0
  %599 = vmatpush1.bf16.xpose.msra.mxu0 0
  %600 = vmatprep.subr.bf16.mxu0 0
  %601 = vmatpush1.bf16.xpose.msra.mxu0 0
  %602 = vmatprep.mubr.bf16.mxu0 0
  %603 = vmatmul.mubr.bf16.gmra.mrb[0].mxu0 %v565
  %v604 = vpop.f32.mrb[0].mxu0
  %v605 = vadd.f32 %v113, %v604
  %v606 = vpop.f32.mrb[0].mxu0
  %v607 = vpop.f32.mrb[0].mxu0
  %v608 = vpop.f32.mrb[0].mxu0
  %609 = vdwg.mxu0
  %610 = vrot.lane.b32.xlu0 %v115, 112
  %v611 = vpop.permute.xlu0 %610
  %612 = vrot.lane.b32.xlu0 %v117, 80
  %v613 = vpop.permute.xlu0 %612
  %v615 = vsel %vm121, %v611, 0
  %v618 = vsel %vm121, %v613, 0
  %620 = vmatprep.subr.bf16.mxu0 0
  %621 = vmatpush1.bf16.xpose.msra.mxu0 %v618
  %622 = vmatprep.subr.bf16.mxu0 0
  %623 = vmatpush1.bf16.xpose.msra.mxu0 0
  %624 = vmatprep.subr.bf16.mxu0 0
  %625 = vmatpush1.bf16.xpose.msra.mxu0 0
  %626 = vmatprep.subr.bf16.mxu0 0
  %627 = vmatpush1.bf16.xpose.msra.mxu0 0
  %628 = vmatprep.subr.bf16.mxu0 0
  %629 = vmatpush1.bf16.xpose.msra.mxu0 0
  %630 = vmatprep.subr.bf16.mxu0 0
  %631 = vmatpush1.bf16.xpose.msra.mxu0 0
  %632 = vmatprep.subr.bf16.mxu0 0
  %633 = vmatpush1.bf16.xpose.msra.mxu0 0
  %634 = vmatprep.subr.bf16.mxu0 0
  %635 = vmatpush1.bf16.xpose.msra.mxu0 0
  %636 = vmatprep.subr.bf16.mxu0 0
  %637 = vmatpush1.bf16.xpose.msra.mxu0 0
  %638 = vmatprep.subr.bf16.mxu0 0
  %639 = vmatpush1.bf16.xpose.msra.mxu0 0
  %640 = vmatprep.subr.bf16.mxu0 0
  %641 = vmatpush1.bf16.xpose.msra.mxu0 0
  %642 = vmatprep.subr.bf16.mxu0 0
  %643 = vmatpush1.bf16.xpose.msra.mxu0 0
  %644 = vmatprep.subr.bf16.mxu0 0
  %645 = vmatpush1.bf16.xpose.msra.mxu0 0
  %646 = vmatprep.subr.bf16.mxu0 0
  %647 = vmatpush1.bf16.xpose.msra.mxu0 0
  %648 = vmatprep.subr.bf16.mxu0 0
  %649 = vmatpush1.bf16.xpose.msra.mxu0 0
  %650 = vmatprep.subr.bf16.mxu0 0
  %651 = vmatpush1.bf16.xpose.msra.mxu0 0
  %652 = vmatprep.mubr.bf16.mxu0 0
  %653 = vmatmul.mubr.bf16.gmra.mrb[0].mxu0 %v615
  %v654 = vpop.f32.mrb[0].mxu0
  %v655 = vadd.f32 %v113, %v654
  %v656 = vpop.f32.mrb[0].mxu0
  %v657 = vpop.f32.mrb[0].mxu0
  %v658 = vpop.f32.mrb[0].mxu0
  %659 = vdwg.mxu0
  %v660 = vsel %vm121, %v605, -inf
  %661 = vmax.xlane.f32.xlu0 %v660
  %v662 = vpop.xlane.xlu0 %661
  %v663 = vsel %vm121, %v655, -inf
  %664 = vmax.xlane.f32.xlu0 %v663
  %v665 = vpop.xlane.xlu0 %664
  %v666 = vsub.f32 %v605, %v662
  %v667 = vsub.f32 %v655, %v665
  %v668 = vmul.f32 %v666, 1.442695
  %v669 = vpow.pop %v668
  %v670 = vmul.f32 %v667, 1.442695
  %v671 = vpow.pop %v670
  %v672 = vsel %vm121, %v669, 0.0
  %673 = vadd.xlane.f32.xlu0 %v672
  %v674 = vpop.xlane.xlu0 %673
  %v675 = vsel %vm121, %v671, 0.0
  %676 = vadd.xlane.f32.xlu0 %v675
  %v677 = vpop.xlane.xlu0 %676
  %v678 = vrcp.pop %v674
  %v679 = vrcp.pop %v677
  %v680 = vmul.f32 %v669, %v678
  %v681 = vmul.f32 %v671, %v679
  %v682 = vpack.c.bf16 %v680, %v680
  %v683 = vpack.c.bf16 %v681, %v681
  %684 = vrot.lane.b32.xlu0 %v116, 48
  %v685 = vpop.permute.xlu0 %684
  %v687 = vsel %vm121, %v682, 0
  %v690 = vsel %vm246, %v685, 0
  %692 = vmatprep.subr.bf16.mxu0 0
  %693 = vmatpush1.bf16.msra.mxu0 %v690
  %694 = vmatprep.subr.bf16.mxu0 0
  %695 = vmatpush1.bf16.msra.mxu0 0
  %696 = vmatprep.subr.bf16.mxu0 0
  %697 = vmatpush1.bf16.msra.mxu0 0
  %698 = vmatprep.subr.bf16.mxu0 0
  %699 = vmatpush1.bf16.msra.mxu0 0
  %700 = vmatprep.subr.bf16.mxu0 0
  %701 = vmatpush1.bf16.msra.mxu0 0
  %702 = vmatprep.subr.bf16.mxu0 0
  %703 = vmatpush1.bf16.msra.mxu0 0
  %704 = vmatprep.subr.bf16.mxu0 0
  %705 = vmatpush1.bf16.msra.mxu0 0
  %706 = vmatprep.subr.bf16.mxu0 0
  %707 = vmatpush1.bf16.msra.mxu0 0
  %708 = vmatprep.subr.bf16.mxu0 0
  %709 = vmatpush1.bf16.msra.mxu0 0
  %710 = vmatprep.subr.bf16.mxu0 0
  %711 = vmatpush1.bf16.msra.mxu0 0
  %712 = vmatprep.subr.bf16.mxu0 0
  %713 = vmatpush1.bf16.msra.mxu0 0
  %714 = vmatprep.subr.bf16.mxu0 0
  %715 = vmatpush1.bf16.msra.mxu0 0
  %716 = vmatprep.subr.bf16.mxu0 0
  %717 = vmatpush1.bf16.msra.mxu0 0
  %718 = vmatprep.subr.bf16.mxu0 0
  %719 = vmatpush1.bf16.msra.mxu0 0
  %720 = vmatprep.subr.bf16.mxu0 0
  %721 = vmatpush1.bf16.msra.mxu0 0
  %722 = vmatprep.subr.bf16.mxu0 0
  %723 = vmatpush1.bf16.msra.mxu0 0
  %724 = vmatprep.mubr.bf16.mxu0 0
  %725 = vmatmul.mubr.bf16.gmra.mrb[0].mxu0 %v687
  %v726 = vpop.f32.mrb[0].mxu0
  %v727 = vadd.f32 0.0, %v726
  %v728 = vpop.f32.mrb[0].mxu0
  %v729 = vpop.f32.mrb[0].mxu0
  %v730 = vpop.f32.mrb[0].mxu0
  %731 = vdwg.mxu0
  %732 = vrot.lane.b32.xlu0 %v117, 48
  %v733 = vpop.permute.xlu0 %732
  %v735 = vsel %vm121, %v683, 0
  %v738 = vsel %vm246, %v733, 0
  %740 = vmatprep.subr.bf16.mxu0 0
  %741 = vmatpush1.bf16.msra.mxu0 %v738
  %742 = vmatprep.subr.bf16.mxu0 0
  %743 = vmatpush1.bf16.msra.mxu0 0
  %744 = vmatprep.subr.bf16.mxu0 0
  %745 = vmatpush1.bf16.msra.mxu0 0
  %746 = vmatprep.subr.bf16.mxu0 0
  %747 = vmatpush1.bf16.msra.mxu0 0
  %748 = vmatprep.subr.bf16.mxu0 0
  %749 = vmatpush1.bf16.msra.mxu0 0
  %750 = vmatprep.subr.bf16.mxu0 0
  %751 = vmatpush1.bf16.msra.mxu0 0
  %752 = vmatprep.subr.bf16.mxu0 0
  %753 = vmatpush1.bf16.msra.mxu0 0
  %754 = vmatprep.subr.bf16.mxu0 0
  %755 = vmatpush1.bf16.msra.mxu0 0
  %756 = vmatprep.subr.bf16.mxu0 0
  %757 = vmatpush1.bf16.msra.mxu0 0
  %758 = vmatprep.subr.bf16.mxu0 0
  %759 = vmatpush1.bf16.msra.mxu0 0
  %760 = vmatprep.subr.bf16.mxu0 0
  %761 = vmatpush1.bf16.msra.mxu0 0
  %762 = vmatprep.subr.bf16.mxu0 0
  %763 = vmatpush1.bf16.msra.mxu0 0
  %764 = vmatprep.subr.bf16.mxu0 0
  %765 = vmatpush1.bf16.msra.mxu0 0
  %766 = vmatprep.subr.bf16.mxu0 0
  %767 = vmatpush1.bf16.msra.mxu0 0
  %768 = vmatprep.subr.bf16.mxu0 0
  %769 = vmatpush1.bf16.msra.mxu0 0
  %770 = vmatprep.subr.bf16.mxu0 0
  %771 = vmatpush1.bf16.msra.mxu0 0
  %772 = vmatprep.mubr.bf16.mxu0 0
  %773 = vmatmul.mubr.bf16.gmra.mrb[0].mxu0 %v735
  %v774 = vpop.f32.mrb[0].mxu0
  %v775 = vadd.f32 0.0, %v774
  %v776 = vpop.f32.mrb[0].mxu0
  %v777 = vpop.f32.mrb[0].mxu0
  %v778 = vpop.f32.mrb[0].mxu0
  %779 = vdwg.mxu0
  %780 = vrot.lane.b32.xlu0 %v114, 104
  %v781 = vpop.permute.xlu0 %780
  %782 = vrot.lane.b32.xlu0 %v116, 72
  %v783 = vpop.permute.xlu0 %782
  %v785 = vsel %vm121, %v781, 0
  %v788 = vsel %vm121, %v783, 0
  %790 = vmatprep.subr.bf16.mxu0 0
  %791 = vmatpush1.bf16.xpose.msra.mxu0 %v788
  %792 = vmatprep.subr.bf16.mxu0 0
  %793 = vmatpush1.bf16.xpose.msra.mxu0 0
  %794 = vmatprep.subr.bf16.mxu0 0
  %795 = vmatpush1.bf16.xpose.msra.mxu0 0
  %796 = vmatprep.subr.bf16.mxu0 0
  %797 = vmatpush1.bf16.xpose.msra.mxu0 0
  %798 = vmatprep.subr.bf16.mxu0 0
  %799 = vmatpush1.bf16.xpose.msra.mxu0 0
  %800 = vmatprep.subr.bf16.mxu0 0
  %801 = vmatpush1.bf16.xpose.msra.mxu0 0
  %802 = vmatprep.subr.bf16.mxu0 0
  %803 = vmatpush1.bf16.xpose.msra.mxu0 0
  %804 = vmatprep.subr.bf16.mxu0 0
  %805 = vmatpush1.bf16.xpose.msra.mxu0 0
  %806 = vmatprep.subr.bf16.mxu0 0
  %807 = vmatpush1.bf16.xpose.msra.mxu0 0
  %808 = vmatprep.subr.bf16.mxu0 0
  %809 = vmatpush1.bf16.xpose.msra.mxu0 0
  %810 = vmatprep.subr.bf16.mxu0 0
  %811 = vmatpush1.bf16.xpose.msra.mxu0 0
  %812 = vmatprep.subr.bf16.mxu0 0
  %813 = vmatpush1.bf16.xpose.msra.mxu0 0
  %814 = vmatprep.subr.bf16.mxu0 0
  %815 = vmatpush1.bf16.xpose.msra.mxu0 0
  %816 = vmatprep.subr.bf16.mxu0 0
  %817 = vmatpush1.bf16.xpose.msra.mxu0 0
  %818 = vmatprep.subr.bf16.mxu0 0
  %819 = vmatpush1.bf16.xpose.msra.mxu0 0
  %820 = vmatprep.subr.bf16.mxu0 0
  %821 = vmatpush1.bf16.xpose.msra.mxu0 0
  %822 = vmatprep.mubr.bf16.mxu0 0
  %823 = vmatmul.mubr.bf16.gmra.mrb[0].mxu0 %v785
  %v824 = vpop.f32.mrb[0].mxu0
  %v825 = vadd.f32 %v113, %v824
  %v826 = vpop.f32.mrb[0].mxu0
  %v827 = vpop.f32.mrb[0].mxu0
  %v828 = vpop.f32.mrb[0].mxu0
  %829 = vdwg.mxu0
  %830 = vrot.lane.b32.xlu0 %v115, 104
  %v831 = vpop.permute.xlu0 %830
  %832 = vrot.lane.b32.xlu0 %v117, 72
  %v833 = vpop.permute.xlu0 %832
  %v835 = vsel %vm121, %v831, 0
  %v838 = vsel %vm121, %v833, 0
  %840 = vmatprep.subr.bf16.mxu0 0
  %841 = vmatpush1.bf16.xpose.msra.mxu0 %v838
  %842 = vmatprep.subr.bf16.mxu0 0
  %843 = vmatpush1.bf16.xpose.msra.mxu0 0
  %844 = vmatprep.subr.bf16.mxu0 0
  %845 = vmatpush1.bf16.xpose.msra.mxu0 0
  %846 = vmatprep.subr.bf16.mxu0 0
  %847 = vmatpush1.bf16.xpose.msra.mxu0 0
  %848 = vmatprep.subr.bf16.mxu0 0
  %849 = vmatpush1.bf16.xpose.msra.mxu0 0
  %850 = vmatprep.subr.bf16.mxu0 0
  %851 = vmatpush1.bf16.xpose.msra.mxu0 0
  %852 = vmatprep.subr.bf16.mxu0 0
  %853 = vmatpush1.bf16.xpose.msra.mxu0 0
  %854 = vmatprep.subr.bf16.mxu0 0
  %855 = vmatpush1.bf16.xpose.msra.mxu0 0
  %856 = vmatprep.subr.bf16.mxu0 0
  %857 = vmatpush1.bf16.xpose.msra.mxu0 0
  %858 = vmatprep.subr.bf16.mxu0 0
  %859 = vmatpush1.bf16.xpose.msra.mxu0 0
  %860 = vmatprep.subr.bf16.mxu0 0
  %861 = vmatpush1.bf16.xpose.msra.mxu0 0
  %862 = vmatprep.subr.bf16.mxu0 0
  %863 = vmatpush1.bf16.xpose.msra.mxu0 0
  %864 = vmatprep.subr.bf16.mxu0 0
  %865 = vmatpush1.bf16.xpose.msra.mxu0 0
  %866 = vmatprep.subr.bf16.mxu0 0
  %867 = vmatpush1.bf16.xpose.msra.mxu0 0
  %868 = vmatprep.subr.bf16.mxu0 0
  %869 = vmatpush1.bf16.xpose.msra.mxu0 0
  %870 = vmatprep.subr.bf16.mxu0 0
  %871 = vmatpush1.bf16.xpose.msra.mxu0 0
  %872 = vmatprep.mubr.bf16.mxu0 0
  %873 = vmatmul.mubr.bf16.gmra.mrb[0].mxu0 %v835
  %v874 = vpop.f32.mrb[0].mxu0
  %v875 = vadd.f32 %v113, %v874
  %v876 = vpop.f32.mrb[0].mxu0
  %v877 = vpop.f32.mrb[0].mxu0
  %v878 = vpop.f32.mrb[0].mxu0
  %879 = vdwg.mxu0
  %v880 = vsel %vm121, %v825, -inf
  %881 = vmax.xlane.f32.xlu0 %v880
  %v882 = vpop.xlane.xlu0 %881
  %v883 = vsel %vm121, %v875, -inf
  %884 = vmax.xlane.f32.xlu0 %v883
  %v885 = vpop.xlane.xlu0 %884
  %v886 = vsub.f32 %v825, %v882
  %v887 = vsub.f32 %v875, %v885
  %v888 = vmul.f32 %v886, 1.442695
  %v889 = vpow.pop %v888
  %v890 = vmul.f32 %v887, 1.442695
  %v891 = vpow.pop %v890
  %v892 = vsel %vm121, %v889, 0.0
  %893 = vadd.xlane.f32.xlu0 %v892
  %v894 = vpop.xlane.xlu0 %893
  %v895 = vsel %vm121, %v891, 0.0
  %896 = vadd.xlane.f32.xlu0 %v895
  %v897 = vpop.xlane.xlu0 %896
  %v898 = vrcp.pop %v894
  %v899 = vrcp.pop %v897
  %v900 = vmul.f32 %v889, %v898
  %v901 = vmul.f32 %v891, %v899
  %v902 = vpack.c.bf16 %v900, %v900
  %v903 = vpack.c.bf16 %v901, %v901
  %904 = vrot.lane.b32.xlu0 %v116, 40
  %v905 = vpop.permute.xlu0 %904
  %v907 = vsel %vm121, %v902, 0
  %v910 = vsel %vm246, %v905, 0
  %912 = vmatprep.subr.bf16.mxu0 0
  %913 = vmatpush1.bf16.msra.mxu0 %v910
  %914 = vmatprep.subr.bf16.mxu0 0
  %915 = vmatpush1.bf16.msra.mxu0 0
  %916 = vmatprep.subr.bf16.mxu0 0
  %917 = vmatpush1.bf16.msra.mxu0 0
  %918 = vmatprep.subr.bf16.mxu0 0
  %919 = vmatpush1.bf16.msra.mxu0 0
  %920 = vmatprep.subr.bf16.mxu0 0
  %921 = vmatpush1.bf16.msra.mxu0 0
  %922 = vmatprep.subr.bf16.mxu0 0
  %923 = vmatpush1.bf16.msra.mxu0 0
  %924 = vmatprep.subr.bf16.mxu0 0
  %925 = vmatpush1.bf16.msra.mxu0 0
  %926 = vmatprep.subr.bf16.mxu0 0
  %927 = vmatpush1.bf16.msra.mxu0 0
  %928 = vmatprep.subr.bf16.mxu0 0
  %929 = vmatpush1.bf16.msra.mxu0 0
  %930 = vmatprep.subr.bf16.mxu0 0
  %931 = vmatpush1.bf16.msra.mxu0 0
  %932 = vmatprep.subr.bf16.mxu0 0
  %933 = vmatpush1.bf16.msra.mxu0 0
  %934 = vmatprep.subr.bf16.mxu0 0
  %935 = vmatpush1.bf16.msra.mxu0 0
  %936 = vmatprep.subr.bf16.mxu0 0
  %937 = vmatpush1.bf16.msra.mxu0 0
  %938 = vmatprep.subr.bf16.mxu0 0
  %939 = vmatpush1.bf16.msra.mxu0 0
  %940 = vmatprep.subr.bf16.mxu0 0
  %941 = vmatpush1.bf16.msra.mxu0 0
  %942 = vmatprep.subr.bf16.mxu0 0
  %943 = vmatpush1.bf16.msra.mxu0 0
  %944 = vmatprep.mubr.bf16.mxu0 0
  %945 = vmatmul.mubr.bf16.gmra.mrb[0].mxu0 %v907
  %v946 = vpop.f32.mrb[0].mxu0
  %v947 = vadd.f32 0.0, %v946
  %v948 = vpop.f32.mrb[0].mxu0
  %v949 = vpop.f32.mrb[0].mxu0
  %v950 = vpop.f32.mrb[0].mxu0
  %951 = vdwg.mxu0
  %952 = vrot.lane.b32.xlu0 %v117, 40
  %v953 = vpop.permute.xlu0 %952
  %v955 = vsel %vm121, %v903, 0
  %v958 = vsel %vm246, %v953, 0
  %960 = vmatprep.subr.bf16.mxu0 0
  %961 = vmatpush1.bf16.msra.mxu0 %v958
  %962 = vmatprep.subr.bf16.mxu0 0
  %963 = vmatpush1.bf16.msra.mxu0 0
  %964 = vmatprep.subr.bf16.mxu0 0
  %965 = vmatpush1.bf16.msra.mxu0 0
  %966 = vmatprep.subr.bf16.mxu0 0
  %967 = vmatpush1.bf16.msra.mxu0 0
  %968 = vmatprep.subr.bf16.mxu0 0
  %969 = vmatpush1.bf16.msra.mxu0 0
  %970 = vmatprep.subr.bf16.mxu0 0
  %971 = vmatpush1.bf16.msra.mxu0 0
  %972 = vmatprep.subr.bf16.mxu0 0
  %973 = vmatpush1.bf16.msra.mxu0 0
  %974 = vmatprep.subr.bf16.mxu0 0
  %975 = vmatpush1.bf16.msra.mxu0 0
  %976 = vmatprep.subr.bf16.mxu0 0
  %977 = vmatpush1.bf16.msra.mxu0 0
  %978 = vmatprep.subr.bf16.mxu0 0
  %979 = vmatpush1.bf16.msra.mxu0 0
  %980 = vmatprep.subr.bf16.mxu0 0
  %981 = vmatpush1.bf16.msra.mxu0 0
  %982 = vmatprep.subr.bf16.mxu0 0
  %983 = vmatpush1.bf16.msra.mxu0 0
  %984 = vmatprep.subr.bf16.mxu0 0
  %985 = vmatpush1.bf16.msra.mxu0 0
  %986 = vmatprep.subr.bf16.mxu0 0
  %987 = vmatpush1.bf16.msra.mxu0 0
  %988 = vmatprep.subr.bf16.mxu0 0
  %989 = vmatpush1.bf16.msra.mxu0 0
  %990 = vmatprep.subr.bf16.mxu0 0
  %991 = vmatpush1.bf16.msra.mxu0 0
  %992 = vmatprep.mubr.bf16.mxu0 0
  %993 = vmatmul.mubr.bf16.gmra.mrb[0].mxu0 %v955
  %v994 = vpop.f32.mrb[0].mxu0
  %v995 = vadd.f32 0.0, %v994
  %v996 = vpop.f32.mrb[0].mxu0
  %v997 = vpop.f32.mrb[0].mxu0
  %v998 = vpop.f32.mrb[0].mxu0
  %999 = vdwg.mxu0
  %1002 = vrot.lane.b32.xlu0 %v507, 8
  %v1003 = vpop.permute.xlu0 %1002
  %1004 = vrot.lane.b32.xlu0 %v555, 8
  %v1005 = vpop.permute.xlu0 %1004
  %1010 = vrot.lane.b32.xlu0 %v727, 16
  %v1011 = vpop.permute.xlu0 %1010
  %1012 = vrot.lane.b32.xlu0 %v775, 16
  %v1013 = vpop.permute.xlu0 %1012
  %1018 = vrot.lane.b32.xlu0 %v947, 24
  %v1019 = vpop.permute.xlu0 %1018
  %1020 = vrot.lane.b32.xlu0 %v995, 24
  %v1021 = vpop.permute.xlu0 %1020
  %v1024 = vsel %vm121, %v285, %v1003
  %v1025 = vsel %vm121, %v333, %v1005
  %vm1026 = vcmask 130048
  %v1027 = vsel %vm1026, %v1024, %v1011
  %v1028 = vsel %vm1026, %v1025, %v1013
  %vm1029 = vcmask 195584
  %v1030 = vsel %vm1029, %v1027, %v1019
  %v1031 = vsel %vm1029, %v1028, %v1021
  %v1032 = vpack.c.bf16 %v1031, %v1030
  %v1033 = vlaneseq
  %v1034 = vshrl.u32 %v1033, 7
  %v1035 = vsub.s32 3, %v1034
  %v1036 = vrot.slane %v39, %v1035
  %1037 = vrot.lane.b32.xlu0 %v62, 32
  %v1038 = vpop.permute.xlu0 %1037
  %1039 = vrot.lane.b32.xlu0 %v63, 32
  %v1040 = vpop.permute.xlu0 %1039
  %v1044 = vsel %vm66, %v1032, 0
  %1046 = vmatprep.subr.bf16.mxu0 0
  %1047 = vmatpush1.bf16.msra.mxu0 %v1038
  %1048 = vmatprep.subr.bf16.mxu0 0
  %1049 = vmatpush1.bf16.msra.mxu0 %v1040
  %1050 = vmatprep.subr.bf16.mxu0 0
  %1051 = vmatpush1.bf16.msra.mxu0 0
  %1052 = vmatprep.subr.bf16.mxu0 0
  %1053 = vmatpush1.bf16.msra.mxu0 0
  %1054 = vmatprep.subr.bf16.mxu0 0
  %1055 = vmatpush1.bf16.msra.mxu0 0
  %1056 = vmatprep.subr.bf16.mxu0 0
  %1057 = vmatpush1.bf16.msra.mxu0 0
  %1058 = vmatprep.subr.bf16.mxu0 0
  %1059 = vmatpush1.bf16.msra.mxu0 0
  %1060 = vmatprep.subr.bf16.mxu0 0
  %1061 = vmatpush1.bf16.msra.mxu0 0
  %1062 = vmatprep.subr.bf16.mxu0 0
  %1063 = vmatpush1.bf16.msra.mxu0 0
  %1064 = vmatprep.subr.bf16.mxu0 0
  %1065 = vmatpush1.bf16.msra.mxu0 0
  %1066 = vmatprep.subr.bf16.mxu0 0
  %1067 = vmatpush1.bf16.msra.mxu0 0
  %1068 = vmatprep.subr.bf16.mxu0 0
  %1069 = vmatpush1.bf16.msra.mxu0 0
  %1070 = vmatprep.subr.bf16.mxu0 0
  %1071 = vmatpush1.bf16.msra.mxu0 0
  %1072 = vmatprep.subr.bf16.mxu0 0
  %1073 = vmatpush1.bf16.msra.mxu0 0
  %1074 = vmatprep.subr.bf16.mxu0 0
  %1075 = vmatpush1.bf16.msra.mxu0 0
  %1076 = vmatprep.subr.bf16.mxu0 0
  %1077 = vmatpush1.bf16.msra.mxu0 0
  %1078 = vmatprep.mubr.bf16.mxu0 0
  %1079 = vmatmul.mubr.bf16.gmra.mrb[0].mxu0 %v1044
  %v1080 = vpop.f32.mrb[0].mxu0
  %v1081 = vadd.f32 %v1036, %v1080
  %v1082 = vpop.f32.mrb[0].mxu0
  %v1083 = vpop.f32.mrb[0].mxu0
  %v1084 = vadd.f32 %v1036, %v1083
  %v1085 = vpop.f32.mrb[0].mxu0
  %1086 = vdwg.mxu0
  %v1087 = vadd.f32 %v33, %v1081
  %v1088 = vadd.f32 %v34, %v1084
  %v1089 = vsel %vm66, %v1087, 0.0
  %1090 = vadd.xlane.f32.xlu0 %v1089
  %v1091 = vpop.xlane.xlu0 %1090
  %v1092 = vsel %vm66, %v1088, 0.0
  %1093 = vadd.xlane.f32.xlu0 %v1092
  %v1094 = vpop.xlane.xlu0 %1093
  %v1095 = vrcp.pop 32.0
  %v1096 = vmul.f32 %v1091, %v1095
  %v1097 = vmul.f32 %v1094, %v1095
  %v1098 = vsub.f32 %v1087, %v1096
  %v1099 = vsub.f32 %v1088, %v1097
  %v1100 = vmul.f32 %v1098, %v1098
  %v1101 = vmul.f32 %v1099, %v1099
  %v1102 = vsel %vm66, %v1100, 0.0
  %1103 = vadd.xlane.f32.xlu0 %v1102
  %v1104 = vpop.xlane.xlu0 %1103
  %v1105 = vsel %vm66, %v1101, 0.0
  %1106 = vadd.xlane.f32.xlu0 %v1105
  %v1107 = vpop.xlane.xlu0 %1106
  %v1108 = vmul.f32 %v1104, %v1095
  %v1109 = vmul.f32 %v1107, %v1095
  %v1110 = vadd.f32 %v1108, 1e-05
  %v1111 = vadd.f32 %v1109, 1e-05
  %v1112 = vrsqrt.pop %v1110
  %v1113 = vrsqrt.pop %v1111
  %v1114 = vmul.f32 %v1098, %v1112
  %v1115 = vmul.f32 %v1099, %v1113
  %v1116 = vlaneseq
  %v1117 = vshrl.u32 %v1116, 7
  %v1118 = vsub.s32 6, %v1117
  %v1119 = vrot.slane %v39, %v1118
  %v1120 = vmul.f32 %v1114, %v1119
  %v1121 = vmul.f32 %v1115, %v1119
  %v1122 = vlaneseq
  %v1123 = vshrl.u32 %v1122, 7
  %v1124 = vsub.s32 7, %v1123
  %v1125 = vrot.slane %v39, %v1124
  %v1126 = vadd.f32 %v1120, %v1125
  %v1127 = vadd.f32 %v1121, %v1125
  %v1128 = vpack.c.bf16 %v1127, %v1126
  %v1129 = vlaneseq
  %v1130 = vshrl.u32 %v1129, 7
  %v1131 = vsub.s32 1, %v1130
  %v1132 = vrot.slane %v39, %v1131
  %v1137 = vunpack.c.l.b16 %v45
  %v1138 = vunpack.c.l.b16 %v46
  %v1139 = vunpack.c.l.b16 %v47
  %v1140 = vunpack.c.l.b16 %v48
  %v1141 = vpack.c.b16 %v1138, %v1137
  %v1142 = vpack.c.b16 %v1140, %v1139
  %v1146 = vsel %vm66, %v1128, 0
  %1148 = vmatprep.subr.bf16.mxu0 0
  %1149 = vmatpush1.bf16.msra.mxu0 %v1141
  %1150 = vmatprep.subr.bf16.mxu0 0
  %1151 = vmatpush1.bf16.msra.mxu0 %v1142
  %1152 = vmatprep.subr.bf16.mxu0 0
  %1153 = vmatpush1.bf16.msra.mxu0 0
  %1154 = vmatprep.subr.bf16.mxu0 0
  %1155 = vmatpush1.bf16.msra.mxu0 0
  %1156 = vmatprep.subr.bf16.mxu0 0
  %1157 = vmatpush1.bf16.msra.mxu0 0
  %1158 = vmatprep.subr.bf16.mxu0 0
  %1159 = vmatpush1.bf16.msra.mxu0 0
  %1160 = vmatprep.subr.bf16.mxu0 0
  %1161 = vmatpush1.bf16.msra.mxu0 0
  %1162 = vmatprep.subr.bf16.mxu0 0
  %1163 = vmatpush1.bf16.msra.mxu0 0
  %1164 = vmatprep.subr.bf16.mxu0 0
  %1165 = vmatpush1.bf16.msra.mxu0 0
  %1166 = vmatprep.subr.bf16.mxu0 0
  %1167 = vmatpush1.bf16.msra.mxu0 0
  %1168 = vmatprep.subr.bf16.mxu0 0
  %1169 = vmatpush1.bf16.msra.mxu0 0
  %1170 = vmatprep.subr.bf16.mxu0 0
  %1171 = vmatpush1.bf16.msra.mxu0 0
  %1172 = vmatprep.subr.bf16.mxu0 0
  %1173 = vmatpush1.bf16.msra.mxu0 0
  %1174 = vmatprep.subr.bf16.mxu0 0
  %1175 = vmatpush1.bf16.msra.mxu0 0
  %1176 = vmatprep.subr.bf16.mxu0 0
  %1177 = vmatpush1.bf16.msra.mxu0 0
  %1178 = vmatprep.subr.bf16.mxu0 0
  %1179 = vmatpush1.bf16.msra.mxu0 0
  %1180 = vmatprep.mubr.bf16.mxu0 0
  %1181 = vmatmul.mubr.bf16.gmra.mrb[0].mxu0 %v1146
  %v1182 = vpop.f32.mrb[0].mxu0
  %v1183 = vadd.f32 %v1132, %v1182
  %v1184 = vpop.f32.mrb[0].mxu0
  %v1185 = vpop.f32.mrb[0].mxu0
  %v1186 = vadd.f32 %v1132, %v1185
  %v1187 = vpop.f32.mrb[0].mxu0
  %1188 = vdwg.mxu0
  %v1189 = vmul.f32 %v1183, 0.35355338
  %v1190 = vmul.f32 %v1186, 0.35355338
  %v1191 = vpack.c.bf16 %v36, %v35
  %v1192 = vpack.c.bf16 %v38, %v37
  %1193 = vrot.lane.b32.xlu0 %v1141, 96
  %v1194 = vpop.permute.xlu0 %1193
  %1195 = vrot.lane.b32.xlu0 %v1142, 96
  %v1196 = vpop.permute.xlu0 %1195
  %1200 = vrot.lane.b32.xlu0 %v1132, 96
  %v1201 = vpop.permute.xlu0 %1200
  %v1204 = vsel %vm66, %v1191, 0
  %v1207 = vsel %vm66, %v1192, 0
  %1209 = vmatprep.subr.bf16.mxu0 0
  %1210 = vmatpush1.bf16.msra.mxu0 %v1194
  %1211 = vmatprep.subr.bf16.mxu0 0
  %1212 = vmatpush1.bf16.msra.mxu0 %v1196
  %1213 = vmatprep.subr.bf16.mxu0 0
  %1214 = vmatpush1.bf16.msra.mxu0 0
  %1215 = vmatprep.subr.bf16.mxu0 0
  %1216 = vmatpush1.bf16.msra.mxu0 0
  %1217 = vmatprep.subr.bf16.mxu0 0
  %1218 = vmatpush1.bf16.msra.mxu0 0
  %1219 = vmatprep.subr.bf16.mxu0 0
  %1220 = vmatpush1.bf16.msra.mxu0 0
  %1221 = vmatprep.subr.bf16.mxu0 0
  %1222 = vmatpush1.bf16.msra.mxu0 0
  %1223 = vmatprep.subr.bf16.mxu0 0
  %1224 = vmatpush1.bf16.msra.mxu0 0
  %1225 = vmatprep.subr.bf16.mxu0 0
  %1226 = vmatpush1.bf16.msra.mxu0 0
  %1227 = vmatprep.subr.bf16.mxu0 0
  %1228 = vmatpush1.bf16.msra.mxu0 0
  %1229 = vmatprep.subr.bf16.mxu0 0
  %1230 = vmatpush1.bf16.msra.mxu0 0
  %1231 = vmatprep.subr.bf16.mxu0 0
  %1232 = vmatpush1.bf16.msra.mxu0 0
  %1233 = vmatprep.subr.bf16.mxu0 0
  %1234 = vmatpush1.bf16.msra.mxu0 0
  %1235 = vmatprep.subr.bf16.mxu0 0
  %1236 = vmatpush1.bf16.msra.mxu0 0
  %1237 = vmatprep.subr.bf16.mxu0 0
  %1238 = vmatpush1.bf16.msra.mxu0 0
  %1239 = vmatprep.subr.bf16.mxu0 0
  %1240 = vmatpush1.bf16.msra.mxu0 0
  %1241 = vmatprep.mubr.bf16.mxu0 0
  %1242 = vmatmul.mubr.bf16.gmra.mrb[0].mxu0 %v1204
  %v1243 = vpop.f32.mrb[0].mxu0
  %v1244 = vadd.f32 %v1201, %v1243
  %v1245 = vpop.f32.mrb[0].mxu0
  %v1246 = vpop.f32.mrb[0].mxu0
  %v1247 = vadd.f32 %v1201, %v1246
  %v1248 = vpop.f32.mrb[0].mxu0
  %1249 = vmatprep.mubr.bf16.mxu0 0
  %1250 = vmatmul.mubr.bf16.gmra.mrb[0].mxu0 %v1207
  %v1251 = vpop.f32.mrb[0].mxu0
  %v1252 = vadd.f32 %v1201, %v1251
  %v1253 = vpop.f32.mrb[0].mxu0
  %v1254 = vpop.f32.mrb[0].mxu0
  %v1255 = vadd.f32 %v1201, %v1254
  %v1256 = vpop.f32.mrb[0].mxu0
  %1257 = vdwg.mxu0
  %v1258 = vld [vmem:[%s3] sm:$0xff]
  %v1259 = vpack.c.bf16 %v1189, %v1189
  %v1260 = vpack.c.bf16 %v1190, %v1190
  %v1261 = vpack.c.bf16 %v1247, %v1244
  %v1262 = vpack.c.bf16 %v1255, %v1252
  %v1264 = vsel %vm121, %v1259, 0
  %v1267 = vsel %vm121, %v1261, 0
  %1269 = vmatprep.subr.bf16.mxu0 0
  %1270 = vmatpush1.bf16.xpose.msra.mxu0 %v1267
  %1271 = vmatprep.subr.bf16.mxu0 0
  %1272 = vmatpush1.bf16.xpose.msra.mxu0 0
  %1273 = vmatprep.subr.bf16.mxu0 0
  %1274 = vmatpush1.bf16.xpose.msra.mxu0 0
  %1275 = vmatprep.subr.bf16.mxu0 0
  %1276 = vmatpush1.bf16.xpose.msra.mxu0 0
  %1277 = vmatprep.subr.bf16.mxu0 0
  %1278 = vmatpush1.bf16.xpose.msra.mxu0 0
  %1279 = vmatprep.subr.bf16.mxu0 0
  %1280 = vmatpush1.bf16.xpose.msra.mxu0 0
  %1281 = vmatprep.subr.bf16.mxu0 0
  %1282 = vmatpush1.bf16.xpose.msra.mxu0 0
  %1283 = vmatprep.subr.bf16.mxu0 0
  %1284 = vmatpush1.bf16.xpose.msra.mxu0 0
  %1285 = vmatprep.subr.bf16.mxu0 0
  %1286 = vmatpush1.bf16.xpose.msra.mxu0 0
  %1287 = vmatprep.subr.bf16.mxu0 0
  %1288 = vmatpush1.bf16.xpose.msra.mxu0 0
  %1289 = vmatprep.subr.bf16.mxu0 0
  %1290 = vmatpush1.bf16.xpose.msra.mxu0 0
  %1291 = vmatprep.subr.bf16.mxu0 0
  %1292 = vmatpush1.bf16.xpose.msra.mxu0 0
  %1293 = vmatprep.subr.bf16.mxu0 0
  %1294 = vmatpush1.bf16.xpose.msra.mxu0 0
  %1295 = vmatprep.subr.bf16.mxu0 0
  %1296 = vmatpush1.bf16.xpose.msra.mxu0 0
  %1297 = vmatprep.subr.bf16.mxu0 0
  %1298 = vmatpush1.bf16.xpose.msra.mxu0 0
  %1299 = vmatprep.subr.bf16.mxu0 0
  %1300 = vmatpush1.bf16.xpose.msra.mxu0 0
  %1301 = vmatprep.mubr.bf16.mxu0 0
  %1302 = vmatmul.mubr.bf16.gmra.mrb[0].mxu0 %v1264
  %v1303 = vpop.f32.mrb[0].mxu0
  %v1304 = vadd.f32 %v1258, %v1303
  %v1305 = vpop.f32.mrb[0].mxu0
  %v1306 = vpop.f32.mrb[0].mxu0
  %v1307 = vpop.f32.mrb[0].mxu0
  %1308 = vdwg.mxu0
  %v1310 = vsel %vm121, %v1260, 0
  %v1313 = vsel %vm121, %v1262, 0
  %1315 = vmatprep.subr.bf16.mxu0 0
  %1316 = vmatpush1.bf16.xpose.msra.mxu0 %v1313
  %1317 = vmatprep.subr.bf16.mxu0 0
  %1318 = vmatpush1.bf16.xpose.msra.mxu0 0
  %1319 = vmatprep.subr.bf16.mxu0 0
  %1320 = vmatpush1.bf16.xpose.msra.mxu0 0
  %1321 = vmatprep.subr.bf16.mxu0 0
  %1322 = vmatpush1.bf16.xpose.msra.mxu0 0
  %1323 = vmatprep.subr.bf16.mxu0 0
  %1324 = vmatpush1.bf16.xpose.msra.mxu0 0
  %1325 = vmatprep.subr.bf16.mxu0 0
  %1326 = vmatpush1.bf16.xpose.msra.mxu0 0
  %1327 = vmatprep.subr.bf16.mxu0 0
  %1328 = vmatpush1.bf16.xpose.msra.mxu0 0
  %1329 = vmatprep.subr.bf16.mxu0 0
  %1330 = vmatpush1.bf16.xpose.msra.mxu0 0
  %1331 = vmatprep.subr.bf16.mxu0 0
  %1332 = vmatpush1.bf16.xpose.msra.mxu0 0
  %1333 = vmatprep.subr.bf16.mxu0 0
  %1334 = vmatpush1.bf16.xpose.msra.mxu0 0
  %1335 = vmatprep.subr.bf16.mxu0 0
  %1336 = vmatpush1.bf16.xpose.msra.mxu0 0
  %1337 = vmatprep.subr.bf16.mxu0 0
  %1338 = vmatpush1.bf16.xpose.msra.mxu0 0
  %1339 = vmatprep.subr.bf16.mxu0 0
  %1340 = vmatpush1.bf16.xpose.msra.mxu0 0
  %1341 = vmatprep.subr.bf16.mxu0 0
  %1342 = vmatpush1.bf16.xpose.msra.mxu0 0
  %1343 = vmatprep.subr.bf16.mxu0 0
  %1344 = vmatpush1.bf16.xpose.msra.mxu0 0
  %1345 = vmatprep.subr.bf16.mxu0 0
  %1346 = vmatpush1.bf16.xpose.msra.mxu0 0
  %1347 = vmatprep.mubr.bf16.mxu0 0
  %1348 = vmatmul.mubr.bf16.gmra.mrb[0].mxu0 %v1310
  %v1349 = vpop.f32.mrb[0].mxu0
  %v1350 = vadd.f32 %v1258, %v1349
  %v1351 = vpop.f32.mrb[0].mxu0
  %v1352 = vpop.f32.mrb[0].mxu0
  %v1353 = vpop.f32.mrb[0].mxu0
  %1354 = vdwg.mxu0
  %v1355 = vsel %vm1026, %v1304, -inf
  %1356 = vmax.xlane.f32.xlu0 %v1355
  %v1357 = vpop.xlane.xlu0 %1356
  %v1358 = vsel %vm1026, %v1350, -inf
  %1359 = vmax.xlane.f32.xlu0 %v1358
  %v1360 = vpop.xlane.xlu0 %1359
  %v1361 = vsub.f32 %v1304, %v1357
  %v1362 = vsub.f32 %v1350, %v1360
  %v1363 = vmul.f32 %v1361, 1.442695
  %v1364 = vpow.pop %v1363
  %v1365 = vmul.f32 %v1362, 1.442695
  %v1366 = vpow.pop %v1365
  %v1367 = vsel %vm1026, %v1364, 0.0
  %1368 = vadd.xlane.f32.xlu0 %v1367
  %v1369 = vpop.xlane.xlu0 %1368
  %v1370 = vsel %vm1026, %v1366, 0.0
  %1371 = vadd.xlane.f32.xlu0 %v1370
  %v1372 = vpop.xlane.xlu0 %1371
  %v1373 = vrcp.pop %v1369
  %v1374 = vrcp.pop %v1372
  %v1375 = vmul.f32 %v1364, %v1373
  %v1376 = vmul.f32 %v1366, %v1374
  %v1377 = vpack.c.bf16 %v1375, %v1375
  %v1378 = vpack.c.bf16 %v1376, %v1376
  %1380 = vrot.lane.b32.xlu0 %v1261, 96
  %v1381 = vpop.permute.xlu0 %1380
  %v1384 = vsel %vm1026, %v1377, 0
  %1386 = vmatprep.subr.bf16.mxu0 0
  %1387 = vmatpush1.bf16.msra.mxu0 %v1381
  %1388 = vmatprep.subr.bf16.mxu0 0
  %1389 = vmatpush1.bf16.msra.mxu0 0
  %1390 = vmatprep.subr.bf16.mxu0 0
  %1391 = vmatpush1.bf16.msra.mxu0 0
  %1392 = vmatprep.subr.bf16.mxu0 0
  %1393 = vmatpush1.bf16.msra.mxu0 0
  %1394 = vmatprep.subr.bf16.mxu0 0
  %1395 = vmatpush1.bf16.msra.mxu0 0
  %1396 = vmatprep.subr.bf16.mxu0 0
  %1397 = vmatpush1.bf16.msra.mxu0 0
  %1398 = vmatprep.subr.bf16.mxu0 0
  %1399 = vmatpush1.bf16.msra.mxu0 0
  %1400 = vmatprep.subr.bf16.mxu0 0
  %1401 = vmatpush1.bf16.msra.mxu0 0
  %1402 = vmatprep.subr.bf16.mxu0 0
  %1403 = vmatpush1.bf16.msra.mxu0 0
  %1404 = vmatprep.subr.bf16.mxu0 0
  %1405 = vmatpush1.bf16.msra.mxu0 0
  %1406 = vmatprep.subr.bf16.mxu0 0
  %1407 = vmatpush1.bf16.msra.mxu0 0
  %1408 = vmatprep.subr.bf16.mxu0 0
  %1409 = vmatpush1.bf16.msra.mxu0 0
  %1410 = vmatprep.subr.bf16.mxu0 0
  %1411 = vmatpush1.bf16.msra.mxu0 0
  %1412 = vmatprep.subr.bf16.mxu0 0
  %1413 = vmatpush1.bf16.msra.mxu0 0
  %1414 = vmatprep.subr.bf16.mxu0 0
  %1415 = vmatpush1.bf16.msra.mxu0 0
  %1416 = vmatprep.subr.bf16.mxu0 0
  %1417 = vmatpush1.bf16.msra.mxu0 0
  %1418 = vmatprep.mubr.bf16.mxu0 0
  %1419 = vmatmul.mubr.bf16.gmra.mrb[0].mxu0 %v1384
  %v1420 = vpop.f32.mrb[0].mxu0
  %v1421 = vadd.f32 0.0, %v1420
  %v1422 = vpop.f32.mrb[0].mxu0
  %v1423 = vpop.f32.mrb[0].mxu0
  %v1424 = vpop.f32.mrb[0].mxu0
  %1425 = vdwg.mxu0
  %1427 = vrot.lane.b32.xlu0 %v1262, 96
  %v1428 = vpop.permute.xlu0 %1427
  %v1431 = vsel %vm1026, %v1378, 0
  %1433 = vmatprep.subr.bf16.mxu0 0
  %1434 = vmatpush1.bf16.msra.mxu0 %v1428
  %1435 = vmatprep.subr.bf16.mxu0 0
  %1436 = vmatpush1.bf16.msra.mxu0 0
  %1437 = vmatprep.subr.bf16.mxu0 0
  %1438 = vmatpush1.bf16.msra.mxu0 0
  %1439 = vmatprep.subr.bf16.mxu0 0
  %1440 = vmatpush1.bf16.msra.mxu0 0
  %1441 = vmatprep.subr.bf16.mxu0 0
  %1442 = vmatpush1.bf16.msra.mxu0 0
  %1443 = vmatprep.subr.bf16.mxu0 0
  %1444 = vmatpush1.bf16.msra.mxu0 0
  %1445 = vmatprep.subr.bf16.mxu0 0
  %1446 = vmatpush1.bf16.msra.mxu0 0
  %1447 = vmatprep.subr.bf16.mxu0 0
  %1448 = vmatpush1.bf16.msra.mxu0 0
  %1449 = vmatprep.subr.bf16.mxu0 0
  %1450 = vmatpush1.bf16.msra.mxu0 0
  %1451 = vmatprep.subr.bf16.mxu0 0
  %1452 = vmatpush1.bf16.msra.mxu0 0
  %1453 = vmatprep.subr.bf16.mxu0 0
  %1454 = vmatpush1.bf16.msra.mxu0 0
  %1455 = vmatprep.subr.bf16.mxu0 0
  %1456 = vmatpush1.bf16.msra.mxu0 0
  %1457 = vmatprep.subr.bf16.mxu0 0
  %1458 = vmatpush1.bf16.msra.mxu0 0
  %1459 = vmatprep.subr.bf16.mxu0 0
  %1460 = vmatpush1.bf16.msra.mxu0 0
  %1461 = vmatprep.subr.bf16.mxu0 0
  %1462 = vmatpush1.bf16.msra.mxu0 0
  %1463 = vmatprep.subr.bf16.mxu0 0
  %1464 = vmatpush1.bf16.msra.mxu0 0
  %1465 = vmatprep.mubr.bf16.mxu0 0
  %1466 = vmatmul.mubr.bf16.gmra.mrb[0].mxu0 %v1431
  %v1467 = vpop.f32.mrb[0].mxu0
  %v1468 = vadd.f32 0.0, %v1467
  %v1469 = vpop.f32.mrb[0].mxu0
  %v1470 = vpop.f32.mrb[0].mxu0
  %v1471 = vpop.f32.mrb[0].mxu0
  %1472 = vdwg.mxu0
  %1474 = vrot.lane.b32.xlu0 %v1259, 120
  %v1475 = vpop.permute.xlu0 %1474
  %1476 = vrot.lane.b32.xlu0 %v1261, 120
  %v1477 = vpop.permute.xlu0 %1476
  %v1479 = vsel %vm121, %v1475, 0
  %v1482 = vsel %vm121, %v1477, 0
  %1484 = vmatprep.subr.bf16.mxu0 0
  %1485 = vmatpush1.bf16.xpose.msra.mxu0 %v1482
  %1486 = vmatprep.subr.bf16.mxu0 0
  %1487 = vmatpush1.bf16.xpose.msra.mxu0 0
  %1488 = vmatprep.subr.bf16.mxu0 0
  %1489 = vmatpush1.bf16.xpose.msra.mxu0 0
  %1490 = vmatprep.subr.bf16.mxu0 0
  %1491 = vmatpush1.bf16.xpose.msra.mxu0 0
  %1492 = vmatprep.subr.bf16.mxu0 0
  %1493 = vmatpush1.bf16.xpose.msra.mxu0 0
  %1494 = vmatprep.subr.bf16.mxu0 0
  %1495 = vmatpush1.bf16.xpose.msra.mxu0 0
  %1496 = vmatprep.subr.bf16.mxu0 0
  %1497 = vmatpush1.bf16.xpose.msra.mxu0 0
  %1498 = vmatprep.subr.bf16.mxu0 0
  %1499 = vmatpush1.bf16.xpose.msra.mxu0 0
  %1500 = vmatprep.subr.bf16.mxu0 0
  %1501 = vmatpush1.bf16.xpose.msra.mxu0 0
  %1502 = vmatprep.subr.bf16.mxu0 0
  %1503 = vmatpush1.bf16.xpose.msra.mxu0 0
  %1504 = vmatprep.subr.bf16.mxu0 0
  %1505 = vmatpush1.bf16.xpose.msra.mxu0 0
  %1506 = vmatprep.subr.bf16.mxu0 0
  %1507 = vmatpush1.bf16.xpose.msra.mxu0 0
  %1508 = vmatprep.subr.bf16.mxu0 0
  %1509 = vmatpush1.bf16.xpose.msra.mxu0 0
  %1510 = vmatprep.subr.bf16.mxu0 0
  %1511 = vmatpush1.bf16.xpose.msra.mxu0 0
  %1512 = vmatprep.subr.bf16.mxu0 0
  %1513 = vmatpush1.bf16.xpose.msra.mxu0 0
  %1514 = vmatprep.subr.bf16.mxu0 0
  %1515 = vmatpush1.bf16.xpose.msra.mxu0 0
  %1516 = vmatprep.mubr.bf16.mxu0 0
  %1517 = vmatmul.mubr.bf16.gmra.mrb[0].mxu0 %v1479
  %v1518 = vpop.f32.mrb[0].mxu0
  %v1519 = vadd.f32 %v1258, %v1518
  %v1520 = vpop.f32.mrb[0].mxu0
  %v1521 = vpop.f32.mrb[0].mxu0
  %v1522 = vpop.f32.mrb[0].mxu0
  %1523 = vdwg.mxu0
  %1525 = vrot.lane.b32.xlu0 %v1260, 120
  %v1526 = vpop.permute.xlu0 %1525
  %1527 = vrot.lane.b32.xlu0 %v1262, 120
  %v1528 = vpop.permute.xlu0 %1527
  %v1530 = vsel %vm121, %v1526, 0
  %v1533 = vsel %vm121, %v1528, 0
  %1535 = vmatprep.subr.bf16.mxu0 0
  %1536 = vmatpush1.bf16.xpose.msra.mxu0 %v1533
  %1537 = vmatprep.subr.bf16.mxu0 0
  %1538 = vmatpush1.bf16.xpose.msra.mxu0 0
  %1539 = vmatprep.subr.bf16.mxu0 0
  %1540 = vmatpush1.bf16.xpose.msra.mxu0 0
  %1541 = vmatprep.subr.bf16.mxu0 0
  %1542 = vmatpush1.bf16.xpose.msra.mxu0 0
  %1543 = vmatprep.subr.bf16.mxu0 0
  %1544 = vmatpush1.bf16.xpose.msra.mxu0 0
  %1545 = vmatprep.subr.bf16.mxu0 0
  %1546 = vmatpush1.bf16.xpose.msra.mxu0 0
  %1547 = vmatprep.subr.bf16.mxu0 0
  %1548 = vmatpush1.bf16.xpose.msra.mxu0 0
  %1549 = vmatprep.subr.bf16.mxu0 0
  %1550 = vmatpush1.bf16.xpose.msra.mxu0 0
  %1551 = vmatprep.subr.bf16.mxu0 0
  %1552 = vmatpush1.bf16.xpose.msra.mxu0 0
  %1553 = vmatprep.subr.bf16.mxu0 0
  %1554 = vmatpush1.bf16.xpose.msra.mxu0 0
  %1555 = vmatprep.subr.bf16.mxu0 0
  %1556 = vmatpush1.bf16.xpose.msra.mxu0 0
  %1557 = vmatprep.subr.bf16.mxu0 0
  %1558 = vmatpush1.bf16.xpose.msra.mxu0 0
  %1559 = vmatprep.subr.bf16.mxu0 0
  %1560 = vmatpush1.bf16.xpose.msra.mxu0 0
  %1561 = vmatprep.subr.bf16.mxu0 0
  %1562 = vmatpush1.bf16.xpose.msra.mxu0 0
  %1563 = vmatprep.subr.bf16.mxu0 0
  %1564 = vmatpush1.bf16.xpose.msra.mxu0 0
  %1565 = vmatprep.subr.bf16.mxu0 0
  %1566 = vmatpush1.bf16.xpose.msra.mxu0 0
  %1567 = vmatprep.mubr.bf16.mxu0 0
  %1568 = vmatmul.mubr.bf16.gmra.mrb[0].mxu0 %v1530
  %v1569 = vpop.f32.mrb[0].mxu0
  %v1570 = vadd.f32 %v1258, %v1569
  %v1571 = vpop.f32.mrb[0].mxu0
  %v1572 = vpop.f32.mrb[0].mxu0
  %v1573 = vpop.f32.mrb[0].mxu0
  %1574 = vdwg.mxu0
  %v1575 = vsel %vm1026, %v1519, -inf
  %1576 = vmax.xlane.f32.xlu0 %v1575
  %v1577 = vpop.xlane.xlu0 %1576
  %v1578 = vsel %vm1026, %v1570, -inf
  %1579 = vmax.xlane.f32.xlu0 %v1578
  %v1580 = vpop.xlane.xlu0 %1579
  %v1581 = vsub.f32 %v1519, %v1577
  %v1582 = vsub.f32 %v1570, %v1580
  %v1583 = vmul.f32 %v1581, 1.442695
  %v1584 = vpow.pop %v1583
  %v1585 = vmul.f32 %v1582, 1.442695
  %v1586 = vpow.pop %v1585
  %v1587 = vsel %vm1026, %v1584, 0.0
  %1588 = vadd.xlane.f32.xlu0 %v1587
  %v1589 = vpop.xlane.xlu0 %1588
  %v1590 = vsel %vm1026, %v1586, 0.0
  %1591 = vadd.xlane.f32.xlu0 %v1590
  %v1592 = vpop.xlane.xlu0 %1591
  %v1593 = vrcp.pop %v1589
  %v1594 = vrcp.pop %v1592
  %v1595 = vmul.f32 %v1584, %v1593
  %v1596 = vmul.f32 %v1586, %v1594
  %v1597 = vpack.c.bf16 %v1595, %v1595
  %v1598 = vpack.c.bf16 %v1596, %v1596
  %1599 = vrot.lane.b32.xlu0 %v1261, 88
  %v1600 = vpop.permute.xlu0 %1599
  %v1603 = vsel %vm1026, %v1597, 0
  %1605 = vmatprep.subr.bf16.mxu0 0
  %1606 = vmatpush1.bf16.msra.mxu0 %v1600
  %1607 = vmatprep.subr.bf16.mxu0 0
  %1608 = vmatpush1.bf16.msra.mxu0 0
  %1609 = vmatprep.subr.bf16.mxu0 0
  %1610 = vmatpush1.bf16.msra.mxu0 0
  %1611 = vmatprep.subr.bf16.mxu0 0
  %1612 = vmatpush1.bf16.msra.mxu0 0
  %1613 = vmatprep.subr.bf16.mxu0 0
  %1614 = vmatpush1.bf16.msra.mxu0 0
  %1615 = vmatprep.subr.bf16.mxu0 0
  %1616 = vmatpush1.bf16.msra.mxu0 0
  %1617 = vmatprep.subr.bf16.mxu0 0
  %1618 = vmatpush1.bf16.msra.mxu0 0
  %1619 = vmatprep.subr.bf16.mxu0 0
  %1620 = vmatpush1.bf16.msra.mxu0 0
  %1621 = vmatprep.subr.bf16.mxu0 0
  %1622 = vmatpush1.bf16.msra.mxu0 0
  %1623 = vmatprep.subr.bf16.mxu0 0
  %1624 = vmatpush1.bf16.msra.mxu0 0
  %1625 = vmatprep.subr.bf16.mxu0 0
  %1626 = vmatpush1.bf16.msra.mxu0 0
  %1627 = vmatprep.subr.bf16.mxu0 0
  %1628 = vmatpush1.bf16.msra.mxu0 0
  %1629 = vmatprep.subr.bf16.mxu0 0
  %1630 = vmatpush1.bf16.msra.mxu0 0
  %1631 = vmatprep.subr.bf16.mxu0 0
  %1632 = vmatpush1.bf16.msra.mxu0 0
  %1633 = vmatprep.subr.bf16.mxu0 0
  %1634 = vmatpush1.bf16.msra.mxu0 0
  %1635 = vmatprep.subr.bf16.mxu0 0
  %1636 = vmatpush1.bf16.msra.mxu0 0
  %1637 = vmatprep.mubr.bf16.mxu0 0
  %1638 = vmatmul.mubr.bf16.gmra.mrb[0].mxu0 %v1603
  %v1639 = vpop.f32.mrb[0].mxu0
  %v1640 = vadd.f32 0.0, %v1639
  %v1641 = vpop.f32.mrb[0].mxu0
  %v1642 = vpop.f32.mrb[0].mxu0
  %v1643 = vpop.f32.mrb[0].mxu0
  %1644 = vdwg.mxu0
  %1645 = vrot.lane.b32.xlu0 %v1262, 88
  %v1646 = vpop.permute.xlu0 %1645
  %v1649 = vsel %vm1026, %v1598, 0
  %1651 = vmatprep.subr.bf16.mxu0 0
  %1652 = vmatpush1.bf16.msra.mxu0 %v1646
  %1653 = vmatprep.subr.bf16.mxu0 0
  %1654 = vmatpush1.bf16.msra.mxu0 0
  %1655 = vmatprep.subr.bf16.mxu0 0
  %1656 = vmatpush1.bf16.msra.mxu0 0
  %1657 = vmatprep.subr.bf16.mxu0 0
  %1658 = vmatpush1.bf16.msra.mxu0 0
  %1659 = vmatprep.subr.bf16.mxu0 0
  %1660 = vmatpush1.bf16.msra.mxu0 0
  %1661 = vmatprep.subr.bf16.mxu0 0
  %1662 = vmatpush1.bf16.msra.mxu0 0
  %1663 = vmatprep.subr.bf16.mxu0 0
  %1664 = vmatpush1.bf16.msra.mxu0 0
  %1665 = vmatprep.subr.bf16.mxu0 0
  %1666 = vmatpush1.bf16.msra.mxu0 0
  %1667 = vmatprep.subr.bf16.mxu0 0
  %1668 = vmatpush1.bf16.msra.mxu0 0
  %1669 = vmatprep.subr.bf16.mxu0 0
  %1670 = vmatpush1.bf16.msra.mxu0 0
  %1671 = vmatprep.subr.bf16.mxu0 0
  %1672 = vmatpush1.bf16.msra.mxu0 0
  %1673 = vmatprep.subr.bf16.mxu0 0
  %1674 = vmatpush1.bf16.msra.mxu0 0
  %1675 = vmatprep.subr.bf16.mxu0 0
  %1676 = vmatpush1.bf16.msra.mxu0 0
  %1677 = vmatprep.subr.bf16.mxu0 0
  %1678 = vmatpush1.bf16.msra.mxu0 0
  %1679 = vmatprep.subr.bf16.mxu0 0
  %1680 = vmatpush1.bf16.msra.mxu0 0
  %1681 = vmatprep.subr.bf16.mxu0 0
  %1682 = vmatpush1.bf16.msra.mxu0 0
  %1683 = vmatprep.mubr.bf16.mxu0 0
  %1684 = vmatmul.mubr.bf16.gmra.mrb[0].mxu0 %v1649
  %v1685 = vpop.f32.mrb[0].mxu0
  %v1686 = vadd.f32 0.0, %v1685
  %v1687 = vpop.f32.mrb[0].mxu0
  %v1688 = vpop.f32.mrb[0].mxu0
  %v1689 = vpop.f32.mrb[0].mxu0
  %1690 = vdwg.mxu0
  %1691 = vrot.lane.b32.xlu0 %v1259, 112
  %v1692 = vpop.permute.xlu0 %1691
  %1693 = vrot.lane.b32.xlu0 %v1261, 112
  %v1694 = vpop.permute.xlu0 %1693
  %v1696 = vsel %vm121, %v1692, 0
  %v1699 = vsel %vm121, %v1694, 0
  %1701 = vmatprep.subr.bf16.mxu0 0
  %1702 = vmatpush1.bf16.xpose.msra.mxu0 %v1699
  %1703 = vmatprep.subr.bf16.mxu0 0
  %1704 = vmatpush1.bf16.xpose.msra.mxu0 0
  %1705 = vmatprep.subr.bf16.mxu0 0
  %1706 = vmatpush1.bf16.xpose.msra.mxu0 0
  %1707 = vmatprep.subr.bf16.mxu0 0
  %1708 = vmatpush1.bf16.xpose.msra.mxu0 0
  %1709 = vmatprep.subr.bf16.mxu0 0
  %1710 = vmatpush1.bf16.xpose.msra.mxu0 0
  %1711 = vmatprep.subr.bf16.mxu0 0
  %1712 = vmatpush1.bf16.xpose.msra.mxu0 0
  %1713 = vmatprep.subr.bf16.mxu0 0
  %1714 = vmatpush1.bf16.xpose.msra.mxu0 0
  %1715 = vmatprep.subr.bf16.mxu0 0
  %1716 = vmatpush1.bf16.xpose.msra.mxu0 0
  %1717 = vmatprep.subr.bf16.mxu0 0
  %1718 = vmatpush1.bf16.xpose.msra.mxu0 0
  %1719 = vmatprep.subr.bf16.mxu0 0
  %1720 = vmatpush1.bf16.xpose.msra.mxu0 0
  %1721 = vmatprep.subr.bf16.mxu0 0
  %1722 = vmatpush1.bf16.xpose.msra.mxu0 0
  %1723 = vmatprep.subr.bf16.mxu0 0
  %1724 = vmatpush1.bf16.xpose.msra.mxu0 0
  %1725 = vmatprep.subr.bf16.mxu0 0
  %1726 = vmatpush1.bf16.xpose.msra.mxu0 0
  %1727 = vmatprep.subr.bf16.mxu0 0
  %1728 = vmatpush1.bf16.xpose.msra.mxu0 0
  %1729 = vmatprep.subr.bf16.mxu0 0
  %1730 = vmatpush1.bf16.xpose.msra.mxu0 0
  %1731 = vmatprep.subr.bf16.mxu0 0
  %1732 = vmatpush1.bf16.xpose.msra.mxu0 0
  %1733 = vmatprep.mubr.bf16.mxu0 0
  %1734 = vmatmul.mubr.bf16.gmra.mrb[0].mxu0 %v1696
  %v1735 = vpop.f32.mrb[0].mxu0
  %v1736 = vadd.f32 %v1258, %v1735
  %v1737 = vpop.f32.mrb[0].mxu0
  %v1738 = vpop.f32.mrb[0].mxu0
  %v1739 = vpop.f32.mrb[0].mxu0
  %1740 = vdwg.mxu0
  %1741 = vrot.lane.b32.xlu0 %v1260, 112
  %v1742 = vpop.permute.xlu0 %1741
  %1743 = vrot.lane.b32.xlu0 %v1262, 112
  %v1744 = vpop.permute.xlu0 %1743
  %v1746 = vsel %vm121, %v1742, 0
  %v1749 = vsel %vm121, %v1744, 0
  %1751 = vmatprep.subr.bf16.mxu0 0
  %1752 = vmatpush1.bf16.xpose.msra.mxu0 %v1749
  %1753 = vmatprep.subr.bf16.mxu0 0
  %1754 = vmatpush1.bf16.xpose.msra.mxu0 0
  %1755 = vmatprep.subr.bf16.mxu0 0
  %1756 = vmatpush1.bf16.xpose.msra.mxu0 0
  %1757 = vmatprep.subr.bf16.mxu0 0
  %1758 = vmatpush1.bf16.xpose.msra.mxu0 0
  %1759 = vmatprep.subr.bf16.mxu0 0
  %1760 = vmatpush1.bf16.xpose.msra.mxu0 0
  %1761 = vmatprep.subr.bf16.mxu0 0
  %1762 = vmatpush1.bf16.xpose.msra.mxu0 0
  %1763 = vmatprep.subr.bf16.mxu0 0
  %1764 = vmatpush1.bf16.xpose.msra.mxu0 0
  %1765 = vmatprep.subr.bf16.mxu0 0
  %1766 = vmatpush1.bf16.xpose.msra.mxu0 0
  %1767 = vmatprep.subr.bf16.mxu0 0
  %1768 = vmatpush1.bf16.xpose.msra.mxu0 0
  %1769 = vmatprep.subr.bf16.mxu0 0
  %1770 = vmatpush1.bf16.xpose.msra.mxu0 0
  %1771 = vmatprep.subr.bf16.mxu0 0
  %1772 = vmatpush1.bf16.xpose.msra.mxu0 0
  %1773 = vmatprep.subr.bf16.mxu0 0
  %1774 = vmatpush1.bf16.xpose.msra.mxu0 0
  %1775 = vmatprep.subr.bf16.mxu0 0
  %1776 = vmatpush1.bf16.xpose.msra.mxu0 0
  %1777 = vmatprep.subr.bf16.mxu0 0
  %1778 = vmatpush1.bf16.xpose.msra.mxu0 0
  %1779 = vmatprep.subr.bf16.mxu0 0
  %1780 = vmatpush1.bf16.xpose.msra.mxu0 0
  %1781 = vmatprep.subr.bf16.mxu0 0
  %1782 = vmatpush1.bf16.xpose.msra.mxu0 0
  %1783 = vmatprep.mubr.bf16.mxu0 0
  %1784 = vmatmul.mubr.bf16.gmra.mrb[0].mxu0 %v1746
  %v1785 = vpop.f32.mrb[0].mxu0
  %v1786 = vadd.f32 %v1258, %v1785
  %v1787 = vpop.f32.mrb[0].mxu0
  %v1788 = vpop.f32.mrb[0].mxu0
  %v1789 = vpop.f32.mrb[0].mxu0
  %1790 = vdwg.mxu0
  %v1791 = vsel %vm1026, %v1736, -inf
  %1792 = vmax.xlane.f32.xlu0 %v1791
  %v1793 = vpop.xlane.xlu0 %1792
  %v1794 = vsel %vm1026, %v1786, -inf
  %1795 = vmax.xlane.f32.xlu0 %v1794
  %v1796 = vpop.xlane.xlu0 %1795
  %v1797 = vsub.f32 %v1736, %v1793
  %v1798 = vsub.f32 %v1786, %v1796
  %v1799 = vmul.f32 %v1797, 1.442695
  %v1800 = vpow.pop %v1799
  %v1801 = vmul.f32 %v1798, 1.442695
  %v1802 = vpow.pop %v1801
  %v1803 = vsel %vm1026, %v1800, 0.0
  %1804 = vadd.xlane.f32.xlu0 %v1803
  %v1805 = vpop.xlane.xlu0 %1804
  %v1806 = vsel %vm1026, %v1802, 0.0
  %1807 = vadd.xlane.f32.xlu0 %v1806
  %v1808 = vpop.xlane.xlu0 %1807
  %v1809 = vrcp.pop %v1805
  %v1810 = vrcp.pop %v1808
  %v1811 = vmul.f32 %v1800, %v1809
  %v1812 = vmul.f32 %v1802, %v1810
  %v1813 = vpack.c.bf16 %v1811, %v1811
  %v1814 = vpack.c.bf16 %v1812, %v1812
  %1815 = vrot.lane.b32.xlu0 %v1261, 80
  %v1816 = vpop.permute.xlu0 %1815
  %v1819 = vsel %vm1026, %v1813, 0
  %1821 = vmatprep.subr.bf16.mxu0 0
  %1822 = vmatpush1.bf16.msra.mxu0 %v1816
  %1823 = vmatprep.subr.bf16.mxu0 0
  %1824 = vmatpush1.bf16.msra.mxu0 0
  %1825 = vmatprep.subr.bf16.mxu0 0
  %1826 = vmatpush1.bf16.msra.mxu0 0
  %1827 = vmatprep.subr.bf16.mxu0 0
  %1828 = vmatpush1.bf16.msra.mxu0 0
  %1829 = vmatprep.subr.bf16.mxu0 0
  %1830 = vmatpush1.bf16.msra.mxu0 0
  %1831 = vmatprep.subr.bf16.mxu0 0
  %1832 = vmatpush1.bf16.msra.mxu0 0
  %1833 = vmatprep.subr.bf16.mxu0 0
  %1834 = vmatpush1.bf16.msra.mxu0 0
  %1835 = vmatprep.subr.bf16.mxu0 0
  %1836 = vmatpush1.bf16.msra.mxu0 0
  %1837 = vmatprep.subr.bf16.mxu0 0
  %1838 = vmatpush1.bf16.msra.mxu0 0
  %1839 = vmatprep.subr.bf16.mxu0 0
  %1840 = vmatpush1.bf16.msra.mxu0 0
  %1841 = vmatprep.subr.bf16.mxu0 0
  %1842 = vmatpush1.bf16.msra.mxu0 0
  %1843 = vmatprep.subr.bf16.mxu0 0
  %1844 = vmatpush1.bf16.msra.mxu0 0
  %1845 = vmatprep.subr.bf16.mxu0 0
  %1846 = vmatpush1.bf16.msra.mxu0 0
  %1847 = vmatprep.subr.bf16.mxu0 0
  %1848 = vmatpush1.bf16.msra.mxu0 0
  %1849 = vmatprep.subr.bf16.mxu0 0
  %1850 = vmatpush1.bf16.msra.mxu0 0
  %1851 = vmatprep.subr.bf16.mxu0 0
  %1852 = vmatpush1.bf16.msra.mxu0 0
  %1853 = vmatprep.mubr.bf16.mxu0 0
  %1854 = vmatmul.mubr.bf16.gmra.mrb[0].mxu0 %v1819
  %v1855 = vpop.f32.mrb[0].mxu0
  %v1856 = vadd.f32 0.0, %v1855
  %v1857 = vpop.f32.mrb[0].mxu0
  %v1858 = vpop.f32.mrb[0].mxu0
  %v1859 = vpop.f32.mrb[0].mxu0
  %1860 = vdwg.mxu0
  %1861 = vrot.lane.b32.xlu0 %v1262, 80
  %v1862 = vpop.permute.xlu0 %1861
  %v1865 = vsel %vm1026, %v1814, 0
  %1867 = vmatprep.subr.bf16.mxu0 0
  %1868 = vmatpush1.bf16.msra.mxu0 %v1862
  %1869 = vmatprep.subr.bf16.mxu0 0
  %1870 = vmatpush1.bf16.msra.mxu0 0
  %1871 = vmatprep.subr.bf16.mxu0 0
  %1872 = vmatpush1.bf16.msra.mxu0 0
  %1873 = vmatprep.subr.bf16.mxu0 0
  %1874 = vmatpush1.bf16.msra.mxu0 0
  %1875 = vmatprep.subr.bf16.mxu0 0
  %1876 = vmatpush1.bf16.msra.mxu0 0
  %1877 = vmatprep.subr.bf16.mxu0 0
  %1878 = vmatpush1.bf16.msra.mxu0 0
  %1879 = vmatprep.subr.bf16.mxu0 0
  %1880 = vmatpush1.bf16.msra.mxu0 0
  %1881 = vmatprep.subr.bf16.mxu0 0
  %1882 = vmatpush1.bf16.msra.mxu0 0
  %1883 = vmatprep.subr.bf16.mxu0 0
  %1884 = vmatpush1.bf16.msra.mxu0 0
  %1885 = vmatprep.subr.bf16.mxu0 0
  %1886 = vmatpush1.bf16.msra.mxu0 0
  %1887 = vmatprep.subr.bf16.mxu0 0
  %1888 = vmatpush1.bf16.msra.mxu0 0
  %1889 = vmatprep.subr.bf16.mxu0 0
  %1890 = vmatpush1.bf16.msra.mxu0 0
  %1891 = vmatprep.subr.bf16.mxu0 0
  %1892 = vmatpush1.bf16.msra.mxu0 0
  %1893 = vmatprep.subr.bf16.mxu0 0
  %1894 = vmatpush1.bf16.msra.mxu0 0
  %1895 = vmatprep.subr.bf16.mxu0 0
  %1896 = vmatpush1.bf16.msra.mxu0 0
  %1897 = vmatprep.subr.bf16.mxu0 0
  %1898 = vmatpush1.bf16.msra.mxu0 0
  %1899 = vmatprep.mubr.bf16.mxu0 0
  %1900 = vmatmul.mubr.bf16.gmra.mrb[0].mxu0 %v1865
  %v1901 = vpop.f32.mrb[0].mxu0
  %v1902 = vadd.f32 0.0, %v1901
  %v1903 = vpop.f32.mrb[0].mxu0
  %v1904 = vpop.f32.mrb[0].mxu0
  %v1905 = vpop.f32.mrb[0].mxu0
  %1906 = vdwg.mxu0
  %1907 = vrot.lane.b32.xlu0 %v1259, 104
  %v1908 = vpop.permute.xlu0 %1907
  %1909 = vrot.lane.b32.xlu0 %v1261, 104
  %v1910 = vpop.permute.xlu0 %1909
  %v1912 = vsel %vm121, %v1908, 0
  %v1915 = vsel %vm121, %v1910, 0
  %1917 = vmatprep.subr.bf16.mxu0 0
  %1918 = vmatpush1.bf16.xpose.msra.mxu0 %v1915
  %1919 = vmatprep.subr.bf16.mxu0 0
  %1920 = vmatpush1.bf16.xpose.msra.mxu0 0
  %1921 = vmatprep.subr.bf16.mxu0 0
  %1922 = vmatpush1.bf16.xpose.msra.mxu0 0
  %1923 = vmatprep.subr.bf16.mxu0 0
  %1924 = vmatpush1.bf16.xpose.msra.mxu0 0
  %1925 = vmatprep.subr.bf16.mxu0 0
  %1926 = vmatpush1.bf16.xpose.msra.mxu0 0
  %1927 = vmatprep.subr.bf16.mxu0 0
  %1928 = vmatpush1.bf16.xpose.msra.mxu0 0
  %1929 = vmatprep.subr.bf16.mxu0 0
  %1930 = vmatpush1.bf16.xpose.msra.mxu0 0
  %1931 = vmatprep.subr.bf16.mxu0 0
  %1932 = vmatpush1.bf16.xpose.msra.mxu0 0
  %1933 = vmatprep.subr.bf16.mxu0 0
  %1934 = vmatpush1.bf16.xpose.msra.mxu0 0
  %1935 = vmatprep.subr.bf16.mxu0 0
  %1936 = vmatpush1.bf16.xpose.msra.mxu0 0
  %1937 = vmatprep.subr.bf16.mxu0 0
  %1938 = vmatpush1.bf16.xpose.msra.mxu0 0
  %1939 = vmatprep.subr.bf16.mxu0 0
  %1940 = vmatpush1.bf16.xpose.msra.mxu0 0
  %1941 = vmatprep.subr.bf16.mxu0 0
  %1942 = vmatpush1.bf16.xpose.msra.mxu0 0
  %1943 = vmatprep.subr.bf16.mxu0 0
  %1944 = vmatpush1.bf16.xpose.msra.mxu0 0
  %1945 = vmatprep.subr.bf16.mxu0 0
  %1946 = vmatpush1.bf16.xpose.msra.mxu0 0
  %1947 = vmatprep.subr.bf16.mxu0 0
  %1948 = vmatpush1.bf16.xpose.msra.mxu0 0
  %1949 = vmatprep.mubr.bf16.mxu0 0
  %1950 = vmatmul.mubr.bf16.gmra.mrb[0].mxu0 %v1912
  %v1951 = vpop.f32.mrb[0].mxu0
  %v1952 = vadd.f32 %v1258, %v1951
  %v1953 = vpop.f32.mrb[0].mxu0
  %v1954 = vpop.f32.mrb[0].mxu0
  %v1955 = vpop.f32.mrb[0].mxu0
  %1956 = vdwg.mxu0
  %1957 = vrot.lane.b32.xlu0 %v1260, 104
  %v1958 = vpop.permute.xlu0 %1957
  %1959 = vrot.lane.b32.xlu0 %v1262, 104
  %v1960 = vpop.permute.xlu0 %1959
  %v1962 = vsel %vm121, %v1958, 0
  %v1965 = vsel %vm121, %v1960, 0
  %1967 = vmatprep.subr.bf16.mxu0 0
  %1968 = vmatpush1.bf16.xpose.msra.mxu0 %v1965
  %1969 = vmatprep.subr.bf16.mxu0 0
  %1970 = vmatpush1.bf16.xpose.msra.mxu0 0
  %1971 = vmatprep.subr.bf16.mxu0 0
  %1972 = vmatpush1.bf16.xpose.msra.mxu0 0
  %1973 = vmatprep.subr.bf16.mxu0 0
  %1974 = vmatpush1.bf16.xpose.msra.mxu0 0
  %1975 = vmatprep.subr.bf16.mxu0 0
  %1976 = vmatpush1.bf16.xpose.msra.mxu0 0
  %1977 = vmatprep.subr.bf16.mxu0 0
  %1978 = vmatpush1.bf16.xpose.msra.mxu0 0
  %1979 = vmatprep.subr.bf16.mxu0 0
  %1980 = vmatpush1.bf16.xpose.msra.mxu0 0
  %1981 = vmatprep.subr.bf16.mxu0 0
  %1982 = vmatpush1.bf16.xpose.msra.mxu0 0
  %1983 = vmatprep.subr.bf16.mxu0 0
  %1984 = vmatpush1.bf16.xpose.msra.mxu0 0
  %1985 = vmatprep.subr.bf16.mxu0 0
  %1986 = vmatpush1.bf16.xpose.msra.mxu0 0
  %1987 = vmatprep.subr.bf16.mxu0 0
  %1988 = vmatpush1.bf16.xpose.msra.mxu0 0
  %1989 = vmatprep.subr.bf16.mxu0 0
  %1990 = vmatpush1.bf16.xpose.msra.mxu0 0
  %1991 = vmatprep.subr.bf16.mxu0 0
  %1992 = vmatpush1.bf16.xpose.msra.mxu0 0
  %1993 = vmatprep.subr.bf16.mxu0 0
  %1994 = vmatpush1.bf16.xpose.msra.mxu0 0
  %1995 = vmatprep.subr.bf16.mxu0 0
  %1996 = vmatpush1.bf16.xpose.msra.mxu0 0
  %1997 = vmatprep.subr.bf16.mxu0 0
  %1998 = vmatpush1.bf16.xpose.msra.mxu0 0
  %1999 = vmatprep.mubr.bf16.mxu0 0
  %2000 = vmatmul.mubr.bf16.gmra.mrb[0].mxu0 %v1962
  %v2001 = vpop.f32.mrb[0].mxu0
  %v2002 = vadd.f32 %v1258, %v2001
  %v2003 = vpop.f32.mrb[0].mxu0
  %v2004 = vpop.f32.mrb[0].mxu0
  %v2005 = vpop.f32.mrb[0].mxu0
  %2006 = vdwg.mxu0
  %v2007 = vsel %vm1026, %v1952, -inf
  %2008 = vmax.xlane.f32.xlu0 %v2007
  %v2009 = vpop.xlane.xlu0 %2008
  %v2010 = vsel %vm1026, %v2002, -inf
  %2011 = vmax.xlane.f32.xlu0 %v2010
  %v2012 = vpop.xlane.xlu0 %2011
  %v2013 = vsub.f32 %v1952, %v2009
  %v2014 = vsub.f32 %v2002, %v2012
  %v2015 = vmul.f32 %v2013, 1.442695
  %v2016 = vpow.pop %v2015
  %v2017 = vmul.f32 %v2014, 1.442695
  %v2018 = vpow.pop %v2017
  %v2019 = vsel %vm1026, %v2016, 0.0
  %2020 = vadd.xlane.f32.xlu0 %v2019
  %v2021 = vpop.xlane.xlu0 %2020
  %v2022 = vsel %vm1026, %v2018, 0.0
  %2023 = vadd.xlane.f32.xlu0 %v2022
  %v2024 = vpop.xlane.xlu0 %2023
  %v2025 = vrcp.pop %v2021
  %v2026 = vrcp.pop %v2024
  %v2027 = vmul.f32 %v2016, %v2025
  %v2028 = vmul.f32 %v2018, %v2026
  %v2029 = vpack.c.bf16 %v2027, %v2027
  %v2030 = vpack.c.bf16 %v2028, %v2028
  %2031 = vrot.lane.b32.xlu0 %v1261, 72
  %v2032 = vpop.permute.xlu0 %2031
  %v2035 = vsel %vm1026, %v2029, 0
  %2037 = vmatprep.subr.bf16.mxu0 0
  %2038 = vmatpush1.bf16.msra.mxu0 %v2032
  %2039 = vmatprep.subr.bf16.mxu0 0
  %2040 = vmatpush1.bf16.msra.mxu0 0
  %2041 = vmatprep.subr.bf16.mxu0 0
  %2042 = vmatpush1.bf16.msra.mxu0 0
  %2043 = vmatprep.subr.bf16.mxu0 0
  %2044 = vmatpush1.bf16.msra.mxu0 0
  %2045 = vmatprep.subr.bf16.mxu0 0
  %2046 = vmatpush1.bf16.msra.mxu0 0
  %2047 = vmatprep.subr.bf16.mxu0 0
  %2048 = vmatpush1.bf16.msra.mxu0 0
  %2049 = vmatprep.subr.bf16.mxu0 0
  %2050 = vmatpush1.bf16.msra.mxu0 0
  %2051 = vmatprep.subr.bf16.mxu0 0
  %2052 = vmatpush1.bf16.msra.mxu0 0
  %2053 = vmatprep.subr.bf16.mxu0 0
  %2054 = vmatpush1.bf16.msra.mxu0 0
  %2055 = vmatprep.subr.bf16.mxu0 0
  %2056 = vmatpush1.bf16.msra.mxu0 0
  %2057 = vmatprep.subr.bf16.mxu0 0
  %2058 = vmatpush1.bf16.msra.mxu0 0
  %2059 = vmatprep.subr.bf16.mxu0 0
  %2060 = vmatpush1.bf16.msra.mxu0 0
  %2061 = vmatprep.subr.bf16.mxu0 0
  %2062 = vmatpush1.bf16.msra.mxu0 0
  %2063 = vmatprep.subr.bf16.mxu0 0
  %2064 = vmatpush1.bf16.msra.mxu0 0
  %2065 = vmatprep.subr.bf16.mxu0 0
  %2066 = vmatpush1.bf16.msra.mxu0 0
  %2067 = vmatprep.subr.bf16.mxu0 0
  %2068 = vmatpush1.bf16.msra.mxu0 0
  %2069 = vmatprep.mubr.bf16.mxu0 0
  %2070 = vmatmul.mubr.bf16.gmra.mrb[0].mxu0 %v2035
  %v2071 = vpop.f32.mrb[0].mxu0
  %v2072 = vadd.f32 0.0, %v2071
  %v2073 = vpop.f32.mrb[0].mxu0
  %v2074 = vpop.f32.mrb[0].mxu0
  %v2075 = vpop.f32.mrb[0].mxu0
  %2076 = vdwg.mxu0
  %2077 = vrot.lane.b32.xlu0 %v1262, 72
  %v2078 = vpop.permute.xlu0 %2077
  %v2081 = vsel %vm1026, %v2030, 0
  %2083 = vmatprep.subr.bf16.mxu0 0
  %2084 = vmatpush1.bf16.msra.mxu0 %v2078
  %2085 = vmatprep.subr.bf16.mxu0 0
  %2086 = vmatpush1.bf16.msra.mxu0 0
  %2087 = vmatprep.subr.bf16.mxu0 0
  %2088 = vmatpush1.bf16.msra.mxu0 0
  %2089 = vmatprep.subr.bf16.mxu0 0
  %2090 = vmatpush1.bf16.msra.mxu0 0
  %2091 = vmatprep.subr.bf16.mxu0 0
  %2092 = vmatpush1.bf16.msra.mxu0 0
  %2093 = vmatprep.subr.bf16.mxu0 0
  %2094 = vmatpush1.bf16.msra.mxu0 0
  %2095 = vmatprep.subr.bf16.mxu0 0
  %2096 = vmatpush1.bf16.msra.mxu0 0
  %2097 = vmatprep.subr.bf16.mxu0 0
  %2098 = vmatpush1.bf16.msra.mxu0 0
  %2099 = vmatprep.subr.bf16.mxu0 0
  %2100 = vmatpush1.bf16.msra.mxu0 0
  %2101 = vmatprep.subr.bf16.mxu0 0
  %2102 = vmatpush1.bf16.msra.mxu0 0
  %2103 = vmatprep.subr.bf16.mxu0 0
  %2104 = vmatpush1.bf16.msra.mxu0 0
  %2105 = vmatprep.subr.bf16.mxu0 0
  %2106 = vmatpush1.bf16.msra.mxu0 0
  %2107 = vmatprep.subr.bf16.mxu0 0
  %2108 = vmatpush1.bf16.msra.mxu0 0
  %2109 = vmatprep.subr.bf16.mxu0 0
  %2110 = vmatpush1.bf16.msra.mxu0 0
  %2111 = vmatprep.subr.bf16.mxu0 0
  %2112 = vmatpush1.bf16.msra.mxu0 0
  %2113 = vmatprep.subr.bf16.mxu0 0
  %2114 = vmatpush1.bf16.msra.mxu0 0
  %2115 = vmatprep.mubr.bf16.mxu0 0
  %2116 = vmatmul.mubr.bf16.gmra.mrb[0].mxu0 %v2081
  %v2117 = vpop.f32.mrb[0].mxu0
  %v2118 = vadd.f32 0.0, %v2117
  %v2119 = vpop.f32.mrb[0].mxu0
  %v2120 = vpop.f32.mrb[0].mxu0
  %v2121 = vpop.f32.mrb[0].mxu0
  %2122 = vdwg.mxu0
  %2125 = vrot.lane.b32.xlu0 %v1640, 8
  %v2126 = vpop.permute.xlu0 %2125
  %2127 = vrot.lane.b32.xlu0 %v1686, 8
  %v2128 = vpop.permute.xlu0 %2127
  %2133 = vrot.lane.b32.xlu0 %v1856, 16
  %v2134 = vpop.permute.xlu0 %2133
  %2135 = vrot.lane.b32.xlu0 %v1902, 16
  %v2136 = vpop.permute.xlu0 %2135
  %2141 = vrot.lane.b32.xlu0 %v2072, 24
  %v2142 = vpop.permute.xlu0 %2141
  %2143 = vrot.lane.b32.xlu0 %v2118, 24
  %v2144 = vpop.permute.xlu0 %2143
  %v2147 = vsel %vm121, %v1421, %v2126
  %v2148 = vsel %vm121, %v1468, %v2128
  %v2149 = vsel %vm1026, %v2147, %v2134
  %v2150 = vsel %vm1026, %v2148, %v2136
  %v2151 = vsel %vm1029, %v2149, %v2142
  %v2152 = vsel %vm1029, %v2150, %v2144
  %v2153 = vpack.c.bf16 %v2152, %v2151
  %v2154 = vlaneseq
  %v2155 = vshrl.u32 %v2154, 7
  %v2156 = vsub.s32 4, %v2155
  %v2157 = vrot.slane %v39, %v2156
  %2158 = vrot.lane.b32.xlu0 %v1141, 32
  %v2159 = vpop.permute.xlu0 %2158
  %2160 = vrot.lane.b32.xlu0 %v1142, 32
  %v2161 = vpop.permute.xlu0 %2160
  %v2165 = vsel %vm66, %v2153, 0
  %2167 = vmatprep.subr.bf16.mxu0 0
  %2168 = vmatpush1.bf16.msra.mxu0 %v2159
  %2169 = vmatprep.subr.bf16.mxu0 0
  %2170 = vmatpush1.bf16.msra.mxu0 %v2161
  %2171 = vmatprep.subr.bf16.mxu0 0
  %2172 = vmatpush1.bf16.msra.mxu0 0
  %2173 = vmatprep.subr.bf16.mxu0 0
  %2174 = vmatpush1.bf16.msra.mxu0 0
  %2175 = vmatprep.subr.bf16.mxu0 0
  %2176 = vmatpush1.bf16.msra.mxu0 0
  %2177 = vmatprep.subr.bf16.mxu0 0
  %2178 = vmatpush1.bf16.msra.mxu0 0
  %2179 = vmatprep.subr.bf16.mxu0 0
  %2180 = vmatpush1.bf16.msra.mxu0 0
  %2181 = vmatprep.subr.bf16.mxu0 0
  %2182 = vmatpush1.bf16.msra.mxu0 0
  %2183 = vmatprep.subr.bf16.mxu0 0
  %2184 = vmatpush1.bf16.msra.mxu0 0
  %2185 = vmatprep.subr.bf16.mxu0 0
  %2186 = vmatpush1.bf16.msra.mxu0 0
  %2187 = vmatprep.subr.bf16.mxu0 0
  %2188 = vmatpush1.bf16.msra.mxu0 0
  %2189 = vmatprep.subr.bf16.mxu0 0
  %2190 = vmatpush1.bf16.msra.mxu0 0
  %2191 = vmatprep.subr.bf16.mxu0 0
  %2192 = vmatpush1.bf16.msra.mxu0 0
  %2193 = vmatprep.subr.bf16.mxu0 0
  %2194 = vmatpush1.bf16.msra.mxu0 0
  %2195 = vmatprep.subr.bf16.mxu0 0
  %2196 = vmatpush1.bf16.msra.mxu0 0
  %2197 = vmatprep.subr.bf16.mxu0 0
  %2198 = vmatpush1.bf16.msra.mxu0 0
  %2199 = vmatprep.mubr.bf16.mxu0 0
  %2200 = vmatmul.mubr.bf16.gmra.mrb[0].mxu0 %v2165
  %v2201 = vpop.f32.mrb[0].mxu0
  %v2202 = vadd.f32 %v2157, %v2201
  %v2203 = vpop.f32.mrb[0].mxu0
  %v2204 = vpop.f32.mrb[0].mxu0
  %v2205 = vadd.f32 %v2157, %v2204
  %v2206 = vpop.f32.mrb[0].mxu0
  %2207 = vdwg.mxu0
  %v2208 = vadd.f32 %v1126, %v2202
  %v2209 = vadd.f32 %v1127, %v2205
  %v2210 = vsel %vm66, %v2208, 0.0
  %2211 = vadd.xlane.f32.xlu0 %v2210
  %v2212 = vpop.xlane.xlu0 %2211
  %v2213 = vsel %vm66, %v2209, 0.0
  %2214 = vadd.xlane.f32.xlu0 %v2213
  %v2215 = vpop.xlane.xlu0 %2214
  %v2216 = vmul.f32 %v2212, %v1095
  %v2217 = vmul.f32 %v2215, %v1095
  %v2218 = vsub.f32 %v2208, %v2216
  %v2219 = vsub.f32 %v2209, %v2217
  %v2220 = vmul.f32 %v2218, %v2218
  %v2221 = vmul.f32 %v2219, %v2219
  %v2222 = vsel %vm66, %v2220, 0.0
  %2223 = vadd.xlane.f32.xlu0 %v2222
  %v2224 = vpop.xlane.xlu0 %2223
  %v2225 = vsel %vm66, %v2221, 0.0
  %2226 = vadd.xlane.f32.xlu0 %v2225
  %v2227 = vpop.xlane.xlu0 %2226
  %v2228 = vmul.f32 %v2224, %v1095
  %v2229 = vmul.f32 %v2227, %v1095
  %v2230 = vadd.f32 %v2228, 1e-05
  %v2231 = vadd.f32 %v2229, 1e-05
  %v2232 = vrsqrt.pop %v2230
  %v2233 = vrsqrt.pop %v2231
  %v2234 = vmul.f32 %v2218, %v2232
  %v2235 = vmul.f32 %v2219, %v2233
  %v2236 = vlaneseq
  %v2237 = vshrl.u32 %v2236, 7
  %v2238 = vsub.s32 0, %v2237
  %v2239 = vrot.slane %v40, %v2238
  %v2240 = vmul.f32 %v2234, %v2239
  %v2241 = vmul.f32 %v2235, %v2239
  %v2242 = vlaneseq
  %v2243 = vshrl.u32 %v2242, 7
  %v2244 = vsub.s32 1, %v2243
  %v2245 = vrot.slane %v40, %v2244
  %v2246 = vadd.f32 %v2240, %v2245
  %v2247 = vadd.f32 %v2241, %v2245
  %v2248 = vld [vmem:[%s6] sm:$0xf]
  %v2249 = vld [vmem:[%s6 + $0x4] sm:$0xf]
  %v2250 = vld [vmem:[%s6 + $0x8] sm:$0xf]
  %v2251 = vld [vmem:[%s6 + $0xc] sm:$0xf]
  %v2252 = vpack.c.bf16 %v2247, %v2246
  %v2253 = vlaneseq
  %v2254 = vshrl.u32 %v2253, 7
  %v2255 = vsub.s32 2, %v2254
  %v2256 = vrot.slane %v39, %v2255
  %v2261 = vunpack.c.l.b16 %v2248
  %v2262 = vunpack.c.l.b16 %v2249
  %v2263 = vunpack.c.l.b16 %v2250
  %v2264 = vunpack.c.l.b16 %v2251
  %v2265 = vpack.c.b16 %v2262, %v2261
  %v2266 = vpack.c.b16 %v2264, %v2263
  %v2270 = vsel %vm66, %v2252, 0
  %2272 = vmatprep.subr.bf16.mxu0 0
  %2273 = vmatpush1.bf16.msra.mxu0 %v2265
  %2274 = vmatprep.subr.bf16.mxu0 0
  %2275 = vmatpush1.bf16.msra.mxu0 %v2266
  %2276 = vmatprep.subr.bf16.mxu0 0
  %2277 = vmatpush1.bf16.msra.mxu0 0
  %2278 = vmatprep.subr.bf16.mxu0 0
  %2279 = vmatpush1.bf16.msra.mxu0 0
  %2280 = vmatprep.subr.bf16.mxu0 0
  %2281 = vmatpush1.bf16.msra.mxu0 0
  %2282 = vmatprep.subr.bf16.mxu0 0
  %2283 = vmatpush1.bf16.msra.mxu0 0
  %2284 = vmatprep.subr.bf16.mxu0 0
  %2285 = vmatpush1.bf16.msra.mxu0 0
  %2286 = vmatprep.subr.bf16.mxu0 0
  %2287 = vmatpush1.bf16.msra.mxu0 0
  %2288 = vmatprep.subr.bf16.mxu0 0
  %2289 = vmatpush1.bf16.msra.mxu0 0
  %2290 = vmatprep.subr.bf16.mxu0 0
  %2291 = vmatpush1.bf16.msra.mxu0 0
  %2292 = vmatprep.subr.bf16.mxu0 0
  %2293 = vmatpush1.bf16.msra.mxu0 0
  %2294 = vmatprep.subr.bf16.mxu0 0
  %2295 = vmatpush1.bf16.msra.mxu0 0
  %2296 = vmatprep.subr.bf16.mxu0 0
  %2297 = vmatpush1.bf16.msra.mxu0 0
  %2298 = vmatprep.subr.bf16.mxu0 0
  %2299 = vmatpush1.bf16.msra.mxu0 0
  %2300 = vmatprep.subr.bf16.mxu0 0
  %2301 = vmatpush1.bf16.msra.mxu0 0
  %2302 = vmatprep.subr.bf16.mxu0 0
  %2303 = vmatpush1.bf16.msra.mxu0 0
  %2304 = vmatprep.mubr.bf16.mxu0 0
  %2305 = vmatmul.mubr.bf16.gmra.mrb[0].mxu0 %v2270
  %v2306 = vpop.f32.mrb[0].mxu0
  %v2307 = vadd.f32 %v2256, %v2306
  %v2308 = vpop.f32.mrb[0].mxu0
  %v2309 = vpop.f32.mrb[0].mxu0
  %v2310 = vadd.f32 %v2256, %v2309
  %v2311 = vpop.f32.mrb[0].mxu0
  %2312 = vdwg.mxu0
  %v2313 = vmax.f32 %v2307, 0.0
  %v2314 = vmax.f32 %v2310, 0.0
  %v2315 = vld [vmem:[%s7] sm:$0xf]
  %v2316 = vld [vmem:[%s7 + $0x4] sm:$0xf]
  %v2317 = vld [vmem:[%s7 + $0x8] sm:$0xf]
  %v2318 = vld [vmem:[%s7 + $0xc] sm:$0xf]
  %v2319 = vld [vmem:[%s7 + $0x10] sm:$0xf]
  %v2320 = vld [vmem:[%s7 + $0x14] sm:$0xf]
  %v2321 = vld [vmem:[%s7 + $0x18] sm:$0xf]
  %v2322 = vld [vmem:[%s7 + $0x1c] sm:$0xf]
  %v2323 = vpack.c.bf16 %v2314, %v2313
  %v2324 = vlaneseq
  %v2325 = vshrl.u32 %v2324, 7
  %v2326 = vsub.s32 5, %v2325
  %v2327 = vrot.slane %v39, %v2326
  %v2336 = vunpack.c.l.b16 %v2315
  %v2337 = vunpack.c.l.b16 %v2316
  %v2338 = vunpack.c.l.b16 %v2317
  %v2339 = vunpack.c.l.b16 %v2318
  %v2340 = vunpack.c.l.b16 %v2319
  %v2341 = vunpack.c.l.b16 %v2320
  %v2342 = vunpack.c.l.b16 %v2321
  %v2343 = vunpack.c.l.b16 %v2322
  %v2344 = vpack.c.b16 %v2337, %v2336
  %v2345 = vpack.c.b16 %v2339, %v2338
  %v2346 = vpack.c.b16 %v2341, %v2340
  %v2347 = vpack.c.b16 %v2343, %v2342
  %vm2352 = vcmask 523264
  %v2354 = vsel %vm2352, %v2323, 0
  %2356 = vmatprep.subr.bf16.mxu0 0
  %2357 = vmatpush1.bf16.msra.mxu0 %v2344
  %2358 = vmatprep.subr.bf16.mxu0 0
  %2359 = vmatpush1.bf16.msra.mxu0 %v2345
  %2360 = vmatprep.subr.bf16.mxu0 0
  %2361 = vmatpush1.bf16.msra.mxu0 %v2346
  %2362 = vmatprep.subr.bf16.mxu0 0
  %2363 = vmatpush1.bf16.msra.mxu0 %v2347
  %2364 = vmatprep.subr.bf16.mxu0 0
  %2365 = vmatpush1.bf16.msra.mxu0 0
  %2366 = vmatprep.subr.bf16.mxu0 0
  %2367 = vmatpush1.bf16.msra.mxu0 0
  %2368 = vmatprep.subr.bf16.mxu0 0
  %2369 = vmatpush1.bf16.msra.mxu0 0
  %2370 = vmatprep.subr.bf16.mxu0 0
  %2371 = vmatpush1.bf16.msra.mxu0 0
  %2372 = vmatprep.subr.bf16.mxu0 0
  %2373 = vmatpush1.bf16.msra.mxu0 0
  %2374 = vmatprep.subr.bf16.mxu0 0
  %2375 = vmatpush1.bf16.msra.mxu0 0
  %2376 = vmatprep.subr.bf16.mxu0 0
  %2377 = vmatpush1.bf16.msra.mxu0 0
  %2378 = vmatprep.subr.bf16.mxu0 0
  %2379 = vmatpush1.bf16.msra.mxu0 0
  %2380 = vmatprep.subr.bf16.mxu0 0
  %2381 = vmatpush1.bf16.msra.mxu0 0
  %2382 = vmatprep.subr.bf16.mxu0 0
  %2383 = vmatpush1.bf16.msra.mxu0 0
  %2384 = vmatprep.subr.bf16.mxu0 0
  %2385 = vmatpush1.bf16.msra.mxu0 0
  %2386 = vmatprep.subr.bf16.mxu0 0
  %2387 = vmatpush1.bf16.msra.mxu0 0
  %2388 = vmatprep.mubr.bf16.mxu0 0
  %2389 = vmatmul.mubr.bf16.gmra.mrb[0].mxu0 %v2354
  %v2390 = vpop.f32.mrb[0].mxu0
  %v2391 = vadd.f32 %v2327, %v2390
  %v2392 = vpop.f32.mrb[0].mxu0
  %v2393 = vpop.f32.mrb[0].mxu0
  %v2394 = vadd.f32 %v2327, %v2393
  %v2395 = vpop.f32.mrb[0].mxu0
  %2396 = vdwg.mxu0
  %v2397 = vadd.f32 %v2246, %v2391
  %v2398 = vadd.f32 %v2247, %v2394
  %v2399 = vsel %vm66, %v2397, 0.0
  %2400 = vadd.xlane.f32.xlu0 %v2399
  %v2401 = vpop.xlane.xlu0 %2400
  %v2402 = vsel %vm66, %v2398, 0.0
  %2403 = vadd.xlane.f32.xlu0 %v2402
  %v2404 = vpop.xlane.xlu0 %2403
  %v2405 = vmul.f32 %v2401, %v1095
  %v2406 = vmul.f32 %v2404, %v1095
  %v2407 = vsub.f32 %v2397, %v2405
  %v2408 = vsub.f32 %v2398, %v2406
  %v2409 = vmul.f32 %v2407, %v2407
  %v2410 = vmul.f32 %v2408, %v2408
  %v2411 = vsel %vm66, %v2409, 0.0
  %2412 = vadd.xlane.f32.xlu0 %v2411
  %v2413 = vpop.xlane.xlu0 %2412
  %v2414 = vsel %vm66, %v2410, 0.0
  %2415 = vadd.xlane.f32.xlu0 %v2414
  %v2416 = vpop.xlane.xlu0 %2415
  %v2417 = vmul.f32 %v2413, %v1095
  %v2418 = vmul.f32 %v2416, %v1095
  %v2419 = vadd.f32 %v2417, 1e-05
  %v2420 = vadd.f32 %v2418, 1e-05
  %v2421 = vrsqrt.pop %v2419
  %v2422 = vrsqrt.pop %v2420
  %v2423 = vmul.f32 %v2407, %v2421
  %v2424 = vmul.f32 %v2408, %v2422
  %v2425 = vlaneseq
  %v2426 = vshrl.u32 %v2425, 7
  %v2427 = vsub.s32 2, %v2426
  %v2428 = vrot.slane %v40, %v2427
  %v2429 = vmul.f32 %v2423, %v2428
  %v2430 = vmul.f32 %v2424, %v2428
  %v2431 = vlaneseq
  %v2432 = vshrl.u32 %v2431, 7
  %v2433 = vsub.s32 3, %v2432
  %v2434 = vrot.slane %v40, %v2433
  %v2435 = vadd.f32 %v2429, %v2434
  %v2436 = vadd.f32 %v2430, %v2434
  %2437 = vst.msk [vmem:[%s9] sm:$0xff] %vm66, %v2435
  %2438 = vst.msk [vmem:[%s9 + $0x8] sm:$0xff] %vm66, %v2436
  // Predicated region
  $region38: #{transformer_decoder_layer.1} parent=0 // pred_check
    _
  $region39: #{transformer_decoder_layer.1} parent=0 // pred_check_branch
    %2440 = sbr.rel (0) target = $region41
  $region40: #{transformer_decoder_layer.1} parent=0 // pred_region
    _
  $region41: #{transformer_decoder_layer.1} parent=0 // pred_fallthru
    _
  // Predicated region
  $region42: #{transformer_decoder_layer.1} parent=0 // pred_check
    _
  $region43: #{transformer_decoder_layer.1} parent=0 // pred_check_branch
    %2442 = sbr.rel (0) target = $region45
  $region44: #{transformer_decoder_layer.1} parent=0 // pred_region
    _
  $region45: #{transformer_decoder_layer.1} parent=0 // pred_fallthru
    _

</llo_original>
